<compile_context>
chip_gen: v6e
topology: v6e:2x2x1
jax: 0.10.0
libtpu: 0.0.40
codegen_flags: <defaults>
</compile_context>

<pallas_src>
import functools

import jax
import jax.numpy as jnp
from jax.experimental import pallas as pl
from jax.experimental.pallas import tpu as pltpu

BN_EPS = 1e-5


# ----------------------------------------------------------------------------
# Fully fused kernel: conv tower + flatten + dense block for `tb` batch rows.
# ----------------------------------------------------------------------------
def _deepstarr_kernel(*refs, tb, conv_dims):
    """refs layout:
        refs[0]                 x        (tb*L0, Cin0) f32  (batch-merged rows)
        refs[1+3*i : 4+3*i]     conv i   w (K*Cin, Cout) bf16, scale (1,Cout) f32,
                                         bias (1,Cout) f32
        refs[13:21]             dense    w1, s1, b1, w2, s2, b2, w3, b3
        refs[-1]                out      (tb, output_dim) f32
    """
    x_ref = refs[0]
    o_ref = refs[-1]
    dw1, ds1, db1, dw2, ds2, db2, dw3, db3 = refs[1 + 3 * len(conv_dims):-1]

    h = x_ref[...]                                        # (tb*L0, Cin0) f32
    for i, (K, cin, cout, L) in enumerate(conv_dims):
        w_r = refs[1 + 3 * i]
        s_r = refs[2 + 3 * i]
        b_r = refs[3 + 3 * i]
        pad = (K - 1) // 2
        # position of each row within its batch element, shape (tb*L, 1)
        pos = jax.lax.broadcasted_iota(jnp.int32, (L, 1), 0)
        pos = jnp.concatenate([pos] * tb, axis=0)
        # im2col: K boundary-masked row-shifted copies, concatenated on lanes.
        cols = []
        for k in range(K):
            s = k - pad
            if s == 0:
                cols.append(h)
                continue
            if s > 0:
                xs = jnp.concatenate(
                    [h[s:, :], jnp.zeros((s, cin), h.dtype)], axis=0)
            else:
                xs = jnp.concatenate(
                    [jnp.zeros((-s, cin), h.dtype), h[:s, :]], axis=0)
            valid = jnp.logical_and(pos + s >= 0, pos + s < L)
            cols.append(jnp.where(valid, xs, 0.0))
        xi = jnp.concatenate(cols, axis=1).astype(jnp.bfloat16)   # (tb*L, K*Cin)
        # conv-as-one-matmul (bf16 x bf16 -> f32) + folded BN + ReLU
        y = jnp.dot(xi, w_r[...], preferred_element_type=jnp.float32)
        y = jnp.maximum(y * s_r[...] + b_r[...], 0.0)             # (tb*L, Cout)
        # MaxPool1d(2), floor semantics for odd L (matches PyTorch)
        Lo = L // 2
        if L % 2 == 0:
            h = jnp.max(y.reshape(tb * Lo, 2, cout), axis=1)
        else:
            parts = []
            for b in range(tb):
                yb = y[b * L:b * L + 2 * Lo, :]
                parts.append(jnp.max(yb.reshape(Lo, 2, cout), axis=1))
            h = jnp.concatenate(parts, axis=0)                    # (tb*Lo, Cout)

    # Flatten per element in (position-major, channel-minor) order; the first
    # dense weight's rows were permuted at prep time to match this ordering.
    _, _, c_last, L_last = conv_dims[-1]
    L4 = L_last // 2
    rows = []
    for b in range(tb):
        pieces = [h[b * L4 + l:b * L4 + l + 1, :] for l in range(L4)]
        rows.append(jnp.concatenate(pieces, axis=1))
    hf = jnp.concatenate(rows, axis=0).astype(jnp.bfloat16)       # (tb, L4*c_last)

    # DenseBlock: [Linear -> BN -> ReLU] x 2 -> Linear   (dropout = identity @ eval)
    z = jnp.dot(hf, dw1[...], preferred_element_type=jnp.float32)
    z = jnp.maximum(z * ds1[...] + db1[...], 0.0)
    z = jnp.dot(z.astype(jnp.bfloat16), dw2[...], preferred_element_type=jnp.float32)
    z = jnp.maximum(z * ds2[...] + db2[...], 0.0)
    z = jnp.dot(z.astype(jnp.bfloat16), dw3[...], preferred_element_type=jnp.float32)
    o_ref[...] = (z + db3[...]).astype(o_ref.dtype)


def deepstarr_forward(kparams, x_ncl, block_b=8):
    """x_ncl: PyTorch-style (B, 4, input_len) float32; returns (B, output_dim)."""
    B, C0, L0 = x_ncl.shape
    assert L0 >= 16, "input_len must be >= 16 for four MaxPool1d(2) stages"
    tb = min(block_b, B)
    B_pad = -(-B // tb) * tb

    # NCL -> NLC, then merge batch into the row (sublane) axis.
    x = jnp.transpose(x_ncl, (0, 2, 1))
    if B_pad != B:
        x = jnp.pad(x, ((0, B_pad - B), (0, 0), (0, 0)))
    x_flat = x.reshape(B_pad * L0, C0)

    conv_dims = []
    L = L0
    for c in kparams["conv"]:
        conv_dims.append((c["K"], c["cin"], c["cout"], L))
        L = L // 2
    d = kparams["dense"]
    out_dim = d["w3"].shape[1]

    ops = [x_flat]
    in_specs = [pl.BlockSpec((tb * L0, C0), lambda i: (i, 0))]
    for c in kparams["conv"]:
        for a in (c["w"], c["scale"], c["bias"]):
            ops.append(a)
            in_specs.append(pl.BlockSpec(a.shape, lambda i: (0, 0)))
    for a in (d["w1"], d["s1"], d["b1"], d["w2"], d["s2"], d["b2"],
              d["w3"], d["b3"]):
        ops.append(a)
        in_specs.append(pl.BlockSpec(a.shape, lambda i: (0, 0)))

    kernel = functools.partial(_deepstarr_kernel, tb=tb,
                               conv_dims=tuple(conv_dims))
    out = pl.pallas_call(
        kernel,
        out_shape=jax.ShapeDtypeStruct((B_pad, out_dim), jnp.float32),
        grid=(B_pad // tb,),
        in_specs=in_specs,
        out_specs=pl.BlockSpec((tb, out_dim), lambda i: (i, 0)),
        compiler_params=pltpu.CompilerParams(
            dimension_semantics=("parallel",),          # megacore sharding on v7x
            vmem_limit_bytes=32 * 1024 * 1024),
    )(*ops)
    return out[:B]


# ----------------------------------------------------------------------------
# Parameter init (deterministic, synthetic, PyTorch layout) + BN folding + prep
# ----------------------------------------------------------------------------
def fold_bn(lin_bias, gamma, beta, mean, var):
    scale = gamma / jnp.sqrt(var + BN_EPS)
    bias = beta + scale * (lin_bias - mean)
    return scale[None, :].astype(jnp.float32), bias[None, :].astype(jnp.float32)


def _layer_params(key, w_shape, c_out, fan_in):
    ks = jax.random.split(key, 6)
    w = jax.random.normal(ks[0], w_shape, jnp.float32) / jnp.sqrt(fan_in)
    b = 0.1 * jax.random.normal(ks[1], (c_out,), jnp.float32)
    gamma = 1.0 + 0.1 * jax.random.normal(ks[2], (c_out,), jnp.float32)
    beta = 0.1 * jax.random.normal(ks[3], (c_out,), jnp.float32)
    mean = 0.1 * jax.random.normal(ks[4], (c_out,), jnp.float32)
    var = jnp.abs(jax.random.normal(ks[5], (c_out,), jnp.float32)) + 0.5
    scale, bias = fold_bn(b, gamma, beta, mean, var)
    return w, scale, bias


def init_params(key, input_len, output_dim):
    conv_channels = [246, 60, 60, 120]
    conv_kernels = [7, 3, 5, 3]
    hidden_dims = [256, 256]

    params = {"conv": [], "dense": []}
    c_in, L = 4, input_len
    for c_out, k in zip(conv_channels, conv_kernels):
        key, sub = jax.random.split(key)
        w, scale, bias = _layer_params(sub, (k, c_in, c_out), c_out, k * c_in)
        params["conv"].append((w, scale, bias))
        c_in, L = c_out, L // 2

    flatten_dim = c_in * L
    d_in = flatten_dim
    for h in hidden_dims:
        key, sub = jax.random.split(key)
        w, scale, bias = _layer_params(sub, (d_in, h), h, d_in)
        params["dense"].append((w, scale, bias))
        d_in = h

    key, k1, k2 = jax.random.split(key, 3)
    w3 = jax.random.normal(k1, (d_in, output_dim), jnp.float32) / jnp.sqrt(d_in)
    b3 = 0.1 * jax.random.normal(k2, (output_dim,), jnp.float32)
    params["out"] = (w3, b3[None, :])
    return params, flatten_dim


def prepare_params(params):
    """One-time conversion of PyTorch-layout params to kernel operand layout:
    conv weights reshaped to (K*Cin, Cout) bf16; dense w1 rows permuted from
    channel-major (c*L4+l) to position-major (l*C4+c) flatten order; all
    matmul weights cast to bf16 (folded BN scales/biases stay f32)."""
    conv = []
    for (w, scale, bias) in params["conv"]:
        K, cin, cout = w.shape
        conv.append(dict(K=K, cin=cin, cout=cout,
                         w=jnp.reshape(w, (K * cin, cout)).astype(jnp.bfloat16),
                         scale=scale, bias=bias))
    (w1, s1, b1), (w2, s2, b2) = params["dense"]
    w3, b3 = params["out"]
    c_last = conv[-1]["cout"]
    L4 = w1.shape[0] // c_last
    h1 = w1.shape[1]
    w1p = (w1.reshape(c_last, L4, h1).transpose(1, 0, 2)
              .reshape(L4 * c_last, h1))
    dense = dict(w1=w1p.astype(jnp.bfloat16), s1=s1, b1=b1,
                 w2=w2.astype(jnp.bfloat16), s2=s2, b2=b2,
                 w3=w3.astype(jnp.bfloat16), b3=b3)
    return dict(conv=conv, dense=dense)


# ----------------------------------------------------------------------------
# Pure-JAX (f32) reference for a correctness check
# ----------------------------------------------------------------------------
def reference_forward(params, x_ncl):
    h = jnp.transpose(x_ncl, (0, 2, 1)).astype(jnp.float32)   # (B, L, C)
    for (w, scale, bias) in params["conv"]:
        K, cin, cout = w.shape
        pad = (K - 1) // 2
        L = h.shape[1]
        xp = jnp.pad(h, ((0, 0), (pad, pad), (0, 0)))
        y = jnp.zeros((h.shape[0], L, cout), jnp.float32)
        for k in range(K):
            y = y + jnp.einsum("blc,co->blo", xp[:, k:k + L, :], w[k])
        y = jnp.maximum(y * scale[None] + bias[None], 0.0)
        Lo = L // 2
        h = jnp.max(y[:, :2 * Lo].reshape(h.shape[0], Lo, 2, cout), axis=2)
    B = h.shape[0]
    hf = jnp.transpose(h, (0, 2, 1)).reshape(B, -1)           # PyTorch flatten
    (w1, s1, b1), (w2, s2, b2) = params["dense"]
    w3, b3 = params["out"]
    z = jnp.maximum(hf @ w1 * s1 + b1, 0.0)
    z = jnp.maximum(z @ w2 * s2 + b2, 0.0)
    return z @ w3 + b3


if __name__ == "__main__":
    B, input_len, output_dim = 2, 32, 2
    key = jax.random.PRNGKey(0)
    x = jax.random.normal(key, (B, 4, input_len), jnp.float32)

    params, flatten_dim = init_params(jax.random.PRNGKey(1), input_len, output_dim)
    assert flatten_dim == 120 * (input_len // 16)

    kparams = prepare_params(params)
    out = deepstarr_forward(kparams, x)
    out = jax.block_until_ready(out)
    assert out.shape == (B, output_dim)
    assert bool(jnp.all(jnp.isfinite(out)))

    ref = reference_forward(params, x)
    err = float(jnp.max(jnp.abs(out - ref)))
    scale = float(jnp.max(jnp.abs(ref))) + 1e-6
    assert err / scale < 5e-2, (err, scale)
    print("KERNEL_OK")
</pallas_src>

<mosaic_0001>
module attributes {stable_mosaic.version = 11 : i64} {
  func.func @_deepstarr_kernel(%arg0: i32, %arg1: memref<64x4xf32, #tpu.memory_space<vmem>>, %arg2: memref<28x246xbf16, #tpu.memory_space<vmem>>, %arg3: memref<1x246xf32, #tpu.memory_space<vmem>>, %arg4: memref<1x246xf32, #tpu.memory_space<vmem>>, %arg5: memref<738x60xbf16, #tpu.memory_space<vmem>>, %arg6: memref<1x60xf32, #tpu.memory_space<vmem>>, %arg7: memref<1x60xf32, #tpu.memory_space<vmem>>, %arg8: memref<300x60xbf16, #tpu.memory_space<vmem>>, %arg9: memref<1x60xf32, #tpu.memory_space<vmem>>, %arg10: memref<1x60xf32, #tpu.memory_space<vmem>>, %arg11: memref<180x120xbf16, #tpu.memory_space<vmem>>, %arg12: memref<1x120xf32, #tpu.memory_space<vmem>>, %arg13: memref<1x120xf32, #tpu.memory_space<vmem>>, %arg14: memref<240x256xbf16, #tpu.memory_space<vmem>>, %arg15: memref<1x256xf32, #tpu.memory_space<vmem>>, %arg16: memref<1x256xf32, #tpu.memory_space<vmem>>, %arg17: memref<256x256xbf16, #tpu.memory_space<vmem>>, %arg18: memref<1x256xf32, #tpu.memory_space<vmem>>, %arg19: memref<1x256xf32, #tpu.memory_space<vmem>>, %arg20: memref<256x2xbf16, #tpu.memory_space<vmem>>, %arg21: memref<1x2xf32, #tpu.memory_space<vmem>>, %arg22: memref<2x2xf32, #tpu.memory_space<vmem>>) attributes {dimension_semantics = [#tpu.dimension_semantics<parallel>], iteration_bounds = array<i64: 1>, scalar_prefetch = 0 : i64, scratch_operands = 0 : i64, tpu.core_type = #tpu.core_type<tc>, window_params = [{transform_indices = @transform_0, window_bounds = array<i64: 64, 4>}, {pipeline_mode = #tpu.pipeline_mode<synchronous>, transform_indices = @transform_1, window_bounds = array<i64: 28, 246>}, {pipeline_mode = #tpu.pipeline_mode<synchronous>, transform_indices = @transform_2, window_bounds = array<i64: 1, 246>}, {pipeline_mode = #tpu.pipeline_mode<synchronous>, transform_indices = @transform_3, window_bounds = array<i64: 1, 246>}, {pipeline_mode = #tpu.pipeline_mode<synchronous>, transform_indices = @transform_4, window_bounds = array<i64: 738, 60>}, {pipeline_mode = #tpu.pipeline_mode<synchronous>, transform_indices = @transform_5, window_bounds = array<i64: 1, 60>}, {pipeline_mode = #tpu.pipeline_mode<synchronous>, transform_indices = @transform_6, window_bounds = array<i64: 1, 60>}, {pipeline_mode = #tpu.pipeline_mode<synchronous>, transform_indices = @transform_7, window_bounds = array<i64: 300, 60>}, {pipeline_mode = #tpu.pipeline_mode<synchronous>, transform_indices = @transform_8, window_bounds = array<i64: 1, 60>}, {pipeline_mode = #tpu.pipeline_mode<synchronous>, transform_indices = @transform_9, window_bounds = array<i64: 1, 60>}, {pipeline_mode = #tpu.pipeline_mode<synchronous>, transform_indices = @transform_10, window_bounds = array<i64: 180, 120>}, {pipeline_mode = #tpu.pipeline_mode<synchronous>, transform_indices = @transform_11, window_bounds = array<i64: 1, 120>}, {pipeline_mode = #tpu.pipeline_mode<synchronous>, transform_indices = @transform_12, window_bounds = array<i64: 1, 120>}, {pipeline_mode = #tpu.pipeline_mode<synchronous>, transform_indices = @transform_13, window_bounds = array<i64: 240, 256>}, {pipeline_mode = #tpu.pipeline_mode<synchronous>, transform_indices = @transform_14, window_bounds = array<i64: 1, 256>}, {pipeline_mode = #tpu.pipeline_mode<synchronous>, transform_indices = @transform_15, window_bounds = array<i64: 1, 256>}, {pipeline_mode = #tpu.pipeline_mode<synchronous>, transform_indices = @transform_16, window_bounds = array<i64: 256, 256>}, {pipeline_mode = #tpu.pipeline_mode<synchronous>, transform_indices = @transform_17, window_bounds = array<i64: 1, 256>}, {pipeline_mode = #tpu.pipeline_mode<synchronous>, transform_indices = @transform_18, window_bounds = array<i64: 1, 256>}, {pipeline_mode = #tpu.pipeline_mode<synchronous>, transform_indices = @transform_19, window_bounds = array<i64: 256, 2>}, {pipeline_mode = #tpu.pipeline_mode<synchronous>, transform_indices = @transform_20, window_bounds = array<i64: 1, 2>}, {transform_indices = @transform_21, window_bounds = array<i64: 2, 2>}]} {
    %c0 = arith.constant 0 : index
    %c0_0 = arith.constant 0 : index
    %0 = vector.load %arg1[%c0, %c0_0] : memref<64x4xf32, #tpu.memory_space<vmem>>, vector<64x4xf32>
    %1 = tpu.iota {dimensions = array<i32: 0>} : vector<32x1xi32>
    %2 = tpu.concatenate %1, %1 in 0 : vector<32x1xi32>, vector<32x1xi32> -> vector<64x1xi32>
    %cst = arith.constant 0.000000e+00 : f32
    %3 = vector.broadcast %cst : f32 to vector<3x4xf32>
    %4 = vector.extract_strided_slice %0 {offsets = [0, 0], sizes = [61, 4], strides = [1, 1]} : vector<64x4xf32> to vector<61x4xf32>
    %5 = tpu.concatenate %3, %4 in 0 : vector<3x4xf32>, vector<61x4xf32> -> vector<64x4xf32>
    %c-3_i32 = arith.constant -3 : i32
    %6 = vector.broadcast %c-3_i32 : i32 to vector<64x1xi32>
    %7 = arith.addi %2, %6 : vector<64x1xi32>
    %c0_i32 = arith.constant 0 : i32
    %8 = vector.broadcast %c0_i32 : i32 to vector<64x1xi32>
    %9 = arith.cmpi sge, %7, %8 : vector<64x1xi32>
    %c-3_i32_1 = arith.constant -3 : i32
    %10 = vector.broadcast %c-3_i32_1 : i32 to vector<64x1xi32>
    %11 = arith.addi %2, %10 : vector<64x1xi32>
    %c32_i32 = arith.constant 32 : i32
    %12 = vector.broadcast %c32_i32 : i32 to vector<64x1xi32>
    %13 = arith.cmpi slt, %11, %12 : vector<64x1xi32>
    %14 = arith.andi %9, %13 : vector<64x1xi1>
    %cst_2 = arith.constant 0.000000e+00 : f32
    %15 = vector.shape_cast %14 : vector<64x1xi1> to vector<64x1xi1>
    %16 = vector.broadcast %15 : vector<64x1xi1> to vector<64x4xi1>
    %17 = vector.broadcast %cst_2 : f32 to vector<64x4xf32>
    %18 = arith.select %16, %5, %17 : vector<64x4xi1>, vector<64x4xf32>
    %cst_3 = arith.constant 0.000000e+00 : f32
    %19 = vector.broadcast %cst_3 : f32 to vector<2x4xf32>
    %20 = vector.extract_strided_slice %0 {offsets = [0, 0], sizes = [62, 4], strides = [1, 1]} : vector<64x4xf32> to vector<62x4xf32>
    %21 = tpu.concatenate %19, %20 in 0 : vector<2x4xf32>, vector<62x4xf32> -> vector<64x4xf32>
    %c-2_i32 = arith.constant -2 : i32
    %22 = vector.broadcast %c-2_i32 : i32 to vector<64x1xi32>
    %23 = arith.addi %2, %22 : vector<64x1xi32>
    %c0_i32_4 = arith.constant 0 : i32
    %24 = vector.broadcast %c0_i32_4 : i32 to vector<64x1xi32>
    %25 = arith.cmpi sge, %23, %24 : vector<64x1xi32>
    %c-2_i32_5 = arith.constant -2 : i32
    %26 = vector.broadcast %c-2_i32_5 : i32 to vector<64x1xi32>
    %27 = arith.addi %2, %26 : vector<64x1xi32>
    %c32_i32_6 = arith.constant 32 : i32
    %28 = vector.broadcast %c32_i32_6 : i32 to vector<64x1xi32>
    %29 = arith.cmpi slt, %27, %28 : vector<64x1xi32>
    %30 = arith.andi %25, %29 : vector<64x1xi1>
    %cst_7 = arith.constant 0.000000e+00 : f32
    %31 = vector.shape_cast %30 : vector<64x1xi1> to vector<64x1xi1>
    %32 = vector.broadcast %31 : vector<64x1xi1> to vector<64x4xi1>
    %33 = vector.broadcast %cst_7 : f32 to vector<64x4xf32>
    %34 = arith.select %32, %21, %33 : vector<64x4xi1>, vector<64x4xf32>
    %cst_8 = arith.constant 0.000000e+00 : f32
    %35 = vector.broadcast %cst_8 : f32 to vector<1x4xf32>
    %36 = vector.extract_strided_slice %0 {offsets = [0, 0], sizes = [63, 4], strides = [1, 1]} : vector<64x4xf32> to vector<63x4xf32>
    %37 = tpu.concatenate %35, %36 in 0 : vector<1x4xf32>, vector<63x4xf32> -> vector<64x4xf32>
    %c-1_i32 = arith.constant -1 : i32
    %38 = vector.broadcast %c-1_i32 : i32 to vector<64x1xi32>
    %39 = arith.addi %2, %38 : vector<64x1xi32>
    %c0_i32_9 = arith.constant 0 : i32
    %40 = vector.broadcast %c0_i32_9 : i32 to vector<64x1xi32>
    %41 = arith.cmpi sge, %39, %40 : vector<64x1xi32>
    %c-1_i32_10 = arith.constant -1 : i32
    %42 = vector.broadcast %c-1_i32_10 : i32 to vector<64x1xi32>
    %43 = arith.addi %2, %42 : vector<64x1xi32>
    %c32_i32_11 = arith.constant 32 : i32
    %44 = vector.broadcast %c32_i32_11 : i32 to vector<64x1xi32>
    %45 = arith.cmpi slt, %43, %44 : vector<64x1xi32>
    %46 = arith.andi %41, %45 : vector<64x1xi1>
    %cst_12 = arith.constant 0.000000e+00 : f32
    %47 = vector.shape_cast %46 : vector<64x1xi1> to vector<64x1xi1>
    %48 = vector.broadcast %47 : vector<64x1xi1> to vector<64x4xi1>
    %49 = vector.broadcast %cst_12 : f32 to vector<64x4xf32>
    %50 = arith.select %48, %37, %49 : vector<64x4xi1>, vector<64x4xf32>
    %51 = vector.extract_strided_slice %0 {offsets = [1, 0], sizes = [63, 4], strides = [1, 1]} : vector<64x4xf32> to vector<63x4xf32>
    %cst_13 = arith.constant 0.000000e+00 : f32
    %52 = vector.broadcast %cst_13 : f32 to vector<1x4xf32>
    %53 = tpu.concatenate %51, %52 in 0 : vector<63x4xf32>, vector<1x4xf32> -> vector<64x4xf32>
    %c1_i32 = arith.constant 1 : i32
    %54 = vector.broadcast %c1_i32 : i32 to vector<64x1xi32>
    %55 = arith.addi %2, %54 : vector<64x1xi32>
    %c0_i32_14 = arith.constant 0 : i32
    %56 = vector.broadcast %c0_i32_14 : i32 to vector<64x1xi32>
    %57 = arith.cmpi sge, %55, %56 : vector<64x1xi32>
    %c1_i32_15 = arith.constant 1 : i32
    %58 = vector.broadcast %c1_i32_15 : i32 to vector<64x1xi32>
    %59 = arith.addi %2, %58 : vector<64x1xi32>
    %c32_i32_16 = arith.constant 32 : i32
    %60 = vector.broadcast %c32_i32_16 : i32 to vector<64x1xi32>
    %61 = arith.cmpi slt, %59, %60 : vector<64x1xi32>
    %62 = arith.andi %57, %61 : vector<64x1xi1>
    %cst_17 = arith.constant 0.000000e+00 : f32
    %63 = vector.shape_cast %62 : vector<64x1xi1> to vector<64x1xi1>
    %64 = vector.broadcast %63 : vector<64x1xi1> to vector<64x4xi1>
    %65 = vector.broadcast %cst_17 : f32 to vector<64x4xf32>
    %66 = arith.select %64, %53, %65 : vector<64x4xi1>, vector<64x4xf32>
    %67 = vector.extract_strided_slice %0 {offsets = [2, 0], sizes = [62, 4], strides = [1, 1]} : vector<64x4xf32> to vector<62x4xf32>
    %cst_18 = arith.constant 0.000000e+00 : f32
    %68 = vector.broadcast %cst_18 : f32 to vector<2x4xf32>
    %69 = tpu.concatenate %67, %68 in 0 : vector<62x4xf32>, vector<2x4xf32> -> vector<64x4xf32>
    %c2_i32 = arith.constant 2 : i32
    %70 = vector.broadcast %c2_i32 : i32 to vector<64x1xi32>
    %71 = arith.addi %2, %70 : vector<64x1xi32>
    %c0_i32_19 = arith.constant 0 : i32
    %72 = vector.broadcast %c0_i32_19 : i32 to vector<64x1xi32>
    %73 = arith.cmpi sge, %71, %72 : vector<64x1xi32>
    %c2_i32_20 = arith.constant 2 : i32
    %74 = vector.broadcast %c2_i32_20 : i32 to vector<64x1xi32>
    %75 = arith.addi %2, %74 : vector<64x1xi32>
    %c32_i32_21 = arith.constant 32 : i32
    %76 = vector.broadcast %c32_i32_21 : i32 to vector<64x1xi32>
    %77 = arith.cmpi slt, %75, %76 : vector<64x1xi32>
    %78 = arith.andi %73, %77 : vector<64x1xi1>
    %cst_22 = arith.constant 0.000000e+00 : f32
    %79 = vector.shape_cast %78 : vector<64x1xi1> to vector<64x1xi1>
    %80 = vector.broadcast %79 : vector<64x1xi1> to vector<64x4xi1>
    %81 = vector.broadcast %cst_22 : f32 to vector<64x4xf32>
    %82 = arith.select %80, %69, %81 : vector<64x4xi1>, vector<64x4xf32>
    %83 = vector.extract_strided_slice %0 {offsets = [3, 0], sizes = [61, 4], strides = [1, 1]} : vector<64x4xf32> to vector<61x4xf32>
    %cst_23 = arith.constant 0.000000e+00 : f32
    %84 = vector.broadcast %cst_23 : f32 to vector<3x4xf32>
    %85 = tpu.concatenate %83, %84 in 0 : vector<61x4xf32>, vector<3x4xf32> -> vector<64x4xf32>
    %c3_i32 = arith.constant 3 : i32
    %86 = vector.broadcast %c3_i32 : i32 to vector<64x1xi32>
    %87 = arith.addi %2, %86 : vector<64x1xi32>
    %c0_i32_24 = arith.constant 0 : i32
    %88 = vector.broadcast %c0_i32_24 : i32 to vector<64x1xi32>
    %89 = arith.cmpi sge, %87, %88 : vector<64x1xi32>
    %c3_i32_25 = arith.constant 3 : i32
    %90 = vector.broadcast %c3_i32_25 : i32 to vector<64x1xi32>
    %91 = arith.addi %2, %90 : vector<64x1xi32>
    %c32_i32_26 = arith.constant 32 : i32
    %92 = vector.broadcast %c32_i32_26 : i32 to vector<64x1xi32>
    %93 = arith.cmpi slt, %91, %92 : vector<64x1xi32>
    %94 = arith.andi %89, %93 : vector<64x1xi1>
    %cst_27 = arith.constant 0.000000e+00 : f32
    %95 = vector.shape_cast %94 : vector<64x1xi1> to vector<64x1xi1>
    %96 = vector.broadcast %95 : vector<64x1xi1> to vector<64x4xi1>
    %97 = vector.broadcast %cst_27 : f32 to vector<64x4xf32>
    %98 = arith.select %96, %85, %97 : vector<64x4xi1>, vector<64x4xf32>
    %99 = tpu.concatenate %18, %34, %50, %0, %66, %82, %98 in 1 : vector<64x4xf32>, vector<64x4xf32>, vector<64x4xf32>, vector<64x4xf32>, vector<64x4xf32>, vector<64x4xf32>, vector<64x4xf32> -> vector<64x28xf32>
    %100 = arith.truncf %99 : vector<64x28xf32> to vector<64x28xbf16>
    %c0_28 = arith.constant 0 : index
    %c0_29 = arith.constant 0 : index
    %101 = vector.load %arg2[%c0_28, %c0_29] : memref<28x246xbf16, #tpu.memory_space<vmem>>, vector<28x246xbf16>
    %cst_30 = arith.constant dense<0.000000e+00> : vector<64x246xf32>
    %102 = tpu.matmul %100, %101, %cst_30 {dimension_numbers = #tpu.dot_dimension_numbers<[1], [0], [0], [1], [0, 0, 1, 1], [], []>} : vector<64x28xbf16>, vector<28x246xbf16>, vector<64x246xf32> -> vector<64x246xf32>
    %c0_31 = arith.constant 0 : index
    %c0_32 = arith.constant 0 : index
    %103 = vector.load %arg3[%c0_31, %c0_32] : memref<1x246xf32, #tpu.memory_space<vmem>>, vector<1x246xf32>
    %104 = vector.broadcast %103 : vector<1x246xf32> to vector<64x246xf32>
    %105 = arith.mulf %102, %104 : vector<64x246xf32>
    %c0_33 = arith.constant 0 : index
    %c0_34 = arith.constant 0 : index
    %106 = vector.load %arg4[%c0_33, %c0_34] : memref<1x246xf32, #tpu.memory_space<vmem>>, vector<1x246xf32>
    %107 = vector.broadcast %106 : vector<1x246xf32> to vector<64x246xf32>
    %108 = arith.addf %105, %107 : vector<64x246xf32>
    %cst_35 = arith.constant 0.000000e+00 : f32
    %109 = vector.broadcast %cst_35 : f32 to vector<64x246xf32>
    %110 = arith.maximumf %108, %109 : vector<64x246xf32>
    %111 = vector.shape_cast %110 : vector<64x246xf32> to vector<32x2x246xf32>
    %cst_36 = arith.constant dense<0xFF800000> : vector<32x246xf32>
    %112 = vector.multi_reduction <maximumf>, %111, %cst_36 [1] : vector<32x2x246xf32> to vector<32x246xf32>
    %113 = tpu.iota {dimensions = array<i32: 0>} : vector<16x1xi32>
    %114 = tpu.concatenate %113, %113 in 0 : vector<16x1xi32>, vector<16x1xi32> -> vector<32x1xi32>
    %cst_37 = arith.constant 0.000000e+00 : f32
    %115 = vector.broadcast %cst_37 : f32 to vector<1x246xf32>
    %116 = vector.extract_strided_slice %112 {offsets = [0, 0], sizes = [31, 246], strides = [1, 1]} : vector<32x246xf32> to vector<31x246xf32>
    %117 = tpu.concatenate %115, %116 in 0 : vector<1x246xf32>, vector<31x246xf32> -> vector<32x246xf32>
    %c-1_i32_38 = arith.constant -1 : i32
    %118 = vector.broadcast %c-1_i32_38 : i32 to vector<32x1xi32>
    %119 = arith.addi %114, %118 : vector<32x1xi32>
    %c0_i32_39 = arith.constant 0 : i32
    %120 = vector.broadcast %c0_i32_39 : i32 to vector<32x1xi32>
    %121 = arith.cmpi sge, %119, %120 : vector<32x1xi32>
    %c-1_i32_40 = arith.constant -1 : i32
    %122 = vector.broadcast %c-1_i32_40 : i32 to vector<32x1xi32>
    %123 = arith.addi %114, %122 : vector<32x1xi32>
    %c16_i32 = arith.constant 16 : i32
    %124 = vector.broadcast %c16_i32 : i32 to vector<32x1xi32>
    %125 = arith.cmpi slt, %123, %124 : vector<32x1xi32>
    %126 = arith.andi %121, %125 : vector<32x1xi1>
    %cst_41 = arith.constant 0.000000e+00 : f32
    %127 = vector.shape_cast %126 : vector<32x1xi1> to vector<32x1xi1>
    %128 = vector.broadcast %127 : vector<32x1xi1> to vector<32x246xi1>
    %129 = vector.broadcast %cst_41 : f32 to vector<32x246xf32>
    %130 = arith.select %128, %117, %129 : vector<32x246xi1>, vector<32x246xf32>
    %131 = vector.extract_strided_slice %112 {offsets = [1, 0], sizes = [31, 246], strides = [1, 1]} : vector<32x246xf32> to vector<31x246xf32>
    %cst_42 = arith.constant 0.000000e+00 : f32
    %132 = vector.broadcast %cst_42 : f32 to vector<1x246xf32>
    %133 = tpu.concatenate %131, %132 in 0 : vector<31x246xf32>, vector<1x246xf32> -> vector<32x246xf32>
    %c1_i32_43 = arith.constant 1 : i32
    %134 = vector.broadcast %c1_i32_43 : i32 to vector<32x1xi32>
    %135 = arith.addi %114, %134 : vector<32x1xi32>
    %c0_i32_44 = arith.constant 0 : i32
    %136 = vector.broadcast %c0_i32_44 : i32 to vector<32x1xi32>
    %137 = arith.cmpi sge, %135, %136 : vector<32x1xi32>
    %c1_i32_45 = arith.constant 1 : i32
    %138 = vector.broadcast %c1_i32_45 : i32 to vector<32x1xi32>
    %139 = arith.addi %114, %138 : vector<32x1xi32>
    %c16_i32_46 = arith.constant 16 : i32
    %140 = vector.broadcast %c16_i32_46 : i32 to vector<32x1xi32>
    %141 = arith.cmpi slt, %139, %140 : vector<32x1xi32>
    %142 = arith.andi %137, %141 : vector<32x1xi1>
    %cst_47 = arith.constant 0.000000e+00 : f32
    %143 = vector.shape_cast %142 : vector<32x1xi1> to vector<32x1xi1>
    %144 = vector.broadcast %143 : vector<32x1xi1> to vector<32x246xi1>
    %145 = vector.broadcast %cst_47 : f32 to vector<32x246xf32>
    %146 = arith.select %144, %133, %145 : vector<32x246xi1>, vector<32x246xf32>
    %147 = tpu.concatenate %130, %112, %146 in 1 : vector<32x246xf32>, vector<32x246xf32>, vector<32x246xf32> -> vector<32x738xf32>
    %148 = arith.truncf %147 : vector<32x738xf32> to vector<32x738xbf16>
    %c0_48 = arith.constant 0 : index
    %c0_49 = arith.constant 0 : index
    %149 = vector.load %arg5[%c0_48, %c0_49] : memref<738x60xbf16, #tpu.memory_space<vmem>>, vector<738x60xbf16>
    %cst_50 = arith.constant dense<0.000000e+00> : vector<32x60xf32>
    %150 = tpu.matmul %148, %149, %cst_50 {dimension_numbers = #tpu.dot_dimension_numbers<[1], [0], [0], [1], [0, 0, 1, 1], [], []>} : vector<32x738xbf16>, vector<738x60xbf16>, vector<32x60xf32> -> vector<32x60xf32>
    %c0_51 = arith.constant 0 : index
    %c0_52 = arith.constant 0 : index
    %151 = vector.load %arg6[%c0_51, %c0_52] : memref<1x60xf32, #tpu.memory_space<vmem>>, vector<1x60xf32>
    %152 = vector.broadcast %151 : vector<1x60xf32> to vector<32x60xf32>
    %153 = arith.mulf %150, %152 : vector<32x60xf32>
    %c0_53 = arith.constant 0 : index
    %c0_54 = arith.constant 0 : index
    %154 = vector.load %arg7[%c0_53, %c0_54] : memref<1x60xf32, #tpu.memory_space<vmem>>, vector<1x60xf32>
    %155 = vector.broadcast %154 : vector<1x60xf32> to vector<32x60xf32>
    %156 = arith.addf %153, %155 : vector<32x60xf32>
    %cst_55 = arith.constant 0.000000e+00 : f32
    %157 = vector.broadcast %cst_55 : f32 to vector<32x60xf32>
    %158 = arith.maximumf %156, %157 : vector<32x60xf32>
    %159 = vector.shape_cast %158 : vector<32x60xf32> to vector<16x2x60xf32>
    %cst_56 = arith.constant dense<0xFF800000> : vector<16x60xf32>
    %160 = vector.multi_reduction <maximumf>, %159, %cst_56 [1] : vector<16x2x60xf32> to vector<16x60xf32>
    %161 = tpu.iota {dimensions = array<i32: 0>} : vector<8x1xi32>
    %162 = tpu.concatenate %161, %161 in 0 : vector<8x1xi32>, vector<8x1xi32> -> vector<16x1xi32>
    %cst_57 = arith.constant 0.000000e+00 : f32
    %163 = vector.broadcast %cst_57 : f32 to vector<2x60xf32>
    %164 = vector.extract_strided_slice %160 {offsets = [0, 0], sizes = [14, 60], strides = [1, 1]} : vector<16x60xf32> to vector<14x60xf32>
    %165 = tpu.concatenate %163, %164 in 0 : vector<2x60xf32>, vector<14x60xf32> -> vector<16x60xf32>
    %c-2_i32_58 = arith.constant -2 : i32
    %166 = vector.broadcast %c-2_i32_58 : i32 to vector<16x1xi32>
    %167 = arith.addi %162, %166 : vector<16x1xi32>
    %c0_i32_59 = arith.constant 0 : i32
    %168 = vector.broadcast %c0_i32_59 : i32 to vector<16x1xi32>
    %169 = arith.cmpi sge, %167, %168 : vector<16x1xi32>
    %c-2_i32_60 = arith.constant -2 : i32
    %170 = vector.broadcast %c-2_i32_60 : i32 to vector<16x1xi32>
    %171 = arith.addi %162, %170 : vector<16x1xi32>
    %c8_i32 = arith.constant 8 : i32
    %172 = vector.broadcast %c8_i32 : i32 to vector<16x1xi32>
    %173 = arith.cmpi slt, %171, %172 : vector<16x1xi32>
    %174 = arith.andi %169, %173 : vector<16x1xi1>
    %cst_61 = arith.constant 0.000000e+00 : f32
    %175 = vector.shape_cast %174 : vector<16x1xi1> to vector<16x1xi1>
    %176 = vector.broadcast %175 : vector<16x1xi1> to vector<16x60xi1>
    %177 = vector.broadcast %cst_61 : f32 to vector<16x60xf32>
    %178 = arith.select %176, %165, %177 : vector<16x60xi1>, vector<16x60xf32>
    %cst_62 = arith.constant 0.000000e+00 : f32
    %179 = vector.broadcast %cst_62 : f32 to vector<1x60xf32>
    %180 = vector.extract_strided_slice %160 {offsets = [0, 0], sizes = [15, 60], strides = [1, 1]} : vector<16x60xf32> to vector<15x60xf32>
    %181 = tpu.concatenate %179, %180 in 0 : vector<1x60xf32>, vector<15x60xf32> -> vector<16x60xf32>
    %c-1_i32_63 = arith.constant -1 : i32
    %182 = vector.broadcast %c-1_i32_63 : i32 to vector<16x1xi32>
    %183 = arith.addi %162, %182 : vector<16x1xi32>
    %c0_i32_64 = arith.constant 0 : i32
    %184 = vector.broadcast %c0_i32_64 : i32 to vector<16x1xi32>
    %185 = arith.cmpi sge, %183, %184 : vector<16x1xi32>
    %c-1_i32_65 = arith.constant -1 : i32
    %186 = vector.broadcast %c-1_i32_65 : i32 to vector<16x1xi32>
    %187 = arith.addi %162, %186 : vector<16x1xi32>
    %c8_i32_66 = arith.constant 8 : i32
    %188 = vector.broadcast %c8_i32_66 : i32 to vector<16x1xi32>
    %189 = arith.cmpi slt, %187, %188 : vector<16x1xi32>
    %190 = arith.andi %185, %189 : vector<16x1xi1>
    %cst_67 = arith.constant 0.000000e+00 : f32
    %191 = vector.shape_cast %190 : vector<16x1xi1> to vector<16x1xi1>
    %192 = vector.broadcast %191 : vector<16x1xi1> to vector<16x60xi1>
    %193 = vector.broadcast %cst_67 : f32 to vector<16x60xf32>
    %194 = arith.select %192, %181, %193 : vector<16x60xi1>, vector<16x60xf32>
    %195 = vector.extract_strided_slice %160 {offsets = [1, 0], sizes = [15, 60], strides = [1, 1]} : vector<16x60xf32> to vector<15x60xf32>
    %cst_68 = arith.constant 0.000000e+00 : f32
    %196 = vector.broadcast %cst_68 : f32 to vector<1x60xf32>
    %197 = tpu.concatenate %195, %196 in 0 : vector<15x60xf32>, vector<1x60xf32> -> vector<16x60xf32>
    %c1_i32_69 = arith.constant 1 : i32
    %198 = vector.broadcast %c1_i32_69 : i32 to vector<16x1xi32>
    %199 = arith.addi %162, %198 : vector<16x1xi32>
    %c0_i32_70 = arith.constant 0 : i32
    %200 = vector.broadcast %c0_i32_70 : i32 to vector<16x1xi32>
    %201 = arith.cmpi sge, %199, %200 : vector<16x1xi32>
    %c1_i32_71 = arith.constant 1 : i32
    %202 = vector.broadcast %c1_i32_71 : i32 to vector<16x1xi32>
    %203 = arith.addi %162, %202 : vector<16x1xi32>
    %c8_i32_72 = arith.constant 8 : i32
    %204 = vector.broadcast %c8_i32_72 : i32 to vector<16x1xi32>
    %205 = arith.cmpi slt, %203, %204 : vector<16x1xi32>
    %206 = arith.andi %201, %205 : vector<16x1xi1>
    %cst_73 = arith.constant 0.000000e+00 : f32
    %207 = vector.shape_cast %206 : vector<16x1xi1> to vector<16x1xi1>
    %208 = vector.broadcast %207 : vector<16x1xi1> to vector<16x60xi1>
    %209 = vector.broadcast %cst_73 : f32 to vector<16x60xf32>
    %210 = arith.select %208, %197, %209 : vector<16x60xi1>, vector<16x60xf32>
    %211 = vector.extract_strided_slice %160 {offsets = [2, 0], sizes = [14, 60], strides = [1, 1]} : vector<16x60xf32> to vector<14x60xf32>
    %cst_74 = arith.constant 0.000000e+00 : f32
    %212 = vector.broadcast %cst_74 : f32 to vector<2x60xf32>
    %213 = tpu.concatenate %211, %212 in 0 : vector<14x60xf32>, vector<2x60xf32> -> vector<16x60xf32>
    %c2_i32_75 = arith.constant 2 : i32
    %214 = vector.broadcast %c2_i32_75 : i32 to vector<16x1xi32>
    %215 = arith.addi %162, %214 : vector<16x1xi32>
    %c0_i32_76 = arith.constant 0 : i32
    %216 = vector.broadcast %c0_i32_76 : i32 to vector<16x1xi32>
    %217 = arith.cmpi sge, %215, %216 : vector<16x1xi32>
    %c2_i32_77 = arith.constant 2 : i32
    %218 = vector.broadcast %c2_i32_77 : i32 to vector<16x1xi32>
    %219 = arith.addi %162, %218 : vector<16x1xi32>
    %c8_i32_78 = arith.constant 8 : i32
    %220 = vector.broadcast %c8_i32_78 : i32 to vector<16x1xi32>
    %221 = arith.cmpi slt, %219, %220 : vector<16x1xi32>
    %222 = arith.andi %217, %221 : vector<16x1xi1>
    %cst_79 = arith.constant 0.000000e+00 : f32
    %223 = vector.shape_cast %222 : vector<16x1xi1> to vector<16x1xi1>
    %224 = vector.broadcast %223 : vector<16x1xi1> to vector<16x60xi1>
    %225 = vector.broadcast %cst_79 : f32 to vector<16x60xf32>
    %226 = arith.select %224, %213, %225 : vector<16x60xi1>, vector<16x60xf32>
    %227 = tpu.concatenate %178, %194, %160, %210, %226 in 1 : vector<16x60xf32>, vector<16x60xf32>, vector<16x60xf32>, vector<16x60xf32>, vector<16x60xf32> -> vector<16x300xf32>
    %228 = arith.truncf %227 : vector<16x300xf32> to vector<16x300xbf16>
    %c0_80 = arith.constant 0 : index
    %c0_81 = arith.constant 0 : index
    %229 = vector.load %arg8[%c0_80, %c0_81] : memref<300x60xbf16, #tpu.memory_space<vmem>>, vector<300x60xbf16>
    %cst_82 = arith.constant dense<0.000000e+00> : vector<16x60xf32>
    %230 = tpu.matmul %228, %229, %cst_82 {dimension_numbers = #tpu.dot_dimension_numbers<[1], [0], [0], [1], [0, 0, 1, 1], [], []>} : vector<16x300xbf16>, vector<300x60xbf16>, vector<16x60xf32> -> vector<16x60xf32>
    %c0_83 = arith.constant 0 : index
    %c0_84 = arith.constant 0 : index
    %231 = vector.load %arg9[%c0_83, %c0_84] : memref<1x60xf32, #tpu.memory_space<vmem>>, vector<1x60xf32>
    %232 = vector.broadcast %231 : vector<1x60xf32> to vector<16x60xf32>
    %233 = arith.mulf %230, %232 : vector<16x60xf32>
    %c0_85 = arith.constant 0 : index
    %c0_86 = arith.constant 0 : index
    %234 = vector.load %arg10[%c0_85, %c0_86] : memref<1x60xf32, #tpu.memory_space<vmem>>, vector<1x60xf32>
    %235 = vector.broadcast %234 : vector<1x60xf32> to vector<16x60xf32>
    %236 = arith.addf %233, %235 : vector<16x60xf32>
    %cst_87 = arith.constant 0.000000e+00 : f32
    %237 = vector.broadcast %cst_87 : f32 to vector<16x60xf32>
    %238 = arith.maximumf %236, %237 : vector<16x60xf32>
    %239 = vector.shape_cast %238 : vector<16x60xf32> to vector<8x2x60xf32>
    %cst_88 = arith.constant dense<0xFF800000> : vector<8x60xf32>
    %240 = vector.multi_reduction <maximumf>, %239, %cst_88 [1] : vector<8x2x60xf32> to vector<8x60xf32>
    %241 = tpu.iota {dimensions = array<i32: 0>} : vector<4x1xi32>
    %242 = tpu.concatenate %241, %241 in 0 : vector<4x1xi32>, vector<4x1xi32> -> vector<8x1xi32>
    %cst_89 = arith.constant 0.000000e+00 : f32
    %243 = vector.broadcast %cst_89 : f32 to vector<1x60xf32>
    %244 = vector.extract_strided_slice %240 {offsets = [0, 0], sizes = [7, 60], strides = [1, 1]} : vector<8x60xf32> to vector<7x60xf32>
    %245 = tpu.concatenate %243, %244 in 0 : vector<1x60xf32>, vector<7x60xf32> -> vector<8x60xf32>
    %c-1_i32_90 = arith.constant -1 : i32
    %246 = vector.broadcast %c-1_i32_90 : i32 to vector<8x1xi32>
    %247 = arith.addi %242, %246 : vector<8x1xi32>
    %c0_i32_91 = arith.constant 0 : i32
    %248 = vector.broadcast %c0_i32_91 : i32 to vector<8x1xi32>
    %249 = arith.cmpi sge, %247, %248 : vector<8x1xi32>
    %c-1_i32_92 = arith.constant -1 : i32
    %250 = vector.broadcast %c-1_i32_92 : i32 to vector<8x1xi32>
    %251 = arith.addi %242, %250 : vector<8x1xi32>
    %c4_i32 = arith.constant 4 : i32
    %252 = vector.broadcast %c4_i32 : i32 to vector<8x1xi32>
    %253 = arith.cmpi slt, %251, %252 : vector<8x1xi32>
    %254 = arith.andi %249, %253 : vector<8x1xi1>
    %cst_93 = arith.constant 0.000000e+00 : f32
    %255 = vector.shape_cast %254 : vector<8x1xi1> to vector<8x1xi1>
    %256 = vector.broadcast %255 : vector<8x1xi1> to vector<8x60xi1>
    %257 = vector.broadcast %cst_93 : f32 to vector<8x60xf32>
    %258 = arith.select %256, %245, %257 : vector<8x60xi1>, vector<8x60xf32>
    %259 = vector.extract_strided_slice %240 {offsets = [1, 0], sizes = [7, 60], strides = [1, 1]} : vector<8x60xf32> to vector<7x60xf32>
    %cst_94 = arith.constant 0.000000e+00 : f32
    %260 = vector.broadcast %cst_94 : f32 to vector<1x60xf32>
    %261 = tpu.concatenate %259, %260 in 0 : vector<7x60xf32>, vector<1x60xf32> -> vector<8x60xf32>
    %c1_i32_95 = arith.constant 1 : i32
    %262 = vector.broadcast %c1_i32_95 : i32 to vector<8x1xi32>
    %263 = arith.addi %242, %262 : vector<8x1xi32>
    %c0_i32_96 = arith.constant 0 : i32
    %264 = vector.broadcast %c0_i32_96 : i32 to vector<8x1xi32>
    %265 = arith.cmpi sge, %263, %264 : vector<8x1xi32>
    %c1_i32_97 = arith.constant 1 : i32
    %266 = vector.broadcast %c1_i32_97 : i32 to vector<8x1xi32>
    %267 = arith.addi %242, %266 : vector<8x1xi32>
    %c4_i32_98 = arith.constant 4 : i32
    %268 = vector.broadcast %c4_i32_98 : i32 to vector<8x1xi32>
    %269 = arith.cmpi slt, %267, %268 : vector<8x1xi32>
    %270 = arith.andi %265, %269 : vector<8x1xi1>
    %cst_99 = arith.constant 0.000000e+00 : f32
    %271 = vector.shape_cast %270 : vector<8x1xi1> to vector<8x1xi1>
    %272 = vector.broadcast %271 : vector<8x1xi1> to vector<8x60xi1>
    %273 = vector.broadcast %cst_99 : f32 to vector<8x60xf32>
    %274 = arith.select %272, %261, %273 : vector<8x60xi1>, vector<8x60xf32>
    %275 = tpu.concatenate %258, %240, %274 in 1 : vector<8x60xf32>, vector<8x60xf32>, vector<8x60xf32> -> vector<8x180xf32>
    %276 = arith.truncf %275 : vector<8x180xf32> to vector<8x180xbf16>
    %c0_100 = arith.constant 0 : index
    %c0_101 = arith.constant 0 : index
    %277 = vector.load %arg11[%c0_100, %c0_101] : memref<180x120xbf16, #tpu.memory_space<vmem>>, vector<180x120xbf16>
    %cst_102 = arith.constant dense<0.000000e+00> : vector<8x120xf32>
    %278 = tpu.matmul %276, %277, %cst_102 {dimension_numbers = #tpu.dot_dimension_numbers<[1], [0], [0], [1], [0, 0, 1, 1], [], []>} : vector<8x180xbf16>, vector<180x120xbf16>, vector<8x120xf32> -> vector<8x120xf32>
    %c0_103 = arith.constant 0 : index
    %c0_104 = arith.constant 0 : index
    %279 = vector.load %arg12[%c0_103, %c0_104] : memref<1x120xf32, #tpu.memory_space<vmem>>, vector<1x120xf32>
    %280 = vector.broadcast %279 : vector<1x120xf32> to vector<8x120xf32>
    %281 = arith.mulf %278, %280 : vector<8x120xf32>
    %c0_105 = arith.constant 0 : index
    %c0_106 = arith.constant 0 : index
    %282 = vector.load %arg13[%c0_105, %c0_106] : memref<1x120xf32, #tpu.memory_space<vmem>>, vector<1x120xf32>
    %283 = vector.broadcast %282 : vector<1x120xf32> to vector<8x120xf32>
    %284 = arith.addf %281, %283 : vector<8x120xf32>
    %cst_107 = arith.constant 0.000000e+00 : f32
    %285 = vector.broadcast %cst_107 : f32 to vector<8x120xf32>
    %286 = arith.maximumf %284, %285 : vector<8x120xf32>
    %287 = vector.shape_cast %286 : vector<8x120xf32> to vector<4x2x120xf32>
    %cst_108 = arith.constant dense<0xFF800000> : vector<4x120xf32>
    %288 = vector.multi_reduction <maximumf>, %287, %cst_108 [1] : vector<4x2x120xf32> to vector<4x120xf32>
    %289 = vector.extract_strided_slice %288 {offsets = [0, 0], sizes = [1, 120], strides = [1, 1]} : vector<4x120xf32> to vector<1x120xf32>
    %290 = vector.extract_strided_slice %288 {offsets = [1, 0], sizes = [1, 120], strides = [1, 1]} : vector<4x120xf32> to vector<1x120xf32>
    %291 = tpu.concatenate %289, %290 in 1 : vector<1x120xf32>, vector<1x120xf32> -> vector<1x240xf32>
    %292 = vector.extract_strided_slice %288 {offsets = [2, 0], sizes = [1, 120], strides = [1, 1]} : vector<4x120xf32> to vector<1x120xf32>
    %293 = vector.extract_strided_slice %288 {offsets = [3, 0], sizes = [1, 120], strides = [1, 1]} : vector<4x120xf32> to vector<1x120xf32>
    %294 = tpu.concatenate %292, %293 in 1 : vector<1x120xf32>, vector<1x120xf32> -> vector<1x240xf32>
    %295 = tpu.concatenate %291, %294 in 0 : vector<1x240xf32>, vector<1x240xf32> -> vector<2x240xf32>
    %296 = arith.truncf %295 : vector<2x240xf32> to vector<2x240xbf16>
    %c0_109 = arith.constant 0 : index
    %c0_110 = arith.constant 0 : index
    %297 = vector.load %arg14[%c0_109, %c0_110] : memref<240x256xbf16, #tpu.memory_space<vmem>>, vector<240x256xbf16>
    %cst_111 = arith.constant dense<0.000000e+00> : vector<2x256xf32>
    %298 = tpu.matmul %296, %297, %cst_111 {dimension_numbers = #tpu.dot_dimension_numbers<[1], [0], [0], [1], [0, 0, 1, 1], [], []>} : vector<2x240xbf16>, vector<240x256xbf16>, vector<2x256xf32> -> vector<2x256xf32>
    %c0_112 = arith.constant 0 : index
    %c0_113 = arith.constant 0 : index
    %299 = vector.load %arg15[%c0_112, %c0_113] : memref<1x256xf32, #tpu.memory_space<vmem>>, vector<1x256xf32>
    %300 = vector.broadcast %299 : vector<1x256xf32> to vector<2x256xf32>
    %301 = arith.mulf %298, %300 : vector<2x256xf32>
    %c0_114 = arith.constant 0 : index
    %c0_115 = arith.constant 0 : index
    %302 = vector.load %arg16[%c0_114, %c0_115] : memref<1x256xf32, #tpu.memory_space<vmem>>, vector<1x256xf32>
    %303 = vector.broadcast %302 : vector<1x256xf32> to vector<2x256xf32>
    %304 = arith.addf %301, %303 : vector<2x256xf32>
    %cst_116 = arith.constant 0.000000e+00 : f32
    %305 = vector.broadcast %cst_116 : f32 to vector<2x256xf32>
    %306 = arith.maximumf %304, %305 : vector<2x256xf32>
    %307 = arith.truncf %306 : vector<2x256xf32> to vector<2x256xbf16>
    %c0_117 = arith.constant 0 : index
    %c0_118 = arith.constant 0 : index
    %308 = vector.load %arg17[%c0_117, %c0_118] : memref<256x256xbf16, #tpu.memory_space<vmem>>, vector<256x256xbf16>
    %cst_119 = arith.constant dense<0.000000e+00> : vector<2x256xf32>
    %309 = tpu.matmul %307, %308, %cst_119 {dimension_numbers = #tpu.dot_dimension_numbers<[1], [0], [0], [1], [0, 0, 1, 1], [], []>} : vector<2x256xbf16>, vector<256x256xbf16>, vector<2x256xf32> -> vector<2x256xf32>
    %c0_120 = arith.constant 0 : index
    %c0_121 = arith.constant 0 : index
    %310 = vector.load %arg18[%c0_120, %c0_121] : memref<1x256xf32, #tpu.memory_space<vmem>>, vector<1x256xf32>
    %311 = vector.broadcast %310 : vector<1x256xf32> to vector<2x256xf32>
    %312 = arith.mulf %309, %311 : vector<2x256xf32>
    %c0_122 = arith.constant 0 : index
    %c0_123 = arith.constant 0 : index
    %313 = vector.load %arg19[%c0_122, %c0_123] : memref<1x256xf32, #tpu.memory_space<vmem>>, vector<1x256xf32>
    %314 = vector.broadcast %313 : vector<1x256xf32> to vector<2x256xf32>
    %315 = arith.addf %312, %314 : vector<2x256xf32>
    %cst_124 = arith.constant 0.000000e+00 : f32
    %316 = vector.broadcast %cst_124 : f32 to vector<2x256xf32>
    %317 = arith.maximumf %315, %316 : vector<2x256xf32>
    %318 = arith.truncf %317 : vector<2x256xf32> to vector<2x256xbf16>
    %c0_125 = arith.constant 0 : index
    %c0_126 = arith.constant 0 : index
    %319 = vector.load %arg20[%c0_125, %c0_126] : memref<256x2xbf16, #tpu.memory_space<vmem>>, vector<256x2xbf16>
    %cst_127 = arith.constant dense<0.000000e+00> : vector<2x2xf32>
    %320 = tpu.matmul %318, %319, %cst_127 {dimension_numbers = #tpu.dot_dimension_numbers<[1], [0], [0], [1], [0, 0, 1, 1], [], []>} : vector<2x256xbf16>, vector<256x2xbf16>, vector<2x2xf32> -> vector<2x2xf32>
    %c0_128 = arith.constant 0 : index
    %c0_129 = arith.constant 0 : index
    %321 = vector.load %arg21[%c0_128, %c0_129] : memref<1x2xf32, #tpu.memory_space<vmem>>, vector<1x2xf32>
    %322 = vector.broadcast %321 : vector<1x2xf32> to vector<2x2xf32>
    %323 = arith.addf %320, %322 : vector<2x2xf32>
    %c0_130 = arith.constant 0 : index
    %c0_131 = arith.constant 0 : index
    %324 = vector.load %arg22[%c0_130, %c0_131] : memref<2x2xf32, #tpu.memory_space<vmem>>, vector<2x2xf32>
    tpu.vector_store %arg22[%c0_130, %c0_131], %323 {strides = array<i32>} : memref<2x2xf32, #tpu.memory_space<vmem>>, vector<2x2xf32>,
    return
  }
  func.func @transform_0(%arg0: i32) -> (i32, i32) {
    %c0_i32 = arith.constant 0 : i32
    %c0_i32_0 = arith.constant 0 : i32
    return %arg0, %c0_i32 : i32, i32
  }
  func.func @transform_1(%arg0: i32) -> (i32, i32) {
    %c0_i32 = arith.constant 0 : i32
    %c0_i32_0 = arith.constant 0 : i32
    %c0_i32_1 = arith.constant 0 : i32
    return %c0_i32, %c0_i32_0 : i32, i32
  }
  func.func @transform_2(%arg0: i32) -> (i32, i32) {
    %c0_i32 = arith.constant 0 : i32
    %c0_i32_0 = arith.constant 0 : i32
    %c0_i32_1 = arith.constant 0 : i32
    return %c0_i32, %c0_i32_0 : i32, i32
  }
  func.func @transform_3(%arg0: i32) -> (i32, i32) {
    %c0_i32 = arith.constant 0 : i32
    %c0_i32_0 = arith.constant 0 : i32
    %c0_i32_1 = arith.constant 0 : i32
    return %c0_i32, %c0_i32_0 : i32, i32
  }
  func.func @transform_4(%arg0: i32) -> (i32, i32) {
    %c0_i32 = arith.constant 0 : i32
    %c0_i32_0 = arith.constant 0 : i32
    %c0_i32_1 = arith.constant 0 : i32
    return %c0_i32, %c0_i32_0 : i32, i32
  }
  func.func @transform_5(%arg0: i32) -> (i32, i32) {
    %c0_i32 = arith.constant 0 : i32
    %c0_i32_0 = arith.constant 0 : i32
    %c0_i32_1 = arith.constant 0 : i32
    return %c0_i32, %c0_i32_0 : i32, i32
  }
  func.func @transform_6(%arg0: i32) -> (i32, i32) {
    %c0_i32 = arith.constant 0 : i32
    %c0_i32_0 = arith.constant 0 : i32
    %c0_i32_1 = arith.constant 0 : i32
    return %c0_i32, %c0_i32_0 : i32, i32
  }
  func.func @transform_7(%arg0: i32) -> (i32, i32) {
    %c0_i32 = arith.constant 0 : i32
    %c0_i32_0 = arith.constant 0 : i32
    %c0_i32_1 = arith.constant 0 : i32
    return %c0_i32, %c0_i32_0 : i32, i32
  }
  func.func @transform_8(%arg0: i32) -> (i32, i32) {
    %c0_i32 = arith.constant 0 : i32
    %c0_i32_0 = arith.constant 0 : i32
    %c0_i32_1 = arith.constant 0 : i32
    return %c0_i32, %c0_i32_0 : i32, i32
  }
  func.func @transform_9(%arg0: i32) -> (i32, i32) {
    %c0_i32 = arith.constant 0 : i32
    %c0_i32_0 = arith.constant 0 : i32
    %c0_i32_1 = arith.constant 0 : i32
    return %c0_i32, %c0_i32_0 : i32, i32
  }
  func.func @transform_10(%arg0: i32) -> (i32, i32) {
    %c0_i32 = arith.constant 0 : i32
    %c0_i32_0 = arith.constant 0 : i32
    %c0_i32_1 = arith.constant 0 : i32
    return %c0_i32, %c0_i32_0 : i32, i32
  }
  func.func @transform_11(%arg0: i32) -> (i32, i32) {
    %c0_i32 = arith.constant 0 : i32
    %c0_i32_0 = arith.constant 0 : i32
    %c0_i32_1 = arith.constant 0 : i32
    return %c0_i32, %c0_i32_0 : i32, i32
  }
  func.func @transform_12(%arg0: i32) -> (i32, i32) {
    %c0_i32 = arith.constant 0 : i32
    %c0_i32_0 = arith.constant 0 : i32
    %c0_i32_1 = arith.constant 0 : i32
    return %c0_i32, %c0_i32_0 : i32, i32
  }
  func.func @transform_13(%arg0: i32) -> (i32, i32) {
    %c0_i32 = arith.constant 0 : i32
    %c0_i32_0 = arith.constant 0 : i32
    %c0_i32_1 = arith.constant 0 : i32
    return %c0_i32, %c0_i32_0 : i32, i32
  }
  func.func @transform_14(%arg0: i32) -> (i32, i32) {
    %c0_i32 = arith.constant 0 : i32
    %c0_i32_0 = arith.constant 0 : i32
    %c0_i32_1 = arith.constant 0 : i32
    return %c0_i32, %c0_i32_0 : i32, i32
  }
  func.func @transform_15(%arg0: i32) -> (i32, i32) {
    %c0_i32 = arith.constant 0 : i32
    %c0_i32_0 = arith.constant 0 : i32
    %c0_i32_1 = arith.constant 0 : i32
    return %c0_i32, %c0_i32_0 : i32, i32
  }
  func.func @transform_16(%arg0: i32) -> (i32, i32) {
    %c0_i32 = arith.constant 0 : i32
    %c0_i32_0 = arith.constant 0 : i32
    %c0_i32_1 = arith.constant 0 : i32
    return %c0_i32, %c0_i32_0 : i32, i32
  }
  func.func @transform_17(%arg0: i32) -> (i32, i32) {
    %c0_i32 = arith.constant 0 : i32
    %c0_i32_0 = arith.constant 0 : i32
    %c0_i32_1 = arith.constant 0 : i32
    return %c0_i32, %c0_i32_0 : i32, i32
  }
  func.func @transform_18(%arg0: i32) -> (i32, i32) {
    %c0_i32 = arith.constant 0 : i32
    %c0_i32_0 = arith.constant 0 : i32
    %c0_i32_1 = arith.constant 0 : i32
    return %c0_i32, %c0_i32_0 : i32, i32
  }
  func.func @transform_19(%arg0: i32) -> (i32, i32) {
    %c0_i32 = arith.constant 0 : i32
    %c0_i32_0 = arith.constant 0 : i32
    %c0_i32_1 = arith.constant 0 : i32
    return %c0_i32, %c0_i32_0 : i32, i32
  }
  func.func @transform_20(%arg0: i32) -> (i32, i32) {
    %c0_i32 = arith.constant 0 : i32
    %c0_i32_0 = arith.constant 0 : i32
    %c0_i32_1 = arith.constant 0 : i32
    return %c0_i32, %c0_i32_0 : i32, i32
  }
  func.func @transform_21(%arg0: i32) -> (i32, i32) {
    %c0_i32 = arith.constant 0 : i32
    %c0_i32_0 = arith.constant 0 : i32
    return %arg0, %c0_i32 : i32, i32
  }
}

</mosaic_0001>

<llo_original>
// kernel: tpu_custom_call.1
$region0: #{tpu_custom_call.1}
  #allocation0 [shape = 'u32[]', space=smem, size = 0x4, offset = 0x4, fixed_abs, tag = 'smem constant byte address 0x4 - core index']
  #allocation1 [shape = 'u32[144,128]{1,0:T(1,128)}', space=vmem, size = 0x12000, scoped, tag = 'internal scratch']
  %s0 = inlined_call_operand.vmem [shape: f32[64,4], index: 0, kind: input, shape index: {}]
  %s1 = inlined_call_operand.vmem [shape: bf16[28,246], index: 1, kind: input, shape index: {}]
  %s2 = inlined_call_operand.vmem [shape: f32[1,246], index: 2, kind: input, shape index: {}]
  %s3 = inlined_call_operand.vmem [shape: f32[1,246], index: 3, kind: input, shape index: {}]
  %s4 = inlined_call_operand.vmem [shape: bf16[738,60], index: 4, kind: input, shape index: {}]
  %s5 = inlined_call_operand.vmem [shape: f32[1,60], index: 5, kind: input, shape index: {}]
  %s6 = inlined_call_operand.vmem [shape: f32[1,60], index: 6, kind: input, shape index: {}]
  %s7 = inlined_call_operand.vmem [shape: bf16[300,60], index: 7, kind: input, shape index: {}]
  %s8 = inlined_call_operand.vmem [shape: f32[1,60], index: 8, kind: input, shape index: {}]
  %s9 = inlined_call_operand.vmem [shape: f32[1,60], index: 9, kind: input, shape index: {}]
  %s10 = inlined_call_operand.vmem [shape: bf16[180,120], index: 10, kind: input, shape index: {}]
  %s11 = inlined_call_operand.vmem [shape: f32[1,120], index: 11, kind: input, shape index: {}]
  %s12 = inlined_call_operand.vmem [shape: f32[1,120], index: 12, kind: input, shape index: {}]
  %s13 = inlined_call_operand.vmem [shape: bf16[240,256], index: 13, kind: input, shape index: {}]
  %s14 = inlined_call_operand.vmem [shape: f32[1,256], index: 14, kind: input, shape index: {}]
  %s15 = inlined_call_operand.vmem [shape: f32[1,256], index: 15, kind: input, shape index: {}]
  %s16 = inlined_call_operand.vmem [shape: bf16[256,256], index: 16, kind: input, shape index: {}]
  %s17 = inlined_call_operand.vmem [shape: f32[1,256], index: 17, kind: input, shape index: {}]
  %s18 = inlined_call_operand.vmem [shape: f32[1,256], index: 18, kind: input, shape index: {}]
  %s19 = inlined_call_operand.vmem [shape: bf16[256,2], index: 19, kind: input, shape index: {}]
  %s20 = inlined_call_operand.vmem [shape: f32[1,2], index: 20, kind: input, shape index: {}]
  %s21 = inlined_call_operand.hbm [shape: f32[2,2], index: 21, kind: output, shape index: {}]
  %s22 = sld [smem:[#allocation0]]
  $region94: #{tpu_custom_call.1} parent=0
    _
  %s24 = ssub.s32 1, %s22
  %s25 = scalar_select 0, %s24, %s22
  $region1: #{tpu_custom_call.1} parent=0
    #allocation2 [shape = 'u8[1024]{0}', space=vmem, size = 0x400, scoped, tag = 'output window, operand 0, single buffered']
    #allocation3 [shape = 's32[1]{0}', space=sflag, size = 0x4, scoped, tag = 'scoped memory for tpu_custom_call.1']
    %26 = vsyncpa [#allocation3], 0
    // Predicated region
    $region2: #{tpu_custom_call.1} parent=1 // pred_check
      _
    $region3: #{tpu_custom_call.1} parent=1 // pred_check_branch
      %28 = sbr.rel (0) target = $region5
    $region4: #{tpu_custom_call.1} parent=1 // pred_region
      _
    $region5: #{tpu_custom_call.1} parent=1 // pred_fallthru
      _
    // Predicated region
    $region6: #{tpu_custom_call.1} parent=1 // pred_check
      _
    $region7: #{tpu_custom_call.1} parent=1 // pred_check_branch
      %30 = sbr.rel (0) target = $region9
    $region8: #{tpu_custom_call.1} parent=1 // pred_region
      _
    $region9: #{tpu_custom_call.1} parent=1 // pred_fallthru
      _
    // Predicated region
    $region10: #{tpu_custom_call.1} parent=1 // pred_check
      _
    $region11: #{tpu_custom_call.1} parent=1 // pred_check_branch
      %32 = sbr.rel (0) target = $region13
    $region12: #{tpu_custom_call.1} parent=1 // pred_region
      _
    $region13: #{tpu_custom_call.1} parent=1 // pred_fallthru
      _
    // Predicated region
    $region14: #{tpu_custom_call.1} parent=1 // pred_check
      _
    $region15: #{tpu_custom_call.1} parent=1 // pred_check_branch
      %34 = sbr.rel (0) target = $region17
    $region16: #{tpu_custom_call.1} parent=1 // pred_region
      _
    $region17: #{tpu_custom_call.1} parent=1 // pred_fallthru
      _
    // Predicated region
    $region18: #{tpu_custom_call.1} parent=1 // pred_check
      _
    $region19: #{tpu_custom_call.1} parent=1 // pred_check_branch
      %36 = sbr.rel (0) target = $region21
    $region20: #{tpu_custom_call.1} parent=1 // pred_region
      _
    $region21: #{tpu_custom_call.1} parent=1 // pred_fallthru
      _
    // Predicated region
    $region22: #{tpu_custom_call.1} parent=1 // pred_check
      _
    $region23: #{tpu_custom_call.1} parent=1 // pred_check_branch
      %38 = sbr.rel (0) target = $region25
    $region24: #{tpu_custom_call.1} parent=1 // pred_region
      _
    $region25: #{tpu_custom_call.1} parent=1 // pred_fallthru
      _
    // Predicated region
    $region26: #{tpu_custom_call.1} parent=1 // pred_check
      _
    $region27: #{tpu_custom_call.1} parent=1 // pred_check_branch
      %40 = sbr.rel (0) target = $region29
    $region28: #{tpu_custom_call.1} parent=1 // pred_region
      _
    $region29: #{tpu_custom_call.1} parent=1 // pred_fallthru
      _
    // Predicated region
    $region30: #{tpu_custom_call.1} parent=1 // pred_check
      _
    $region31: #{tpu_custom_call.1} parent=1 // pred_check_branch
      %42 = sbr.rel (0) target = $region33
    $region32: #{tpu_custom_call.1} parent=1 // pred_region
      _
    $region33: #{tpu_custom_call.1} parent=1 // pred_fallthru
      _
    // Predicated region
    $region34: #{tpu_custom_call.1} parent=1 // pred_check
      _
    $region35: #{tpu_custom_call.1} parent=1 // pred_check_branch
      %44 = sbr.rel (0) target = $region37
    $region36: #{tpu_custom_call.1} parent=1 // pred_region
      _
    $region37: #{tpu_custom_call.1} parent=1 // pred_fallthru
      _
    // Predicated region
    $region38: #{tpu_custom_call.1} parent=1 // pred_check
      _
    $region39: #{tpu_custom_call.1} parent=1 // pred_check_branch
      %46 = sbr.rel (0) target = $region41
    $region40: #{tpu_custom_call.1} parent=1 // pred_region
      _
    $region41: #{tpu_custom_call.1} parent=1 // pred_fallthru
      _
    // Predicated region
    $region42: #{tpu_custom_call.1} parent=1 // pred_check
      _
    $region43: #{tpu_custom_call.1} parent=1 // pred_check_branch
      %48 = sbr.rel (0) target = $region45
    $region44: #{tpu_custom_call.1} parent=1 // pred_region
      _
    $region45: #{tpu_custom_call.1} parent=1 // pred_fallthru
      _
    // Predicated region
    $region46: #{tpu_custom_call.1} parent=1 // pred_check
      _
    $region47: #{tpu_custom_call.1} parent=1 // pred_check_branch
      %50 = sbr.rel (0) target = $region49
    $region48: #{tpu_custom_call.1} parent=1 // pred_region
      _
    $region49: #{tpu_custom_call.1} parent=1 // pred_fallthru
      _
    // Predicated region
    $region50: #{tpu_custom_call.1} parent=1 // pred_check
      _
    $region51: #{tpu_custom_call.1} parent=1 // pred_check_branch
      %52 = sbr.rel (0) target = $region53
    $region52: #{tpu_custom_call.1} parent=1 // pred_region
      _
    $region53: #{tpu_custom_call.1} parent=1 // pred_fallthru
      _
    // Predicated region
    $region54: #{tpu_custom_call.1} parent=1 // pred_check
      _
    $region55: #{tpu_custom_call.1} parent=1 // pred_check_branch
      %54 = sbr.rel (0) target = $region57
    $region56: #{tpu_custom_call.1} parent=1 // pred_region
      _
    $region57: #{tpu_custom_call.1} parent=1 // pred_fallthru
      _
    // Predicated region
    $region58: #{tpu_custom_call.1} parent=1 // pred_check
      _
    $region59: #{tpu_custom_call.1} parent=1 // pred_check_branch
      %56 = sbr.rel (0) target = $region61
    $region60: #{tpu_custom_call.1} parent=1 // pred_region
      _
    $region61: #{tpu_custom_call.1} parent=1 // pred_fallthru
      _
    // Predicated region
    $region62: #{tpu_custom_call.1} parent=1 // pred_check
      _
    $region63: #{tpu_custom_call.1} parent=1 // pred_check_branch
      %58 = sbr.rel (0) target = $region65
    $region64: #{tpu_custom_call.1} parent=1 // pred_region
      _
    $region65: #{tpu_custom_call.1} parent=1 // pred_fallthru
      _
    // Predicated region
    $region66: #{tpu_custom_call.1} parent=1 // pred_check
      _
    $region67: #{tpu_custom_call.1} parent=1 // pred_check_branch
      %60 = sbr.rel (0) target = $region69
    $region68: #{tpu_custom_call.1} parent=1 // pred_region
      _
    $region69: #{tpu_custom_call.1} parent=1 // pred_fallthru
      _
    // Predicated region
    $region70: #{tpu_custom_call.1} parent=1 // pred_check
      _
    $region71: #{tpu_custom_call.1} parent=1 // pred_check_branch
      %62 = sbr.rel (0) target = $region73
    $region72: #{tpu_custom_call.1} parent=1 // pred_region
      _
    $region73: #{tpu_custom_call.1} parent=1 // pred_fallthru
      _
    // Predicated region
    $region74: #{tpu_custom_call.1} parent=1 // pred_check
      _
    $region75: #{tpu_custom_call.1} parent=1 // pred_check_branch
      %64 = sbr.rel (0) target = $region77
    $region76: #{tpu_custom_call.1} parent=1 // pred_region
      _
    $region77: #{tpu_custom_call.1} parent=1 // pred_fallthru
      _
    // Predicated region
    $region78: #{tpu_custom_call.1} parent=1 // pred_check
      _
    $region79: #{tpu_custom_call.1} parent=1 // pred_check_branch
      %66 = sbr.rel (0) target = $region81
    $region80: #{tpu_custom_call.1} parent=1 // pred_region
      _
    $region81: #{tpu_custom_call.1} parent=1 // pred_fallthru
      _
    // Predicated region
    $region82: #{tpu_custom_call.1} parent=1 // pred_check
      _
    $region83: #{tpu_custom_call.1} parent=1 // pred_check_branch
      %68 = sbr.rel (0) target = $region85
    $region84: #{tpu_custom_call.1} parent=1 // pred_region
      _
    $region85: #{tpu_custom_call.1} parent=1 // pred_fallthru
      _
    %v70 = vld [vmem:[%s0] sm:$0xff]
    %v71 = vld [vmem:[%s0 + $0x8] sm:$0xff]
    %v72 = vld [vmem:[%s0 + $0x10] sm:$0xff]
    %v73 = vld [vmem:[%s0 + $0x18] sm:$0xff]
    %v74 = vld [vmem:[%s0 + $0x20] sm:$0xff]
    %v75 = vld [vmem:[%s0 + $0x28] sm:$0xff]
    %v76 = vld [vmem:[%s0 + $0x30] sm:$0xff]
    %v77 = vld [vmem:[%s0 + $0x38] sm:$0xff]
    %v78 = vlaneseq
    %v79 = vshrl.u32 %v78, 7
    %v80 = vadd.s32 %v79, 8
    %v81 = vadd.s32 %v79, 16
    %v82 = vadd.s32 %v79, 24
    %vm91 = vcmask 1042432
    %v92 = vrot.slane %v70, 5
    %v93 = vrot.slane %v71, 5
    %v94 = vsel %vm91, %v92, %v93
    %v95 = vrot.slane %v72, 5
    %v96 = vsel %vm91, %v93, %v95
    %v97 = vrot.slane %v73, 5
    %v98 = vsel %vm91, %v95, %v97
    %v99 = vrot.slane %v74, 5
    %v100 = vsel %vm91, %v97, %v99
    %v101 = vrot.slane %v75, 5
    %v102 = vsel %vm91, %v99, %v101
    %v103 = vrot.slane %v76, 5
    %v104 = vsel %vm91, %v101, %v103
    %v105 = vrot.slane %v77, 5
    %v106 = vsel %vm91, %v103, %v105
    %v115 = vsel %vm91, 0.0, %v92
    %v116 = vadd.s32 %v79, 4294967293
    %v117 = vadd.s32 %v80, 4294967293
    %v118 = vadd.s32 %v81, 4294967293
    %v119 = vadd.s32 %v82, 4294967293
    %vm120 = vcmp.ge.s32.totalorder %v116, 0
    %vm121 = vcmp.ge.s32.totalorder %v117, 0
    %vm122 = vcmp.ge.s32.totalorder %v118, 0
    %vm123 = vcmp.ge.s32.totalorder %v119, 0
    %vm124 = vcmp.lt.s32.totalorder %v116, 32
    %vm125 = vcmp.lt.s32.totalorder %v117, 32
    %vm126 = vcmp.lt.s32.totalorder %v118, 32
    %vm127 = vcmp.lt.s32.totalorder %v119, 32
    %vm128 = vmand %vm120, %vm124
    %vm129 = vmand %vm121, %vm125
    %vm130 = vmand %vm122, %vm126
    %vm131 = vmand %vm123, %vm127
    %v132 = vsel %vm128, 1, 0
    %v133 = vsel %vm129, 1, 0
    %v134 = vsel %vm130, 1, 0
    %v135 = vsel %vm131, 1, 0
    %136 = vset.pattern.permute.xlu0 0
    %137 = vperm.xlu0 %136, %v132
    %v138 = vpop.permute.xlu0 %137
    %139 = vset.pattern.permute.xlu0 0
    %140 = vperm.xlu0 %139, %v133
    %v141 = vpop.permute.xlu0 %140
    %142 = vset.pattern.permute.xlu0 0
    %143 = vperm.xlu0 %142, %v134
    %v144 = vpop.permute.xlu0 %143
    %145 = vset.pattern.permute.xlu0 0
    %146 = vperm.xlu0 %145, %v135
    %v147 = vpop.permute.xlu0 %146
    %vm148 = vcmp.eq.s32.totalorder %v138, 1
    %vm149 = vcmp.eq.s32.totalorder %v141, 1
    %vm150 = vcmp.eq.s32.totalorder %v144, 1
    %vm151 = vcmp.eq.s32.totalorder %v147, 1
    %v152 = vsel %vm148, %v115, 0.0
    %v153 = vsel %vm149, %v94, 0.0
    %v154 = vsel %vm150, %v96, 0.0
    %v155 = vsel %vm151, %v98, 0.0
    %v156 = vsel %vm148, %v100, 0.0
    %v157 = vsel %vm149, %v102, 0.0
    %v158 = vsel %vm150, %v104, 0.0
    %v159 = vsel %vm151, %v106, 0.0
    %vm160 = vcmask 1041408
    %v161 = vrot.slane %v70, 6
    %v162 = vrot.slane %v71, 6
    %v163 = vsel %vm160, %v161, %v162
    %v164 = vrot.slane %v72, 6
    %v165 = vsel %vm160, %v162, %v164
    %v166 = vrot.slane %v73, 6
    %v167 = vsel %vm160, %v164, %v166
    %v168 = vrot.slane %v74, 6
    %v169 = vsel %vm160, %v166, %v168
    %v170 = vrot.slane %v75, 6
    %v171 = vsel %vm160, %v168, %v170
    %v172 = vrot.slane %v76, 6
    %v173 = vsel %vm160, %v170, %v172
    %v174 = vrot.slane %v77, 6
    %v175 = vsel %vm160, %v172, %v174
    %v184 = vsel %vm160, 0.0, %v161
    %v185 = vadd.s32 %v79, 4294967294
    %v186 = vadd.s32 %v80, 4294967294
    %v187 = vadd.s32 %v81, 4294967294
    %v188 = vadd.s32 %v82, 4294967294
    %vm189 = vcmp.ge.s32.totalorder %v185, 0
    %vm190 = vcmp.ge.s32.totalorder %v186, 0
    %vm191 = vcmp.ge.s32.totalorder %v187, 0
    %vm192 = vcmp.ge.s32.totalorder %v188, 0
    %vm193 = vcmp.lt.s32.totalorder %v185, 32
    %vm194 = vcmp.lt.s32.totalorder %v186, 32
    %vm195 = vcmp.lt.s32.totalorder %v187, 32
    %vm196 = vcmp.lt.s32.totalorder %v188, 32
    %vm197 = vmand %vm189, %vm193
    %vm198 = vmand %vm190, %vm194
    %vm199 = vmand %vm191, %vm195
    %vm200 = vmand %vm192, %vm196
    %v201 = vsel %vm197, 1, 0
    %v202 = vsel %vm198, 1, 0
    %v203 = vsel %vm199, 1, 0
    %v204 = vsel %vm200, 1, 0
    %205 = vset.pattern.permute.xlu0 0
    %206 = vperm.xlu0 %205, %v201
    %v207 = vpop.permute.xlu0 %206
    %208 = vset.pattern.permute.xlu0 0
    %209 = vperm.xlu0 %208, %v202
    %v210 = vpop.permute.xlu0 %209
    %211 = vset.pattern.permute.xlu0 0
    %212 = vperm.xlu0 %211, %v203
    %v213 = vpop.permute.xlu0 %212
    %214 = vset.pattern.permute.xlu0 0
    %215 = vperm.xlu0 %214, %v204
    %v216 = vpop.permute.xlu0 %215
    %vm217 = vcmp.eq.s32.totalorder %v207, 1
    %vm218 = vcmp.eq.s32.totalorder %v210, 1
    %vm219 = vcmp.eq.s32.totalorder %v213, 1
    %vm220 = vcmp.eq.s32.totalorder %v216, 1
    %v221 = vsel %vm217, %v184, 0.0
    %v222 = vsel %vm218, %v163, 0.0
    %v223 = vsel %vm219, %v165, 0.0
    %v224 = vsel %vm220, %v167, 0.0
    %v225 = vsel %vm217, %v169, 0.0
    %v226 = vsel %vm218, %v171, 0.0
    %v227 = vsel %vm219, %v173, 0.0
    %v228 = vsel %vm220, %v175, 0.0
    %vm229 = vcmask 1040384
    %v230 = vrot.slane %v70, 7
    %v231 = vrot.slane %v71, 7
    %v232 = vsel %vm229, %v230, %v231
    %v233 = vrot.slane %v72, 7
    %v234 = vsel %vm229, %v231, %v233
    %v235 = vrot.slane %v73, 7
    %v236 = vsel %vm229, %v233, %v235
    %v237 = vrot.slane %v74, 7
    %v238 = vsel %vm229, %v235, %v237
    %v239 = vrot.slane %v75, 7
    %v240 = vsel %vm229, %v237, %v239
    %v241 = vrot.slane %v76, 7
    %v242 = vsel %vm229, %v239, %v241
    %v243 = vrot.slane %v77, 7
    %v244 = vsel %vm229, %v241, %v243
    %v253 = vsel %vm229, 0.0, %v230
    %v254 = vadd.s32 %v79, 4294967295
    %v255 = vadd.s32 %v80, 4294967295
    %v256 = vadd.s32 %v81, 4294967295
    %v257 = vadd.s32 %v82, 4294967295
    %vm258 = vcmp.ge.s32.totalorder %v254, 0
    %vm259 = vcmp.ge.s32.totalorder %v255, 0
    %vm260 = vcmp.ge.s32.totalorder %v256, 0
    %vm261 = vcmp.ge.s32.totalorder %v257, 0
    %vm262 = vcmp.lt.s32.totalorder %v254, 32
    %vm263 = vcmp.lt.s32.totalorder %v255, 32
    %vm264 = vcmp.lt.s32.totalorder %v256, 32
    %vm265 = vcmp.lt.s32.totalorder %v257, 32
    %vm266 = vmand %vm258, %vm262
    %vm267 = vmand %vm259, %vm263
    %vm268 = vmand %vm260, %vm264
    %vm269 = vmand %vm261, %vm265
    %v270 = vsel %vm266, 1, 0
    %v271 = vsel %vm267, 1, 0
    %v272 = vsel %vm268, 1, 0
    %v273 = vsel %vm269, 1, 0
    %274 = vset.pattern.permute.xlu0 0
    %275 = vperm.xlu0 %274, %v270
    %v276 = vpop.permute.xlu0 %275
    %277 = vset.pattern.permute.xlu0 0
    %278 = vperm.xlu0 %277, %v271
    %v279 = vpop.permute.xlu0 %278
    %280 = vset.pattern.permute.xlu0 0
    %281 = vperm.xlu0 %280, %v272
    %v282 = vpop.permute.xlu0 %281
    %283 = vset.pattern.permute.xlu0 0
    %284 = vperm.xlu0 %283, %v273
    %v285 = vpop.permute.xlu0 %284
    %vm286 = vcmp.eq.s32.totalorder %v276, 1
    %vm287 = vcmp.eq.s32.totalorder %v279, 1
    %vm288 = vcmp.eq.s32.totalorder %v282, 1
    %vm289 = vcmp.eq.s32.totalorder %v285, 1
    %v290 = vsel %vm286, %v253, 0.0
    %v291 = vsel %vm287, %v232, 0.0
    %v292 = vsel %vm288, %v234, 0.0
    %v293 = vsel %vm289, %v236, 0.0
    %v294 = vsel %vm286, %v238, 0.0
    %v295 = vsel %vm287, %v240, 0.0
    %v296 = vsel %vm288, %v242, 0.0
    %v297 = vsel %vm289, %v244, 0.0
    %vm298 = vcmask 1046528
    %v299 = vrot.slane %v70, 1
    %v300 = vrot.slane %v71, 1
    %v301 = vsel %vm298, %v299, %v300
    %v302 = vrot.slane %v72, 1
    %v303 = vsel %vm298, %v300, %v302
    %v304 = vrot.slane %v73, 1
    %v305 = vsel %vm298, %v302, %v304
    %v306 = vrot.slane %v74, 1
    %v307 = vsel %vm298, %v304, %v306
    %v308 = vrot.slane %v75, 1
    %v309 = vsel %vm298, %v306, %v308
    %v310 = vrot.slane %v76, 1
    %v311 = vsel %vm298, %v308, %v310
    %v312 = vrot.slane %v77, 1
    %v313 = vsel %vm298, %v310, %v312
    %v322 = vsel %vm298, %v312, 0.0
    %v323 = vadd.s32 %v79, 1
    %v324 = vadd.s32 %v80, 1
    %v325 = vadd.s32 %v81, 1
    %v326 = vadd.s32 %v82, 1
    %vm327 = vcmp.ge.s32.totalorder %v323, 0
    %vm328 = vcmp.ge.s32.totalorder %v324, 0
    %vm329 = vcmp.ge.s32.totalorder %v325, 0
    %vm330 = vcmp.ge.s32.totalorder %v326, 0
    %vm331 = vcmp.lt.s32.totalorder %v323, 32
    %vm332 = vcmp.lt.s32.totalorder %v324, 32
    %vm333 = vcmp.lt.s32.totalorder %v325, 32
    %vm334 = vcmp.lt.s32.totalorder %v326, 32
    %vm335 = vmand %vm327, %vm331
    %vm336 = vmand %vm328, %vm332
    %vm337 = vmand %vm329, %vm333
    %vm338 = vmand %vm330, %vm334
    %v339 = vsel %vm335, 1, 0
    %v340 = vsel %vm336, 1, 0
    %v341 = vsel %vm337, 1, 0
    %v342 = vsel %vm338, 1, 0
    %343 = vset.pattern.permute.xlu0 0
    %344 = vperm.xlu0 %343, %v339
    %v345 = vpop.permute.xlu0 %344
    %346 = vset.pattern.permute.xlu0 0
    %347 = vperm.xlu0 %346, %v340
    %v348 = vpop.permute.xlu0 %347
    %349 = vset.pattern.permute.xlu0 0
    %350 = vperm.xlu0 %349, %v341
    %v351 = vpop.permute.xlu0 %350
    %352 = vset.pattern.permute.xlu0 0
    %353 = vperm.xlu0 %352, %v342
    %v354 = vpop.permute.xlu0 %353
    %vm355 = vcmp.eq.s32.totalorder %v345, 1
    %vm356 = vcmp.eq.s32.totalorder %v348, 1
    %vm357 = vcmp.eq.s32.totalorder %v351, 1
    %vm358 = vcmp.eq.s32.totalorder %v354, 1
    %v359 = vsel %vm355, %v301, 0.0
    %v360 = vsel %vm356, %v303, 0.0
    %v361 = vsel %vm357, %v305, 0.0
    %v362 = vsel %vm358, %v307, 0.0
    %v363 = vsel %vm355, %v309, 0.0
    %v364 = vsel %vm356, %v311, 0.0
    %v365 = vsel %vm357, %v313, 0.0
    %v366 = vsel %vm358, %v322, 0.0
    %vm367 = vcmask 1045504
    %v368 = vrot.slane %v70, 2
    %v369 = vrot.slane %v71, 2
    %v370 = vsel %vm367, %v368, %v369
    %v371 = vrot.slane %v72, 2
    %v372 = vsel %vm367, %v369, %v371
    %v373 = vrot.slane %v73, 2
    %v374 = vsel %vm367, %v371, %v373
    %v375 = vrot.slane %v74, 2
    %v376 = vsel %vm367, %v373, %v375
    %v377 = vrot.slane %v75, 2
    %v378 = vsel %vm367, %v375, %v377
    %v379 = vrot.slane %v76, 2
    %v380 = vsel %vm367, %v377, %v379
    %v381 = vrot.slane %v77, 2
    %v382 = vsel %vm367, %v379, %v381
    %v391 = vsel %vm367, %v381, 0.0
    %v392 = vadd.s32 %v79, 2
    %v393 = vadd.s32 %v80, 2
    %v394 = vadd.s32 %v81, 2
    %v395 = vadd.s32 %v82, 2
    %vm396 = vcmp.ge.s32.totalorder %v392, 0
    %vm397 = vcmp.ge.s32.totalorder %v393, 0
    %vm398 = vcmp.ge.s32.totalorder %v394, 0
    %vm399 = vcmp.ge.s32.totalorder %v395, 0
    %vm400 = vcmp.lt.s32.totalorder %v392, 32
    %vm401 = vcmp.lt.s32.totalorder %v393, 32
    %vm402 = vcmp.lt.s32.totalorder %v394, 32
    %vm403 = vcmp.lt.s32.totalorder %v395, 32
    %vm404 = vmand %vm396, %vm400
    %vm405 = vmand %vm397, %vm401
    %vm406 = vmand %vm398, %vm402
    %vm407 = vmand %vm399, %vm403
    %v408 = vsel %vm404, 1, 0
    %v409 = vsel %vm405, 1, 0
    %v410 = vsel %vm406, 1, 0
    %v411 = vsel %vm407, 1, 0
    %412 = vset.pattern.permute.xlu0 0
    %413 = vperm.xlu0 %412, %v408
    %v414 = vpop.permute.xlu0 %413
    %415 = vset.pattern.permute.xlu0 0
    %416 = vperm.xlu0 %415, %v409
    %v417 = vpop.permute.xlu0 %416
    %418 = vset.pattern.permute.xlu0 0
    %419 = vperm.xlu0 %418, %v410
    %v420 = vpop.permute.xlu0 %419
    %421 = vset.pattern.permute.xlu0 0
    %422 = vperm.xlu0 %421, %v411
    %v423 = vpop.permute.xlu0 %422
    %vm424 = vcmp.eq.s32.totalorder %v414, 1
    %vm425 = vcmp.eq.s32.totalorder %v417, 1
    %vm426 = vcmp.eq.s32.totalorder %v420, 1
    %vm427 = vcmp.eq.s32.totalorder %v423, 1
    %v428 = vsel %vm424, %v370, 0.0
    %v429 = vsel %vm425, %v372, 0.0
    %v430 = vsel %vm426, %v374, 0.0
    %v431 = vsel %vm427, %v376, 0.0
    %v432 = vsel %vm424, %v378, 0.0
    %v433 = vsel %vm425, %v380, 0.0
    %v434 = vsel %vm426, %v382, 0.0
    %v435 = vsel %vm427, %v391, 0.0
    %vm436 = vcmask 1044480
    %v437 = vrot.slane %v70, 3
    %v438 = vrot.slane %v71, 3
    %v439 = vsel %vm436, %v437, %v438
    %v440 = vrot.slane %v72, 3
    %v441 = vsel %vm436, %v438, %v440
    %v442 = vrot.slane %v73, 3
    %v443 = vsel %vm436, %v440, %v442
    %v444 = vrot.slane %v74, 3
    %v445 = vsel %vm436, %v442, %v444
    %v446 = vrot.slane %v75, 3
    %v447 = vsel %vm436, %v444, %v446
    %v448 = vrot.slane %v76, 3
    %v449 = vsel %vm436, %v446, %v448
    %v450 = vrot.slane %v77, 3
    %v451 = vsel %vm436, %v448, %v450
    %v460 = vsel %vm436, %v450, 0.0
    %v461 = vadd.s32 %v79, 3
    %v462 = vadd.s32 %v80, 3
    %v463 = vadd.s32 %v81, 3
    %v464 = vadd.s32 %v82, 3
    %vm465 = vcmp.ge.s32.totalorder %v461, 0
    %vm466 = vcmp.ge.s32.totalorder %v462, 0
    %vm467 = vcmp.ge.s32.totalorder %v463, 0
    %vm468 = vcmp.ge.s32.totalorder %v464, 0
    %vm469 = vcmp.lt.s32.totalorder %v461, 32
    %vm470 = vcmp.lt.s32.totalorder %v462, 32
    %vm471 = vcmp.lt.s32.totalorder %v463, 32
    %vm472 = vcmp.lt.s32.totalorder %v464, 32
    %vm473 = vmand %vm465, %vm469
    %vm474 = vmand %vm466, %vm470
    %vm475 = vmand %vm467, %vm471
    %vm476 = vmand %vm468, %vm472
    %v477 = vsel %vm473, 1, 0
    %v478 = vsel %vm474, 1, 0
    %v479 = vsel %vm475, 1, 0
    %v480 = vsel %vm476, 1, 0
    %481 = vset.pattern.permute.xlu0 0
    %482 = vperm.xlu0 %481, %v477
    %v483 = vpop.permute.xlu0 %482
    %484 = vset.pattern.permute.xlu0 0
    %485 = vperm.xlu0 %484, %v478
    %v486 = vpop.permute.xlu0 %485
    %487 = vset.pattern.permute.xlu0 0
    %488 = vperm.xlu0 %487, %v479
    %v489 = vpop.permute.xlu0 %488
    %490 = vset.pattern.permute.xlu0 0
    %491 = vperm.xlu0 %490, %v480
    %v492 = vpop.permute.xlu0 %491
    %vm493 = vcmp.eq.s32.totalorder %v483, 1
    %vm494 = vcmp.eq.s32.totalorder %v486, 1
    %vm495 = vcmp.eq.s32.totalorder %v489, 1
    %vm496 = vcmp.eq.s32.totalorder %v492, 1
    %v497 = vsel %vm493, %v439, 0.0
    %v498 = vsel %vm494, %v441, 0.0
    %v499 = vsel %vm495, %v443, 0.0
    %v500 = vsel %vm496, %v445, 0.0
    %v501 = vsel %vm493, %v447, 0.0
    %v502 = vsel %vm494, %v449, 0.0
    %v503 = vsel %vm495, %v451, 0.0
    %v504 = vsel %vm496, %v460, 0.0
    %513 = vrot.lane.b32.xlu0 %v221, 4
    %v514 = vpop.permute.xlu0 %513
    %515 = vrot.lane.b32.xlu0 %v222, 4
    %v516 = vpop.permute.xlu0 %515
    %517 = vrot.lane.b32.xlu0 %v223, 4
    %v518 = vpop.permute.xlu0 %517
    %519 = vrot.lane.b32.xlu0 %v224, 4
    %v520 = vpop.permute.xlu0 %519
    %521 = vrot.lane.b32.xlu0 %v225, 4
    %v522 = vpop.permute.xlu0 %521
    %523 = vrot.lane.b32.xlu0 %v226, 4
    %v524 = vpop.permute.xlu0 %523
    %525 = vrot.lane.b32.xlu0 %v227, 4
    %v526 = vpop.permute.xlu0 %525
    %527 = vrot.lane.b32.xlu0 %v228, 4
    %v528 = vpop.permute.xlu0 %527
    %545 = vrot.lane.b32.xlu0 %v290, 8
    %v546 = vpop.permute.xlu0 %545
    %547 = vrot.lane.b32.xlu0 %v291, 8
    %v548 = vpop.permute.xlu0 %547
    %549 = vrot.lane.b32.xlu0 %v292, 8
    %v550 = vpop.permute.xlu0 %549
    %551 = vrot.lane.b32.xlu0 %v293, 8
    %v552 = vpop.permute.xlu0 %551
    %553 = vrot.lane.b32.xlu0 %v294, 8
    %v554 = vpop.permute.xlu0 %553
    %555 = vrot.lane.b32.xlu0 %v295, 8
    %v556 = vpop.permute.xlu0 %555
    %557 = vrot.lane.b32.xlu0 %v296, 8
    %v558 = vpop.permute.xlu0 %557
    %559 = vrot.lane.b32.xlu0 %v297, 8
    %v560 = vpop.permute.xlu0 %559
    %569 = vrot.lane.b32.xlu0 %v70, 12
    %v570 = vpop.permute.xlu0 %569
    %571 = vrot.lane.b32.xlu0 %v71, 12
    %v572 = vpop.permute.xlu0 %571
    %573 = vrot.lane.b32.xlu0 %v72, 12
    %v574 = vpop.permute.xlu0 %573
    %575 = vrot.lane.b32.xlu0 %v73, 12
    %v576 = vpop.permute.xlu0 %575
    %577 = vrot.lane.b32.xlu0 %v74, 12
    %v578 = vpop.permute.xlu0 %577
    %579 = vrot.lane.b32.xlu0 %v75, 12
    %v580 = vpop.permute.xlu0 %579
    %581 = vrot.lane.b32.xlu0 %v76, 12
    %v582 = vpop.permute.xlu0 %581
    %583 = vrot.lane.b32.xlu0 %v77, 12
    %v584 = vpop.permute.xlu0 %583
    %601 = vrot.lane.b32.xlu0 %v359, 16
    %v602 = vpop.permute.xlu0 %601
    %603 = vrot.lane.b32.xlu0 %v360, 16
    %v604 = vpop.permute.xlu0 %603
    %605 = vrot.lane.b32.xlu0 %v361, 16
    %v606 = vpop.permute.xlu0 %605
    %607 = vrot.lane.b32.xlu0 %v362, 16
    %v608 = vpop.permute.xlu0 %607
    %609 = vrot.lane.b32.xlu0 %v363, 16
    %v610 = vpop.permute.xlu0 %609
    %611 = vrot.lane.b32.xlu0 %v364, 16
    %v612 = vpop.permute.xlu0 %611
    %613 = vrot.lane.b32.xlu0 %v365, 16
    %v614 = vpop.permute.xlu0 %613
    %615 = vrot.lane.b32.xlu0 %v366, 16
    %v616 = vpop.permute.xlu0 %615
    %633 = vrot.lane.b32.xlu0 %v428, 20
    %v634 = vpop.permute.xlu0 %633
    %635 = vrot.lane.b32.xlu0 %v429, 20
    %v636 = vpop.permute.xlu0 %635
    %637 = vrot.lane.b32.xlu0 %v430, 20
    %v638 = vpop.permute.xlu0 %637
    %639 = vrot.lane.b32.xlu0 %v431, 20
    %v640 = vpop.permute.xlu0 %639
    %641 = vrot.lane.b32.xlu0 %v432, 20
    %v642 = vpop.permute.xlu0 %641
    %643 = vrot.lane.b32.xlu0 %v433, 20
    %v644 = vpop.permute.xlu0 %643
    %645 = vrot.lane.b32.xlu0 %v434, 20
    %v646 = vpop.permute.xlu0 %645
    %647 = vrot.lane.b32.xlu0 %v435, 20
    %v648 = vpop.permute.xlu0 %647
    %665 = vrot.lane.b32.xlu0 %v497, 24
    %v666 = vpop.permute.xlu0 %665
    %667 = vrot.lane.b32.xlu0 %v498, 24
    %v668 = vpop.permute.xlu0 %667
    %669 = vrot.lane.b32.xlu0 %v499, 24
    %v670 = vpop.permute.xlu0 %669
    %671 = vrot.lane.b32.xlu0 %v500, 24
    %v672 = vpop.permute.xlu0 %671
    %673 = vrot.lane.b32.xlu0 %v501, 24
    %v674 = vpop.permute.xlu0 %673
    %675 = vrot.lane.b32.xlu0 %v502, 24
    %v676 = vpop.permute.xlu0 %675
    %677 = vrot.lane.b32.xlu0 %v503, 24
    %v678 = vpop.permute.xlu0 %677
    %679 = vrot.lane.b32.xlu0 %v504, 24
    %v680 = vpop.permute.xlu0 %679
    %vm689 = vcmask 31744
    %v690 = vsel %vm689, %v152, %v514
    %v691 = vsel %vm689, %v153, %v516
    %v692 = vsel %vm689, %v154, %v518
    %v693 = vsel %vm689, %v155, %v520
    %v694 = vsel %vm689, %v156, %v522
    %v695 = vsel %vm689, %v157, %v524
    %v696 = vsel %vm689, %v158, %v526
    %v697 = vsel %vm689, %v159, %v528
    %vm698 = vcmask 64512
    %v699 = vsel %vm698, %v690, %v546
    %v700 = vsel %vm698, %v691, %v548
    %v701 = vsel %vm698, %v692, %v550
    %v702 = vsel %vm698, %v693, %v552
    %v703 = vsel %vm698, %v694, %v554
    %v704 = vsel %vm698, %v695, %v556
    %v705 = vsel %vm698, %v696, %v558
    %v706 = vsel %vm698, %v697, %v560
    %vm707 = vcmask 97280
    %v708 = vsel %vm707, %v699, %v570
    %v709 = vsel %vm707, %v700, %v572
    %v710 = vsel %vm707, %v701, %v574
    %v711 = vsel %vm707, %v702, %v576
    %v712 = vsel %vm707, %v703, %v578
    %v713 = vsel %vm707, %v704, %v580
    %v714 = vsel %vm707, %v705, %v582
    %v715 = vsel %vm707, %v706, %v584
    %vm716 = vcmask 130048
    %v717 = vsel %vm716, %v708, %v602
    %v718 = vsel %vm716, %v709, %v604
    %v719 = vsel %vm716, %v710, %v606
    %v720 = vsel %vm716, %v711, %v608
    %v721 = vsel %vm716, %v712, %v610
    %v722 = vsel %vm716, %v713, %v612
    %v723 = vsel %vm716, %v714, %v614
    %v724 = vsel %vm716, %v715, %v616
    %vm725 = vcmask 162816
    %v726 = vsel %vm725, %v717, %v634
    %v727 = vsel %vm725, %v718, %v636
    %v728 = vsel %vm725, %v719, %v638
    %v729 = vsel %vm725, %v720, %v640
    %v730 = vsel %vm725, %v721, %v642
    %v731 = vsel %vm725, %v722, %v644
    %v732 = vsel %vm725, %v723, %v646
    %v733 = vsel %vm725, %v724, %v648
    %vm734 = vcmask 195584
    %v735 = vsel %vm734, %v726, %v666
    %v736 = vsel %vm734, %v727, %v668
    %v737 = vsel %vm734, %v728, %v670
    %v738 = vsel %vm734, %v729, %v672
    %v739 = vsel %vm734, %v730, %v674
    %v740 = vsel %vm734, %v731, %v676
    %v741 = vsel %vm734, %v732, %v678
    %v742 = vsel %vm734, %v733, %v680
    %v743 = vpack.c.bf16 %v736, %v735
    %v744 = vpack.c.bf16 %v738, %v737
    %v745 = vpack.c.bf16 %v740, %v739
    %v746 = vpack.c.bf16 %v742, %v741
    %v747 = vld [vmem:[%s1] sm:$0xff]
    %v748 = vld [vmem:[%s1 + $0x8] sm:$0xff]
    %v749 = vld [vmem:[%s1 + $0x10] sm:$0xff]
    %v750 = vld [vmem:[%s1 + $0x18] sm:$0x33]
    %v755 = vunpack.c.l.b16 %v747
    %v756 = vunpack.c.h.b16 %v747
    %v757 = vunpack.c.l.b16 %v748
    %v758 = vunpack.c.h.b16 %v748
    %v759 = vunpack.c.l.b16 %v749
    %v760 = vunpack.c.h.b16 %v749
    %v761 = vunpack.c.l.b16 %v750
    %v762 = vunpack.c.h.b16 %v750
    %v763 = vpack.c.b16 %v757, %v755
    %v764 = vpack.c.b16 %v758, %v756
    %v765 = vpack.c.b16 %v761, %v759
    %v766 = vpack.c.b16 %v762, %v760
    %vm769 = vcmask 228352
    %v771 = vsel %vm769, %v743, 0
    %v774 = vsel %vm769, %v744, 0
    %v777 = vsel %vm769, %v745, 0
    %v780 = vsel %vm769, %v746, 0
    %v783 = vsel %vm367, %v765, 0
    %v786 = vsel %vm367, %v766, 0
    %788 = vmatprep.subr.bf16.mxu0 0
    %789 = vmatpush1.bf16.msra.mxu0 0
    %790 = vmatprep.subr.bf16.mxu0 0
    %791 = vmatpush1.bf16.msra.mxu0 0
    %792 = vmatprep.subr.bf16.mxu0 0
    %793 = vmatpush1.bf16.msra.mxu0 0
    %794 = vmatprep.subr.bf16.mxu0 0
    %795 = vmatpush1.bf16.msra.mxu0 0
    %796 = vmatprep.subr.bf16.mxu0 0
    %797 = vmatpush1.bf16.msra.mxu0 0
    %798 = vmatprep.subr.bf16.mxu0 0
    %799 = vmatpush1.bf16.msra.mxu0 0
    %800 = vmatprep.subr.bf16.mxu0 %v786
    %801 = vmatpush1.bf16.msra.mxu0 %v783
    %802 = vmatprep.subr.bf16.mxu0 %v764
    %803 = vmatpush1.bf16.msra.mxu0 %v763
    %804 = vmatprep.subr.bf16.mxu0 0
    %805 = vmatpush2.bf16.msra.mxu0 0
    %806 = vmatprep.subr.bf16.mxu0 0
    %807 = vmatpush2.bf16.msra.mxu0 0
    %808 = vmatprep.subr.bf16.mxu0 0
    %809 = vmatpush2.bf16.msra.mxu0 0
    %810 = vmatprep.subr.bf16.mxu0 0
    %811 = vmatpush2.bf16.msra.mxu0 0
    %812 = vmatprep.subr.bf16.mxu0 0
    %813 = vmatpush2.bf16.msra.mxu0 0
    %814 = vmatprep.subr.bf16.mxu0 0
    %815 = vmatpush2.bf16.msra.mxu0 0
    %816 = vmatprep.subr.bf16.mxu0 0
    %817 = vmatpush2.bf16.msra.mxu0 0
    %818 = vmatprep.subr.bf16.mxu0 0
    %819 = vmatpush2.bf16.msra.mxu0 0
    %820 = vmatprep.mubr.bf16.mxu0 0
    %821 = vmatmul.mubr.bf16.gmra.mxu0 %v771
    %v822 = vpop.f32.mrf.mxu0
    %v823 = vadd.f32 0.0, %v822
    %v824 = vpop.f32.mrf.mxu0
    %v825 = vadd.f32 0.0, %v824
    %v826 = vpop.f32.mrf.mxu0
    %v827 = vadd.f32 0.0, %v826
    %v828 = vpop.f32.mrf.mxu0
    %v829 = vadd.f32 0.0, %v828
    %830 = vmatprep.mubr.bf16.mxu0 0
    %831 = vmatmul.mubr.bf16.gmra.mxu0 %v774
    %v832 = vpop.f32.mrf.mxu0
    %v833 = vadd.f32 0.0, %v832
    %v834 = vpop.f32.mrf.mxu0
    %v835 = vadd.f32 0.0, %v834
    %v836 = vpop.f32.mrf.mxu0
    %v837 = vadd.f32 0.0, %v836
    %v838 = vpop.f32.mrf.mxu0
    %v839 = vadd.f32 0.0, %v838
    %840 = vmatprep.mubr.bf16.mxu0 0
    %841 = vmatmul.mubr.bf16.gmra.mxu0 %v777
    %v842 = vpop.f32.mrf.mxu0
    %v843 = vadd.f32 0.0, %v842
    %v844 = vpop.f32.mrf.mxu0
    %v845 = vadd.f32 0.0, %v844
    %v846 = vpop.f32.mrf.mxu0
    %v847 = vadd.f32 0.0, %v846
    %v848 = vpop.f32.mrf.mxu0
    %v849 = vadd.f32 0.0, %v848
    %850 = vmatprep.mubr.bf16.mxu0 0
    %851 = vmatmul.mubr.bf16.gmra.mxu0 %v780
    %v852 = vpop.f32.mrf.mxu0
    %v853 = vadd.f32 0.0, %v852
    %v854 = vpop.f32.mrf.mxu0
    %v855 = vadd.f32 0.0, %v854
    %v856 = vpop.f32.mrf.mxu0
    %v857 = vadd.f32 0.0, %v856
    %v858 = vpop.f32.mrf.mxu0
    %v859 = vadd.f32 0.0, %v858
    %860 = vdwg.mxu0
    %v861 = vld [vmem:[%s2] sm:$0x3]
    %v863 = vlaneseq
    %v864 = vshrl.u32 %v863, 7
    %v865 = vsub.s32 0, %v864
    %v866 = vrot.slane %v861, %v865
    %v867 = vlaneseq
    %v868 = vshrl.u32 %v867, 7
    %v869 = vsub.s32 1, %v868
    %v870 = vrot.slane %v861, %v869
    %v873 = vmul.f32 %v823, %v866
    %v874 = vmul.f32 %v825, %v870
    %v875 = vmul.f32 %v827, %v866
    %v876 = vmul.f32 %v829, %v870
    %v877 = vmul.f32 %v833, %v866
    %v878 = vmul.f32 %v835, %v870
    %v879 = vmul.f32 %v837, %v866
    %v880 = vmul.f32 %v839, %v870
    %v881 = vmul.f32 %v843, %v866
    %v882 = vmul.f32 %v845, %v870
    %v883 = vmul.f32 %v847, %v866
    %v884 = vmul.f32 %v849, %v870
    %v885 = vmul.f32 %v853, %v866
    %v886 = vmul.f32 %v855, %v870
    %v887 = vmul.f32 %v857, %v866
    %v888 = vmul.f32 %v859, %v870
    %v889 = vld [vmem:[%s3] sm:$0x3]
    %v891 = vlaneseq
    %v892 = vshrl.u32 %v891, 7
    %v893 = vsub.s32 0, %v892
    %v894 = vrot.slane %v889, %v893
    %v895 = vlaneseq
    %v896 = vshrl.u32 %v895, 7
    %v897 = vsub.s32 1, %v896
    %v898 = vrot.slane %v889, %v897
    %v901 = vadd.f32 %v873, %v894
    %v902 = vadd.f32 %v874, %v898
    %v903 = vadd.f32 %v875, %v894
    %v904 = vadd.f32 %v876, %v898
    %v905 = vadd.f32 %v877, %v894
    %v906 = vadd.f32 %v878, %v898
    %v907 = vadd.f32 %v879, %v894
    %v908 = vadd.f32 %v880, %v898
    %v909 = vadd.f32 %v881, %v894
    %v910 = vadd.f32 %v882, %v898
    %v911 = vadd.f32 %v883, %v894
    %v912 = vadd.f32 %v884, %v898
    %v913 = vadd.f32 %v885, %v894
    %v914 = vadd.f32 %v886, %v898
    %v915 = vadd.f32 %v887, %v894
    %v916 = vadd.f32 %v888, %v898
    %v917 = vmax.f32 %v901, 0.0
    %v918 = vmax.f32 %v902, 0.0
    %v919 = vmax.f32 %v903, 0.0
    %v920 = vmax.f32 %v904, 0.0
    %v921 = vmax.f32 %v905, 0.0
    %v922 = vmax.f32 %v906, 0.0
    %v923 = vmax.f32 %v907, 0.0
    %v924 = vmax.f32 %v908, 0.0
    %v925 = vmax.f32 %v909, 0.0
    %v926 = vmax.f32 %v910, 0.0
    %v927 = vmax.f32 %v911, 0.0
    %v928 = vmax.f32 %v912, 0.0
    %v929 = vmax.f32 %v913, 0.0
    %v930 = vmax.f32 %v914, 0.0
    %v931 = vmax.f32 %v915, 0.0
    %v932 = vmax.f32 %v916, 0.0
    %v949 = vcombine.low %v917, %v918
    %v950 = vcombine.high %v917, %v918
    %v952 = vunpack.c.l.s4 1983009808
    %v953 = vunpack.c.0.s8 %v952
    %v954 = vlaneseq
    %v955 = vshrl.u32 %v954, 7
    %v956 = vsub.s32 %v953, %v955
    %v957 = vrot.slane %v949, %v956
    %v959 = vunpack.c.l.s4 1983009808
    %v960 = vunpack.c.0.s8 %v959
    %v961 = vlaneseq
    %v962 = vshrl.u32 %v961, 7
    %v963 = vsub.s32 %v960, %v962
    %v964 = vrot.slane %v950, %v963
    %v965 = vcombine.high %v957, %v957
    %v966 = vcombine.high %v964, %v964
    %v967 = vcombine.low %v919, %v920
    %v968 = vcombine.high %v919, %v920
    %v970 = vunpack.c.l.s4 1983009808
    %v971 = vunpack.c.0.s8 %v970
    %v972 = vlaneseq
    %v973 = vshrl.u32 %v972, 7
    %v974 = vsub.s32 %v971, %v973
    %v975 = vrot.slane %v967, %v974
    %v977 = vunpack.c.l.s4 1983009808
    %v978 = vunpack.c.0.s8 %v977
    %v979 = vlaneseq
    %v980 = vshrl.u32 %v979, 7
    %v981 = vsub.s32 %v978, %v980
    %v982 = vrot.slane %v968, %v981
    %v983 = vcombine.high %v975, %v975
    %v984 = vcombine.high %v982, %v982
    %v985 = vcombine.low %v921, %v922
    %v986 = vcombine.high %v921, %v922
    %v988 = vunpack.c.l.s4 1983009808
    %v989 = vunpack.c.0.s8 %v988
    %v990 = vlaneseq
    %v991 = vshrl.u32 %v990, 7
    %v992 = vsub.s32 %v989, %v991
    %v993 = vrot.slane %v985, %v992
    %v995 = vunpack.c.l.s4 1983009808
    %v996 = vunpack.c.0.s8 %v995
    %v997 = vlaneseq
    %v998 = vshrl.u32 %v997, 7
    %v999 = vsub.s32 %v996, %v998
    %v1000 = vrot.slane %v986, %v999
    %v1001 = vcombine.high %v993, %v993
    %v1002 = vcombine.high %v1000, %v1000
    %v1003 = vcombine.low %v923, %v924
    %v1004 = vcombine.high %v923, %v924
    %v1006 = vunpack.c.l.s4 1983009808
    %v1007 = vunpack.c.0.s8 %v1006
    %v1008 = vlaneseq
    %v1009 = vshrl.u32 %v1008, 7
    %v1010 = vsub.s32 %v1007, %v1009
    %v1011 = vrot.slane %v1003, %v1010
    %v1013 = vunpack.c.l.s4 1983009808
    %v1014 = vunpack.c.0.s8 %v1013
    %v1015 = vlaneseq
    %v1016 = vshrl.u32 %v1015, 7
    %v1017 = vsub.s32 %v1014, %v1016
    %v1018 = vrot.slane %v1004, %v1017
    %v1019 = vcombine.high %v1011, %v1011
    %v1020 = vcombine.high %v1018, %v1018
    %v1021 = vcombine.low %v925, %v926
    %v1022 = vcombine.high %v925, %v926
    %v1024 = vunpack.c.l.s4 1983009808
    %v1025 = vunpack.c.0.s8 %v1024
    %v1026 = vlaneseq
    %v1027 = vshrl.u32 %v1026, 7
    %v1028 = vsub.s32 %v1025, %v1027
    %v1029 = vrot.slane %v1021, %v1028
    %v1031 = vunpack.c.l.s4 1983009808
    %v1032 = vunpack.c.0.s8 %v1031
    %v1033 = vlaneseq
    %v1034 = vshrl.u32 %v1033, 7
    %v1035 = vsub.s32 %v1032, %v1034
    %v1036 = vrot.slane %v1022, %v1035
    %v1037 = vcombine.high %v1029, %v1029
    %v1038 = vcombine.high %v1036, %v1036
    %v1039 = vcombine.low %v927, %v928
    %v1040 = vcombine.high %v927, %v928
    %v1042 = vunpack.c.l.s4 1983009808
    %v1043 = vunpack.c.0.s8 %v1042
    %v1044 = vlaneseq
    %v1045 = vshrl.u32 %v1044, 7
    %v1046 = vsub.s32 %v1043, %v1045
    %v1047 = vrot.slane %v1039, %v1046
    %v1049 = vunpack.c.l.s4 1983009808
    %v1050 = vunpack.c.0.s8 %v1049
    %v1051 = vlaneseq
    %v1052 = vshrl.u32 %v1051, 7
    %v1053 = vsub.s32 %v1050, %v1052
    %v1054 = vrot.slane %v1040, %v1053
    %v1055 = vcombine.high %v1047, %v1047
    %v1056 = vcombine.high %v1054, %v1054
    %v1057 = vcombine.low %v929, %v930
    %v1058 = vcombine.high %v929, %v930
    %v1060 = vunpack.c.l.s4 1983009808
    %v1061 = vunpack.c.0.s8 %v1060
    %v1062 = vlaneseq
    %v1063 = vshrl.u32 %v1062, 7
    %v1064 = vsub.s32 %v1061, %v1063
    %v1065 = vrot.slane %v1057, %v1064
    %v1067 = vunpack.c.l.s4 1983009808
    %v1068 = vunpack.c.0.s8 %v1067
    %v1069 = vlaneseq
    %v1070 = vshrl.u32 %v1069, 7
    %v1071 = vsub.s32 %v1068, %v1070
    %v1072 = vrot.slane %v1058, %v1071
    %v1073 = vcombine.high %v1065, %v1065
    %v1074 = vcombine.high %v1072, %v1072
    %v1075 = vcombine.low %v931, %v932
    %v1076 = vcombine.high %v931, %v932
    %v1078 = vunpack.c.l.s4 1983009808
    %v1079 = vunpack.c.0.s8 %v1078
    %v1080 = vlaneseq
    %v1081 = vshrl.u32 %v1080, 7
    %v1082 = vsub.s32 %v1079, %v1081
    %v1083 = vrot.slane %v1075, %v1082
    %v1085 = vunpack.c.l.s4 1983009808
    %v1086 = vunpack.c.0.s8 %v1085
    %v1087 = vlaneseq
    %v1088 = vshrl.u32 %v1087, 7
    %v1089 = vsub.s32 %v1086, %v1088
    %v1090 = vrot.slane %v1076, %v1089
    %v1091 = vcombine.high %v1083, %v1083
    %v1092 = vcombine.high %v1090, %v1090
    %v1094 = vunpack.c.l.s4 1983009808
    %v1095 = vunpack.c.0.s8 %v1094
    %v1096 = vlaneseq
    %v1097 = vshrl.u32 %v1096, 7
    %v1098 = vsub.s32 %v1095, %v1097
    %v1099 = vrot.slane %v957, %v1098
    %v1100 = vcombine.high %v1099, %v1099
    %v1102 = vunpack.c.l.s4 1983009808
    %v1103 = vunpack.c.0.s8 %v1102
    %v1104 = vlaneseq
    %v1105 = vshrl.u32 %v1104, 7
    %v1106 = vsub.s32 %v1103, %v1105
    %v1107 = vrot.slane %v965, %v1106
    %v1108 = vcombine.high %v1107, %v1107
    %v1110 = vunpack.c.l.s4 1983009808
    %v1111 = vunpack.c.0.s8 %v1110
    %v1112 = vlaneseq
    %v1113 = vshrl.u32 %v1112, 7
    %v1114 = vsub.s32 %v1111, %v1113
    %v1115 = vrot.slane %v964, %v1114
    %v1116 = vcombine.high %v1115, %v1115
    %v1118 = vunpack.c.l.s4 1983009808
    %v1119 = vunpack.c.0.s8 %v1118
    %v1120 = vlaneseq
    %v1121 = vshrl.u32 %v1120, 7
    %v1122 = vsub.s32 %v1119, %v1121
    %v1123 = vrot.slane %v966, %v1122
    %v1124 = vcombine.high %v1123, %v1123
    %v1126 = vunpack.c.l.s4 1983009808
    %v1127 = vunpack.c.0.s8 %v1126
    %v1128 = vlaneseq
    %v1129 = vshrl.u32 %v1128, 7
    %v1130 = vsub.s32 %v1127, %v1129
    %v1131 = vrot.slane %v975, %v1130
    %v1132 = vcombine.high %v1131, %v1131
    %v1134 = vunpack.c.l.s4 1983009808
    %v1135 = vunpack.c.0.s8 %v1134
    %v1136 = vlaneseq
    %v1137 = vshrl.u32 %v1136, 7
    %v1138 = vsub.s32 %v1135, %v1137
    %v1139 = vrot.slane %v983, %v1138
    %v1140 = vcombine.high %v1139, %v1139
    %v1142 = vunpack.c.l.s4 1983009808
    %v1143 = vunpack.c.0.s8 %v1142
    %v1144 = vlaneseq
    %v1145 = vshrl.u32 %v1144, 7
    %v1146 = vsub.s32 %v1143, %v1145
    %v1147 = vrot.slane %v982, %v1146
    %v1148 = vcombine.high %v1147, %v1147
    %v1150 = vunpack.c.l.s4 1983009808
    %v1151 = vunpack.c.0.s8 %v1150
    %v1152 = vlaneseq
    %v1153 = vshrl.u32 %v1152, 7
    %v1154 = vsub.s32 %v1151, %v1153
    %v1155 = vrot.slane %v984, %v1154
    %v1156 = vcombine.high %v1155, %v1155
    %v1158 = vunpack.c.l.s4 1983009808
    %v1159 = vunpack.c.0.s8 %v1158
    %v1160 = vlaneseq
    %v1161 = vshrl.u32 %v1160, 7
    %v1162 = vsub.s32 %v1159, %v1161
    %v1163 = vrot.slane %v993, %v1162
    %v1164 = vcombine.high %v1163, %v1163
    %v1166 = vunpack.c.l.s4 1983009808
    %v1167 = vunpack.c.0.s8 %v1166
    %v1168 = vlaneseq
    %v1169 = vshrl.u32 %v1168, 7
    %v1170 = vsub.s32 %v1167, %v1169
    %v1171 = vrot.slane %v1001, %v1170
    %v1172 = vcombine.high %v1171, %v1171
    %v1174 = vunpack.c.l.s4 1983009808
    %v1175 = vunpack.c.0.s8 %v1174
    %v1176 = vlaneseq
    %v1177 = vshrl.u32 %v1176, 7
    %v1178 = vsub.s32 %v1175, %v1177
    %v1179 = vrot.slane %v1000, %v1178
    %v1180 = vcombine.high %v1179, %v1179
    %v1182 = vunpack.c.l.s4 1983009808
    %v1183 = vunpack.c.0.s8 %v1182
    %v1184 = vlaneseq
    %v1185 = vshrl.u32 %v1184, 7
    %v1186 = vsub.s32 %v1183, %v1185
    %v1187 = vrot.slane %v1002, %v1186
    %v1188 = vcombine.high %v1187, %v1187
    %v1190 = vunpack.c.l.s4 1983009808
    %v1191 = vunpack.c.0.s8 %v1190
    %v1192 = vlaneseq
    %v1193 = vshrl.u32 %v1192, 7
    %v1194 = vsub.s32 %v1191, %v1193
    %v1195 = vrot.slane %v1011, %v1194
    %v1196 = vcombine.high %v1195, %v1195
    %v1198 = vunpack.c.l.s4 1983009808
    %v1199 = vunpack.c.0.s8 %v1198
    %v1200 = vlaneseq
    %v1201 = vshrl.u32 %v1200, 7
    %v1202 = vsub.s32 %v1199, %v1201
    %v1203 = vrot.slane %v1019, %v1202
    %v1204 = vcombine.high %v1203, %v1203
    %v1206 = vunpack.c.l.s4 1983009808
    %v1207 = vunpack.c.0.s8 %v1206
    %v1208 = vlaneseq
    %v1209 = vshrl.u32 %v1208, 7
    %v1210 = vsub.s32 %v1207, %v1209
    %v1211 = vrot.slane %v1018, %v1210
    %v1212 = vcombine.high %v1211, %v1211
    %v1214 = vunpack.c.l.s4 1983009808
    %v1215 = vunpack.c.0.s8 %v1214
    %v1216 = vlaneseq
    %v1217 = vshrl.u32 %v1216, 7
    %v1218 = vsub.s32 %v1215, %v1217
    %v1219 = vrot.slane %v1020, %v1218
    %v1220 = vcombine.high %v1219, %v1219
    %v1222 = vunpack.c.l.s4 1983009808
    %v1223 = vunpack.c.0.s8 %v1222
    %v1224 = vlaneseq
    %v1225 = vshrl.u32 %v1224, 7
    %v1226 = vsub.s32 %v1223, %v1225
    %v1227 = vrot.slane %v1029, %v1226
    %v1228 = vcombine.high %v1227, %v1227
    %v1230 = vunpack.c.l.s4 1983009808
    %v1231 = vunpack.c.0.s8 %v1230
    %v1232 = vlaneseq
    %v1233 = vshrl.u32 %v1232, 7
    %v1234 = vsub.s32 %v1231, %v1233
    %v1235 = vrot.slane %v1037, %v1234
    %v1236 = vcombine.high %v1235, %v1235
    %v1238 = vunpack.c.l.s4 1983009808
    %v1239 = vunpack.c.0.s8 %v1238
    %v1240 = vlaneseq
    %v1241 = vshrl.u32 %v1240, 7
    %v1242 = vsub.s32 %v1239, %v1241
    %v1243 = vrot.slane %v1036, %v1242
    %v1244 = vcombine.high %v1243, %v1243
    %v1246 = vunpack.c.l.s4 1983009808
    %v1247 = vunpack.c.0.s8 %v1246
    %v1248 = vlaneseq
    %v1249 = vshrl.u32 %v1248, 7
    %v1250 = vsub.s32 %v1247, %v1249
    %v1251 = vrot.slane %v1038, %v1250
    %v1252 = vcombine.high %v1251, %v1251
    %v1254 = vunpack.c.l.s4 1983009808
    %v1255 = vunpack.c.0.s8 %v1254
    %v1256 = vlaneseq
    %v1257 = vshrl.u32 %v1256, 7
    %v1258 = vsub.s32 %v1255, %v1257
    %v1259 = vrot.slane %v1047, %v1258
    %v1260 = vcombine.high %v1259, %v1259
    %v1262 = vunpack.c.l.s4 1983009808
    %v1263 = vunpack.c.0.s8 %v1262
    %v1264 = vlaneseq
    %v1265 = vshrl.u32 %v1264, 7
    %v1266 = vsub.s32 %v1263, %v1265
    %v1267 = vrot.slane %v1055, %v1266
    %v1268 = vcombine.high %v1267, %v1267
    %v1270 = vunpack.c.l.s4 1983009808
    %v1271 = vunpack.c.0.s8 %v1270
    %v1272 = vlaneseq
    %v1273 = vshrl.u32 %v1272, 7
    %v1274 = vsub.s32 %v1271, %v1273
    %v1275 = vrot.slane %v1054, %v1274
    %v1276 = vcombine.high %v1275, %v1275
    %v1278 = vunpack.c.l.s4 1983009808
    %v1279 = vunpack.c.0.s8 %v1278
    %v1280 = vlaneseq
    %v1281 = vshrl.u32 %v1280, 7
    %v1282 = vsub.s32 %v1279, %v1281
    %v1283 = vrot.slane %v1056, %v1282
    %v1284 = vcombine.high %v1283, %v1283
    %v1286 = vunpack.c.l.s4 1983009808
    %v1287 = vunpack.c.0.s8 %v1286
    %v1288 = vlaneseq
    %v1289 = vshrl.u32 %v1288, 7
    %v1290 = vsub.s32 %v1287, %v1289
    %v1291 = vrot.slane %v1065, %v1290
    %v1292 = vcombine.high %v1291, %v1291
    %v1294 = vunpack.c.l.s4 1983009808
    %v1295 = vunpack.c.0.s8 %v1294
    %v1296 = vlaneseq
    %v1297 = vshrl.u32 %v1296, 7
    %v1298 = vsub.s32 %v1295, %v1297
    %v1299 = vrot.slane %v1073, %v1298
    %v1300 = vcombine.high %v1299, %v1299
    %v1302 = vunpack.c.l.s4 1983009808
    %v1303 = vunpack.c.0.s8 %v1302
    %v1304 = vlaneseq
    %v1305 = vshrl.u32 %v1304, 7
    %v1306 = vsub.s32 %v1303, %v1305
    %v1307 = vrot.slane %v1072, %v1306
    %v1308 = vcombine.high %v1307, %v1307
    %v1310 = vunpack.c.l.s4 1983009808
    %v1311 = vunpack.c.0.s8 %v1310
    %v1312 = vlaneseq
    %v1313 = vshrl.u32 %v1312, 7
    %v1314 = vsub.s32 %v1311, %v1313
    %v1315 = vrot.slane %v1074, %v1314
    %v1316 = vcombine.high %v1315, %v1315
    %v1318 = vunpack.c.l.s4 1983009808
    %v1319 = vunpack.c.0.s8 %v1318
    %v1320 = vlaneseq
    %v1321 = vshrl.u32 %v1320, 7
    %v1322 = vsub.s32 %v1319, %v1321
    %v1323 = vrot.slane %v1083, %v1322
    %v1324 = vcombine.high %v1323, %v1323
    %v1326 = vunpack.c.l.s4 1983009808
    %v1327 = vunpack.c.0.s8 %v1326
    %v1328 = vlaneseq
    %v1329 = vshrl.u32 %v1328, 7
    %v1330 = vsub.s32 %v1327, %v1329
    %v1331 = vrot.slane %v1091, %v1330
    %v1332 = vcombine.high %v1331, %v1331
    %v1334 = vunpack.c.l.s4 1983009808
    %v1335 = vunpack.c.0.s8 %v1334
    %v1336 = vlaneseq
    %v1337 = vshrl.u32 %v1336, 7
    %v1338 = vsub.s32 %v1335, %v1337
    %v1339 = vrot.slane %v1090, %v1338
    %v1340 = vcombine.high %v1339, %v1339
    %v1342 = vunpack.c.l.s4 1983009808
    %v1343 = vunpack.c.0.s8 %v1342
    %v1344 = vlaneseq
    %v1345 = vshrl.u32 %v1344, 7
    %v1346 = vsub.s32 %v1343, %v1345
    %v1347 = vrot.slane %v1092, %v1346
    %v1348 = vcombine.high %v1347, %v1347
    %v1413 = vsel %vm160, %v1099, -inf
    %v1414 = vrot.slane %v1413, 4
    %v1415 = vmax.f32 %v1413, %v1414
    %v1416 = vrot.slane %v1415, 2
    %v1417 = vmax.f32 %v1415, %v1416
    %v1418 = vrot.slane %v1417, 1
    %v1419 = vmax.f32 %v1417, %v1418
    %vm1420 = vcmask 959488
    %v1421 = vsel %vm1420, %v1100, -inf
    %v1422 = vrot.slane %v1421, 4
    %v1423 = vmax.f32 %v1421, %v1422
    %v1424 = vrot.slane %v1423, 2
    %v1425 = vmax.f32 %v1423, %v1424
    %v1426 = vrot.slane %v1425, 1
    %v1427 = vmax.f32 %v1425, %v1426
    %v1428 = vsel %vm160, %v1107, -inf
    %v1429 = vrot.slane %v1428, 4
    %v1430 = vmax.f32 %v1428, %v1429
    %v1431 = vrot.slane %v1430, 2
    %v1432 = vmax.f32 %v1430, %v1431
    %v1433 = vrot.slane %v1432, 1
    %v1434 = vmax.f32 %v1432, %v1433
    %v1435 = vsel %vm1420, %v1108, -inf
    %v1436 = vrot.slane %v1435, 4
    %v1437 = vmax.f32 %v1435, %v1436
    %v1438 = vrot.slane %v1437, 2
    %v1439 = vmax.f32 %v1437, %v1438
    %v1440 = vrot.slane %v1439, 1
    %v1441 = vmax.f32 %v1439, %v1440
    %v1442 = vsel %vm160, %v1115, -inf
    %v1443 = vrot.slane %v1442, 4
    %v1444 = vmax.f32 %v1442, %v1443
    %v1445 = vrot.slane %v1444, 2
    %v1446 = vmax.f32 %v1444, %v1445
    %v1447 = vrot.slane %v1446, 1
    %v1448 = vmax.f32 %v1446, %v1447
    %v1449 = vsel %vm1420, %v1116, -inf
    %v1450 = vrot.slane %v1449, 4
    %v1451 = vmax.f32 %v1449, %v1450
    %v1452 = vrot.slane %v1451, 2
    %v1453 = vmax.f32 %v1451, %v1452
    %v1454 = vrot.slane %v1453, 1
    %v1455 = vmax.f32 %v1453, %v1454
    %v1456 = vsel %vm160, %v1123, -inf
    %v1457 = vrot.slane %v1456, 4
    %v1458 = vmax.f32 %v1456, %v1457
    %v1459 = vrot.slane %v1458, 2
    %v1460 = vmax.f32 %v1458, %v1459
    %v1461 = vrot.slane %v1460, 1
    %v1462 = vmax.f32 %v1460, %v1461
    %v1463 = vsel %vm1420, %v1124, -inf
    %v1464 = vrot.slane %v1463, 4
    %v1465 = vmax.f32 %v1463, %v1464
    %v1466 = vrot.slane %v1465, 2
    %v1467 = vmax.f32 %v1465, %v1466
    %v1468 = vrot.slane %v1467, 1
    %v1469 = vmax.f32 %v1467, %v1468
    %v1470 = vsel %vm160, %v1131, -inf
    %v1471 = vrot.slane %v1470, 4
    %v1472 = vmax.f32 %v1470, %v1471
    %v1473 = vrot.slane %v1472, 2
    %v1474 = vmax.f32 %v1472, %v1473
    %v1475 = vrot.slane %v1474, 1
    %v1476 = vmax.f32 %v1474, %v1475
    %v1477 = vsel %vm1420, %v1132, -inf
    %v1478 = vrot.slane %v1477, 4
    %v1479 = vmax.f32 %v1477, %v1478
    %v1480 = vrot.slane %v1479, 2
    %v1481 = vmax.f32 %v1479, %v1480
    %v1482 = vrot.slane %v1481, 1
    %v1483 = vmax.f32 %v1481, %v1482
    %v1484 = vsel %vm160, %v1139, -inf
    %v1485 = vrot.slane %v1484, 4
    %v1486 = vmax.f32 %v1484, %v1485
    %v1487 = vrot.slane %v1486, 2
    %v1488 = vmax.f32 %v1486, %v1487
    %v1489 = vrot.slane %v1488, 1
    %v1490 = vmax.f32 %v1488, %v1489
    %v1491 = vsel %vm1420, %v1140, -inf
    %v1492 = vrot.slane %v1491, 4
    %v1493 = vmax.f32 %v1491, %v1492
    %v1494 = vrot.slane %v1493, 2
    %v1495 = vmax.f32 %v1493, %v1494
    %v1496 = vrot.slane %v1495, 1
    %v1497 = vmax.f32 %v1495, %v1496
    %v1498 = vsel %vm160, %v1147, -inf
    %v1499 = vrot.slane %v1498, 4
    %v1500 = vmax.f32 %v1498, %v1499
    %v1501 = vrot.slane %v1500, 2
    %v1502 = vmax.f32 %v1500, %v1501
    %v1503 = vrot.slane %v1502, 1
    %v1504 = vmax.f32 %v1502, %v1503
    %v1505 = vsel %vm1420, %v1148, -inf
    %v1506 = vrot.slane %v1505, 4
    %v1507 = vmax.f32 %v1505, %v1506
    %v1508 = vrot.slane %v1507, 2
    %v1509 = vmax.f32 %v1507, %v1508
    %v1510 = vrot.slane %v1509, 1
    %v1511 = vmax.f32 %v1509, %v1510
    %v1512 = vsel %vm160, %v1155, -inf
    %v1513 = vrot.slane %v1512, 4
    %v1514 = vmax.f32 %v1512, %v1513
    %v1515 = vrot.slane %v1514, 2
    %v1516 = vmax.f32 %v1514, %v1515
    %v1517 = vrot.slane %v1516, 1
    %v1518 = vmax.f32 %v1516, %v1517
    %v1519 = vsel %vm1420, %v1156, -inf
    %v1520 = vrot.slane %v1519, 4
    %v1521 = vmax.f32 %v1519, %v1520
    %v1522 = vrot.slane %v1521, 2
    %v1523 = vmax.f32 %v1521, %v1522
    %v1524 = vrot.slane %v1523, 1
    %v1525 = vmax.f32 %v1523, %v1524
    %v1526 = vsel %vm160, %v1163, -inf
    %v1527 = vrot.slane %v1526, 4
    %v1528 = vmax.f32 %v1526, %v1527
    %v1529 = vrot.slane %v1528, 2
    %v1530 = vmax.f32 %v1528, %v1529
    %v1531 = vrot.slane %v1530, 1
    %v1532 = vmax.f32 %v1530, %v1531
    %v1533 = vsel %vm1420, %v1164, -inf
    %v1534 = vrot.slane %v1533, 4
    %v1535 = vmax.f32 %v1533, %v1534
    %v1536 = vrot.slane %v1535, 2
    %v1537 = vmax.f32 %v1535, %v1536
    %v1538 = vrot.slane %v1537, 1
    %v1539 = vmax.f32 %v1537, %v1538
    %v1540 = vsel %vm160, %v1171, -inf
    %v1541 = vrot.slane %v1540, 4
    %v1542 = vmax.f32 %v1540, %v1541
    %v1543 = vrot.slane %v1542, 2
    %v1544 = vmax.f32 %v1542, %v1543
    %v1545 = vrot.slane %v1544, 1
    %v1546 = vmax.f32 %v1544, %v1545
    %v1547 = vsel %vm1420, %v1172, -inf
    %v1548 = vrot.slane %v1547, 4
    %v1549 = vmax.f32 %v1547, %v1548
    %v1550 = vrot.slane %v1549, 2
    %v1551 = vmax.f32 %v1549, %v1550
    %v1552 = vrot.slane %v1551, 1
    %v1553 = vmax.f32 %v1551, %v1552
    %v1554 = vsel %vm160, %v1179, -inf
    %v1555 = vrot.slane %v1554, 4
    %v1556 = vmax.f32 %v1554, %v1555
    %v1557 = vrot.slane %v1556, 2
    %v1558 = vmax.f32 %v1556, %v1557
    %v1559 = vrot.slane %v1558, 1
    %v1560 = vmax.f32 %v1558, %v1559
    %v1561 = vsel %vm1420, %v1180, -inf
    %v1562 = vrot.slane %v1561, 4
    %v1563 = vmax.f32 %v1561, %v1562
    %v1564 = vrot.slane %v1563, 2
    %v1565 = vmax.f32 %v1563, %v1564
    %v1566 = vrot.slane %v1565, 1
    %v1567 = vmax.f32 %v1565, %v1566
    %v1568 = vsel %vm160, %v1187, -inf
    %v1569 = vrot.slane %v1568, 4
    %v1570 = vmax.f32 %v1568, %v1569
    %v1571 = vrot.slane %v1570, 2
    %v1572 = vmax.f32 %v1570, %v1571
    %v1573 = vrot.slane %v1572, 1
    %v1574 = vmax.f32 %v1572, %v1573
    %v1575 = vsel %vm1420, %v1188, -inf
    %v1576 = vrot.slane %v1575, 4
    %v1577 = vmax.f32 %v1575, %v1576
    %v1578 = vrot.slane %v1577, 2
    %v1579 = vmax.f32 %v1577, %v1578
    %v1580 = vrot.slane %v1579, 1
    %v1581 = vmax.f32 %v1579, %v1580
    %v1582 = vsel %vm160, %v1195, -inf
    %v1583 = vrot.slane %v1582, 4
    %v1584 = vmax.f32 %v1582, %v1583
    %v1585 = vrot.slane %v1584, 2
    %v1586 = vmax.f32 %v1584, %v1585
    %v1587 = vrot.slane %v1586, 1
    %v1588 = vmax.f32 %v1586, %v1587
    %v1589 = vsel %vm1420, %v1196, -inf
    %v1590 = vrot.slane %v1589, 4
    %v1591 = vmax.f32 %v1589, %v1590
    %v1592 = vrot.slane %v1591, 2
    %v1593 = vmax.f32 %v1591, %v1592
    %v1594 = vrot.slane %v1593, 1
    %v1595 = vmax.f32 %v1593, %v1594
    %v1596 = vsel %vm160, %v1203, -inf
    %v1597 = vrot.slane %v1596, 4
    %v1598 = vmax.f32 %v1596, %v1597
    %v1599 = vrot.slane %v1598, 2
    %v1600 = vmax.f32 %v1598, %v1599
    %v1601 = vrot.slane %v1600, 1
    %v1602 = vmax.f32 %v1600, %v1601
    %v1603 = vsel %vm1420, %v1204, -inf
    %v1604 = vrot.slane %v1603, 4
    %v1605 = vmax.f32 %v1603, %v1604
    %v1606 = vrot.slane %v1605, 2
    %v1607 = vmax.f32 %v1605, %v1606
    %v1608 = vrot.slane %v1607, 1
    %v1609 = vmax.f32 %v1607, %v1608
    %v1610 = vsel %vm160, %v1211, -inf
    %v1611 = vrot.slane %v1610, 4
    %v1612 = vmax.f32 %v1610, %v1611
    %v1613 = vrot.slane %v1612, 2
    %v1614 = vmax.f32 %v1612, %v1613
    %v1615 = vrot.slane %v1614, 1
    %v1616 = vmax.f32 %v1614, %v1615
    %v1617 = vsel %vm1420, %v1212, -inf
    %v1618 = vrot.slane %v1617, 4
    %v1619 = vmax.f32 %v1617, %v1618
    %v1620 = vrot.slane %v1619, 2
    %v1621 = vmax.f32 %v1619, %v1620
    %v1622 = vrot.slane %v1621, 1
    %v1623 = vmax.f32 %v1621, %v1622
    %v1624 = vsel %vm160, %v1219, -inf
    %v1625 = vrot.slane %v1624, 4
    %v1626 = vmax.f32 %v1624, %v1625
    %v1627 = vrot.slane %v1626, 2
    %v1628 = vmax.f32 %v1626, %v1627
    %v1629 = vrot.slane %v1628, 1
    %v1630 = vmax.f32 %v1628, %v1629
    %v1631 = vsel %vm1420, %v1220, -inf
    %v1632 = vrot.slane %v1631, 4
    %v1633 = vmax.f32 %v1631, %v1632
    %v1634 = vrot.slane %v1633, 2
    %v1635 = vmax.f32 %v1633, %v1634
    %v1636 = vrot.slane %v1635, 1
    %v1637 = vmax.f32 %v1635, %v1636
    %v1638 = vsel %vm160, %v1227, -inf
    %v1639 = vrot.slane %v1638, 4
    %v1640 = vmax.f32 %v1638, %v1639
    %v1641 = vrot.slane %v1640, 2
    %v1642 = vmax.f32 %v1640, %v1641
    %v1643 = vrot.slane %v1642, 1
    %v1644 = vmax.f32 %v1642, %v1643
    %v1645 = vsel %vm1420, %v1228, -inf
    %v1646 = vrot.slane %v1645, 4
    %v1647 = vmax.f32 %v1645, %v1646
    %v1648 = vrot.slane %v1647, 2
    %v1649 = vmax.f32 %v1647, %v1648
    %v1650 = vrot.slane %v1649, 1
    %v1651 = vmax.f32 %v1649, %v1650
    %v1652 = vsel %vm160, %v1235, -inf
    %v1653 = vrot.slane %v1652, 4
    %v1654 = vmax.f32 %v1652, %v1653
    %v1655 = vrot.slane %v1654, 2
    %v1656 = vmax.f32 %v1654, %v1655
    %v1657 = vrot.slane %v1656, 1
    %v1658 = vmax.f32 %v1656, %v1657
    %v1659 = vsel %vm1420, %v1236, -inf
    %v1660 = vrot.slane %v1659, 4
    %v1661 = vmax.f32 %v1659, %v1660
    %v1662 = vrot.slane %v1661, 2
    %v1663 = vmax.f32 %v1661, %v1662
    %v1664 = vrot.slane %v1663, 1
    %v1665 = vmax.f32 %v1663, %v1664
    %v1666 = vsel %vm160, %v1243, -inf
    %v1667 = vrot.slane %v1666, 4
    %v1668 = vmax.f32 %v1666, %v1667
    %v1669 = vrot.slane %v1668, 2
    %v1670 = vmax.f32 %v1668, %v1669
    %v1671 = vrot.slane %v1670, 1
    %v1672 = vmax.f32 %v1670, %v1671
    %v1673 = vsel %vm1420, %v1244, -inf
    %v1674 = vrot.slane %v1673, 4
    %v1675 = vmax.f32 %v1673, %v1674
    %v1676 = vrot.slane %v1675, 2
    %v1677 = vmax.f32 %v1675, %v1676
    %v1678 = vrot.slane %v1677, 1
    %v1679 = vmax.f32 %v1677, %v1678
    %v1680 = vsel %vm160, %v1251, -inf
    %v1681 = vrot.slane %v1680, 4
    %v1682 = vmax.f32 %v1680, %v1681
    %v1683 = vrot.slane %v1682, 2
    %v1684 = vmax.f32 %v1682, %v1683
    %v1685 = vrot.slane %v1684, 1
    %v1686 = vmax.f32 %v1684, %v1685
    %v1687 = vsel %vm1420, %v1252, -inf
    %v1688 = vrot.slane %v1687, 4
    %v1689 = vmax.f32 %v1687, %v1688
    %v1690 = vrot.slane %v1689, 2
    %v1691 = vmax.f32 %v1689, %v1690
    %v1692 = vrot.slane %v1691, 1
    %v1693 = vmax.f32 %v1691, %v1692
    %v1694 = vsel %vm160, %v1259, -inf
    %v1695 = vrot.slane %v1694, 4
    %v1696 = vmax.f32 %v1694, %v1695
    %v1697 = vrot.slane %v1696, 2
    %v1698 = vmax.f32 %v1696, %v1697
    %v1699 = vrot.slane %v1698, 1
    %v1700 = vmax.f32 %v1698, %v1699
    %v1701 = vsel %vm1420, %v1260, -inf
    %v1702 = vrot.slane %v1701, 4
    %v1703 = vmax.f32 %v1701, %v1702
    %v1704 = vrot.slane %v1703, 2
    %v1705 = vmax.f32 %v1703, %v1704
    %v1706 = vrot.slane %v1705, 1
    %v1707 = vmax.f32 %v1705, %v1706
    %v1708 = vsel %vm160, %v1267, -inf
    %v1709 = vrot.slane %v1708, 4
    %v1710 = vmax.f32 %v1708, %v1709
    %v1711 = vrot.slane %v1710, 2
    %v1712 = vmax.f32 %v1710, %v1711
    %v1713 = vrot.slane %v1712, 1
    %v1714 = vmax.f32 %v1712, %v1713
    %v1715 = vsel %vm1420, %v1268, -inf
    %v1716 = vrot.slane %v1715, 4
    %v1717 = vmax.f32 %v1715, %v1716
    %v1718 = vrot.slane %v1717, 2
    %v1719 = vmax.f32 %v1717, %v1718
    %v1720 = vrot.slane %v1719, 1
    %v1721 = vmax.f32 %v1719, %v1720
    %v1722 = vsel %vm160, %v1275, -inf
    %v1723 = vrot.slane %v1722, 4
    %v1724 = vmax.f32 %v1722, %v1723
    %v1725 = vrot.slane %v1724, 2
    %v1726 = vmax.f32 %v1724, %v1725
    %v1727 = vrot.slane %v1726, 1
    %v1728 = vmax.f32 %v1726, %v1727
    %v1729 = vsel %vm1420, %v1276, -inf
    %v1730 = vrot.slane %v1729, 4
    %v1731 = vmax.f32 %v1729, %v1730
    %v1732 = vrot.slane %v1731, 2
    %v1733 = vmax.f32 %v1731, %v1732
    %v1734 = vrot.slane %v1733, 1
    %v1735 = vmax.f32 %v1733, %v1734
    %v1736 = vsel %vm160, %v1283, -inf
    %v1737 = vrot.slane %v1736, 4
    %v1738 = vmax.f32 %v1736, %v1737
    %v1739 = vrot.slane %v1738, 2
    %v1740 = vmax.f32 %v1738, %v1739
    %v1741 = vrot.slane %v1740, 1
    %v1742 = vmax.f32 %v1740, %v1741
    %v1743 = vsel %vm1420, %v1284, -inf
    %v1744 = vrot.slane %v1743, 4
    %v1745 = vmax.f32 %v1743, %v1744
    %v1746 = vrot.slane %v1745, 2
    %v1747 = vmax.f32 %v1745, %v1746
    %v1748 = vrot.slane %v1747, 1
    %v1749 = vmax.f32 %v1747, %v1748
    %v1750 = vsel %vm160, %v1291, -inf
    %v1751 = vrot.slane %v1750, 4
    %v1752 = vmax.f32 %v1750, %v1751
    %v1753 = vrot.slane %v1752, 2
    %v1754 = vmax.f32 %v1752, %v1753
    %v1755 = vrot.slane %v1754, 1
    %v1756 = vmax.f32 %v1754, %v1755
    %v1757 = vsel %vm1420, %v1292, -inf
    %v1758 = vrot.slane %v1757, 4
    %v1759 = vmax.f32 %v1757, %v1758
    %v1760 = vrot.slane %v1759, 2
    %v1761 = vmax.f32 %v1759, %v1760
    %v1762 = vrot.slane %v1761, 1
    %v1763 = vmax.f32 %v1761, %v1762
    %v1764 = vsel %vm160, %v1299, -inf
    %v1765 = vrot.slane %v1764, 4
    %v1766 = vmax.f32 %v1764, %v1765
    %v1767 = vrot.slane %v1766, 2
    %v1768 = vmax.f32 %v1766, %v1767
    %v1769 = vrot.slane %v1768, 1
    %v1770 = vmax.f32 %v1768, %v1769
    %v1771 = vsel %vm1420, %v1300, -inf
    %v1772 = vrot.slane %v1771, 4
    %v1773 = vmax.f32 %v1771, %v1772
    %v1774 = vrot.slane %v1773, 2
    %v1775 = vmax.f32 %v1773, %v1774
    %v1776 = vrot.slane %v1775, 1
    %v1777 = vmax.f32 %v1775, %v1776
    %v1778 = vsel %vm160, %v1307, -inf
    %v1779 = vrot.slane %v1778, 4
    %v1780 = vmax.f32 %v1778, %v1779
    %v1781 = vrot.slane %v1780, 2
    %v1782 = vmax.f32 %v1780, %v1781
    %v1783 = vrot.slane %v1782, 1
    %v1784 = vmax.f32 %v1782, %v1783
    %v1785 = vsel %vm1420, %v1308, -inf
    %v1786 = vrot.slane %v1785, 4
    %v1787 = vmax.f32 %v1785, %v1786
    %v1788 = vrot.slane %v1787, 2
    %v1789 = vmax.f32 %v1787, %v1788
    %v1790 = vrot.slane %v1789, 1
    %v1791 = vmax.f32 %v1789, %v1790
    %v1792 = vsel %vm160, %v1315, -inf
    %v1793 = vrot.slane %v1792, 4
    %v1794 = vmax.f32 %v1792, %v1793
    %v1795 = vrot.slane %v1794, 2
    %v1796 = vmax.f32 %v1794, %v1795
    %v1797 = vrot.slane %v1796, 1
    %v1798 = vmax.f32 %v1796, %v1797
    %v1799 = vsel %vm1420, %v1316, -inf
    %v1800 = vrot.slane %v1799, 4
    %v1801 = vmax.f32 %v1799, %v1800
    %v1802 = vrot.slane %v1801, 2
    %v1803 = vmax.f32 %v1801, %v1802
    %v1804 = vrot.slane %v1803, 1
    %v1805 = vmax.f32 %v1803, %v1804
    %v1806 = vsel %vm160, %v1323, -inf
    %v1807 = vrot.slane %v1806, 4
    %v1808 = vmax.f32 %v1806, %v1807
    %v1809 = vrot.slane %v1808, 2
    %v1810 = vmax.f32 %v1808, %v1809
    %v1811 = vrot.slane %v1810, 1
    %v1812 = vmax.f32 %v1810, %v1811
    %v1813 = vsel %vm1420, %v1324, -inf
    %v1814 = vrot.slane %v1813, 4
    %v1815 = vmax.f32 %v1813, %v1814
    %v1816 = vrot.slane %v1815, 2
    %v1817 = vmax.f32 %v1815, %v1816
    %v1818 = vrot.slane %v1817, 1
    %v1819 = vmax.f32 %v1817, %v1818
    %v1820 = vsel %vm160, %v1331, -inf
    %v1821 = vrot.slane %v1820, 4
    %v1822 = vmax.f32 %v1820, %v1821
    %v1823 = vrot.slane %v1822, 2
    %v1824 = vmax.f32 %v1822, %v1823
    %v1825 = vrot.slane %v1824, 1
    %v1826 = vmax.f32 %v1824, %v1825
    %v1827 = vsel %vm1420, %v1332, -inf
    %v1828 = vrot.slane %v1827, 4
    %v1829 = vmax.f32 %v1827, %v1828
    %v1830 = vrot.slane %v1829, 2
    %v1831 = vmax.f32 %v1829, %v1830
    %v1832 = vrot.slane %v1831, 1
    %v1833 = vmax.f32 %v1831, %v1832
    %v1834 = vsel %vm160, %v1339, -inf
    %v1835 = vrot.slane %v1834, 4
    %v1836 = vmax.f32 %v1834, %v1835
    %v1837 = vrot.slane %v1836, 2
    %v1838 = vmax.f32 %v1836, %v1837
    %v1839 = vrot.slane %v1838, 1
    %v1840 = vmax.f32 %v1838, %v1839
    %v1841 = vsel %vm1420, %v1340, -inf
    %v1842 = vrot.slane %v1841, 4
    %v1843 = vmax.f32 %v1841, %v1842
    %v1844 = vrot.slane %v1843, 2
    %v1845 = vmax.f32 %v1843, %v1844
    %v1846 = vrot.slane %v1845, 1
    %v1847 = vmax.f32 %v1845, %v1846
    %v1848 = vsel %vm160, %v1347, -inf
    %v1849 = vrot.slane %v1848, 4
    %v1850 = vmax.f32 %v1848, %v1849
    %v1851 = vrot.slane %v1850, 2
    %v1852 = vmax.f32 %v1850, %v1851
    %v1853 = vrot.slane %v1852, 1
    %v1854 = vmax.f32 %v1852, %v1853
    %v1855 = vsel %vm1420, %v1348, -inf
    %v1856 = vrot.slane %v1855, 4
    %v1857 = vmax.f32 %v1855, %v1856
    %v1858 = vrot.slane %v1857, 2
    %v1859 = vmax.f32 %v1857, %v1858
    %v1860 = vrot.slane %v1859, 1
    %v1861 = vmax.f32 %v1859, %v1860
    %vm1924 = vcmask 1042434
    %v1925 = vsel %vm1924, %v1434, %v1419
    %vm1926 = vcmask 1043459
    %v1927 = vsel %vm1926, %v1448, %v1925
    %vm1928 = vcmask 1044484
    %v1929 = vsel %vm1928, %v1462, %v1927
    %vm1930 = vcmask 1045509
    %v1931 = vsel %vm1930, %v1476, %v1929
    %vm1932 = vcmask 1046534
    %v1933 = vsel %vm1932, %v1490, %v1931
    %vm1934 = vcmask 1047559
    %v1935 = vsel %vm1934, %v1504, %v1933
    %v1936 = vsel %vm1924, %v1441, %v1427
    %v1937 = vsel %vm1926, %v1455, %v1936
    %v1938 = vsel %vm1928, %v1469, %v1937
    %v1939 = vsel %vm1930, %v1483, %v1938
    %v1940 = vsel %vm1932, %v1497, %v1939
    %v1941 = vsel %vm1934, %v1511, %v1940
    %vm1942 = vcmask 1041409
    %v1943 = vsel %vm1942, %v1532, %v1518
    %v1944 = vsel %vm1924, %v1546, %v1943
    %v1945 = vsel %vm1926, %v1560, %v1944
    %v1946 = vsel %vm1928, %v1574, %v1945
    %v1947 = vsel %vm1930, %v1588, %v1946
    %v1948 = vsel %vm1932, %v1602, %v1947
    %v1949 = vsel %vm1934, %v1616, %v1948
    %v1950 = vsel %vm1942, %v1539, %v1525
    %v1951 = vsel %vm1924, %v1553, %v1950
    %v1952 = vsel %vm1926, %v1567, %v1951
    %v1953 = vsel %vm1928, %v1581, %v1952
    %v1954 = vsel %vm1930, %v1595, %v1953
    %v1955 = vsel %vm1932, %v1609, %v1954
    %v1956 = vsel %vm1934, %v1623, %v1955
    %v1957 = vsel %vm1942, %v1644, %v1630
    %v1958 = vsel %vm1924, %v1658, %v1957
    %v1959 = vsel %vm1926, %v1672, %v1958
    %v1960 = vsel %vm1928, %v1686, %v1959
    %v1961 = vsel %vm1930, %v1700, %v1960
    %v1962 = vsel %vm1932, %v1714, %v1961
    %v1963 = vsel %vm1934, %v1728, %v1962
    %v1964 = vsel %vm1942, %v1651, %v1637
    %v1965 = vsel %vm1924, %v1665, %v1964
    %v1966 = vsel %vm1926, %v1679, %v1965
    %v1967 = vsel %vm1928, %v1693, %v1966
    %v1968 = vsel %vm1930, %v1707, %v1967
    %v1969 = vsel %vm1932, %v1721, %v1968
    %v1970 = vsel %vm1934, %v1735, %v1969
    %v1971 = vsel %vm1942, %v1756, %v1742
    %v1972 = vsel %vm1924, %v1770, %v1971
    %v1973 = vsel %vm1926, %v1784, %v1972
    %v1974 = vsel %vm1928, %v1798, %v1973
    %v1975 = vsel %vm1930, %v1812, %v1974
    %v1976 = vsel %vm1932, %v1826, %v1975
    %v1977 = vsel %vm1934, %v1840, %v1976
    %v1978 = vsel %vm1942, %v1763, %v1749
    %v1979 = vsel %vm1924, %v1777, %v1978
    %v1980 = vsel %vm1926, %v1791, %v1979
    %v1981 = vsel %vm1928, %v1805, %v1980
    %v1982 = vsel %vm1930, %v1819, %v1981
    %v1983 = vsel %vm1932, %v1833, %v1982
    %v1984 = vsel %vm1934, %v1847, %v1983
    %v1993 = vsel %vm229, 0.0, %v1935
    %v1994 = vsel %vm229, 0.0, %v1941
    %vm1995 = vcmp.lt.s32.totalorder %v254, 16
    %vm1996 = vcmp.lt.s32.totalorder %v255, 16
    %vm1997 = vmand %vm258, %vm1995
    %vm1998 = vmand %vm259, %vm1996
    %v1999 = vsel %vm1997, 1, 0
    %v2000 = vsel %vm1998, 1, 0
    %2001 = vset.pattern.permute.xlu0 0
    %2002 = vperm.xlu0 %2001, %v1999
    %v2003 = vpop.permute.xlu0 %2002
    %2004 = vset.pattern.permute.xlu0 0
    %2005 = vperm.xlu0 %2004, %v2000
    %v2006 = vpop.permute.xlu0 %2005
    %vm2007 = vcmp.eq.s32.totalorder %v2003, 1
    %vm2008 = vcmp.eq.s32.totalorder %v2006, 1
    %v2009 = vsel %vm2007, %v1993, 0.0
    %v2010 = vsel %vm2007, %v1994, 0.0
    %v2011 = vsel %vm2008, %v1949, 0.0
    %v2012 = vsel %vm2008, %v1956, 0.0
    %v2013 = vsel %vm2007, %v1963, 0.0
    %v2014 = vsel %vm2007, %v1970, 0.0
    %v2015 = vsel %vm2008, %v1977, 0.0
    %v2016 = vsel %vm2008, %v1984, 0.0
    %v2019 = vsel %vm1942, %v1448, %v1434
    %v2020 = vsel %vm1924, %v1462, %v2019
    %v2021 = vsel %vm1926, %v1476, %v2020
    %v2022 = vsel %vm1928, %v1490, %v2021
    %v2023 = vsel %vm1930, %v1504, %v2022
    %v2024 = vsel %vm1932, %v1518, %v2023
    %v2025 = vsel %vm1934, %v1532, %v2024
    %v2026 = vsel %vm1942, %v1455, %v1441
    %v2027 = vsel %vm1924, %v1469, %v2026
    %v2028 = vsel %vm1926, %v1483, %v2027
    %v2029 = vsel %vm1928, %v1497, %v2028
    %v2030 = vsel %vm1930, %v1511, %v2029
    %v2031 = vsel %vm1932, %v1525, %v2030
    %v2032 = vsel %vm1934, %v1539, %v2031
    %v2033 = vsel %vm1942, %v1560, %v1546
    %v2034 = vsel %vm1924, %v1574, %v2033
    %v2035 = vsel %vm1926, %v1588, %v2034
    %v2036 = vsel %vm1928, %v1602, %v2035
    %v2037 = vsel %vm1930, %v1616, %v2036
    %v2038 = vsel %vm1932, %v1630, %v2037
    %v2039 = vsel %vm1934, %v1644, %v2038
    %v2040 = vsel %vm1942, %v1567, %v1553
    %v2041 = vsel %vm1924, %v1581, %v2040
    %v2042 = vsel %vm1926, %v1595, %v2041
    %v2043 = vsel %vm1928, %v1609, %v2042
    %v2044 = vsel %vm1930, %v1623, %v2043
    %v2045 = vsel %vm1932, %v1637, %v2044
    %v2046 = vsel %vm1934, %v1651, %v2045
    %v2047 = vsel %vm1942, %v1672, %v1658
    %v2048 = vsel %vm1924, %v1686, %v2047
    %v2049 = vsel %vm1926, %v1700, %v2048
    %v2050 = vsel %vm1928, %v1714, %v2049
    %v2051 = vsel %vm1930, %v1728, %v2050
    %v2052 = vsel %vm1932, %v1742, %v2051
    %v2053 = vsel %vm1934, %v1756, %v2052
    %v2054 = vsel %vm1942, %v1679, %v1665
    %v2055 = vsel %vm1924, %v1693, %v2054
    %v2056 = vsel %vm1926, %v1707, %v2055
    %v2057 = vsel %vm1928, %v1721, %v2056
    %v2058 = vsel %vm1930, %v1735, %v2057
    %v2059 = vsel %vm1932, %v1749, %v2058
    %v2060 = vsel %vm1934, %v1763, %v2059
    %v2061 = vsel %vm1942, %v1784, %v1770
    %v2062 = vsel %vm1924, %v1798, %v2061
    %v2063 = vsel %vm1926, %v1812, %v2062
    %v2064 = vsel %vm1928, %v1826, %v2063
    %v2065 = vsel %vm1930, %v1840, %v2064
    %v2066 = vsel %vm1932, %v1854, %v2065
    %v2067 = vsel %vm1942, %v1791, %v1777
    %v2068 = vsel %vm1924, %v1805, %v2067
    %v2069 = vsel %vm1926, %v1819, %v2068
    %v2070 = vsel %vm1928, %v1833, %v2069
    %v2071 = vsel %vm1930, %v1847, %v2070
    %v2072 = vsel %vm1932, %v1861, %v2071
    %v2081 = vsel %vm298, %v2066, 0.0
    %v2082 = vsel %vm298, %v2072, 0.0
    %vm2083 = vcmp.lt.s32.totalorder %v323, 16
    %vm2084 = vcmp.lt.s32.totalorder %v324, 16
    %vm2085 = vmand %vm327, %vm2083
    %vm2086 = vmand %vm328, %vm2084
    %v2087 = vsel %vm2085, 1, 0
    %v2088 = vsel %vm2086, 1, 0
    %2089 = vset.pattern.permute.xlu0 0
    %2090 = vperm.xlu0 %2089, %v2087
    %v2091 = vpop.permute.xlu0 %2090
    %2092 = vset.pattern.permute.xlu0 0
    %2093 = vperm.xlu0 %2092, %v2088
    %v2094 = vpop.permute.xlu0 %2093
    %vm2095 = vcmp.eq.s32.totalorder %v2091, 1
    %vm2096 = vcmp.eq.s32.totalorder %v2094, 1
    %v2097 = vsel %vm2095, %v2025, 0.0
    %v2098 = vsel %vm2095, %v2032, 0.0
    %v2099 = vsel %vm2096, %v2039, 0.0
    %v2100 = vsel %vm2096, %v2046, 0.0
    %v2101 = vsel %vm2095, %v2053, 0.0
    %v2102 = vsel %vm2095, %v2060, 0.0
    %v2103 = vsel %vm2096, %v2081, 0.0
    %v2104 = vsel %vm2096, %v2082, 0.0
    %v2105 = vsel %vm1942, %v1434, %v1419
    %v2106 = vsel %vm1924, %v1448, %v2105
    %v2107 = vsel %vm1926, %v1462, %v2106
    %v2108 = vsel %vm1928, %v1476, %v2107
    %v2109 = vsel %vm1930, %v1490, %v2108
    %v2110 = vsel %vm1932, %v1504, %v2109
    %v2111 = vsel %vm1934, %v1518, %v2110
    %v2112 = vsel %vm1942, %v1441, %v1427
    %v2113 = vsel %vm1924, %v1455, %v2112
    %v2114 = vsel %vm1926, %v1469, %v2113
    %v2115 = vsel %vm1928, %v1483, %v2114
    %v2116 = vsel %vm1930, %v1497, %v2115
    %v2117 = vsel %vm1932, %v1511, %v2116
    %v2118 = vsel %vm1934, %v1525, %v2117
    %v2119 = vsel %vm1942, %v1546, %v1532
    %v2120 = vsel %vm1924, %v1560, %v2119
    %v2121 = vsel %vm1926, %v1574, %v2120
    %v2122 = vsel %vm1928, %v1588, %v2121
    %v2123 = vsel %vm1930, %v1602, %v2122
    %v2124 = vsel %vm1932, %v1616, %v2123
    %v2125 = vsel %vm1934, %v1630, %v2124
    %v2126 = vsel %vm1942, %v1553, %v1539
    %v2127 = vsel %vm1924, %v1567, %v2126
    %v2128 = vsel %vm1926, %v1581, %v2127
    %v2129 = vsel %vm1928, %v1595, %v2128
    %v2130 = vsel %vm1930, %v1609, %v2129
    %v2131 = vsel %vm1932, %v1623, %v2130
    %v2132 = vsel %vm1934, %v1637, %v2131
    %v2133 = vsel %vm1942, %v1658, %v1644
    %v2134 = vsel %vm1924, %v1672, %v2133
    %v2135 = vsel %vm1926, %v1686, %v2134
    %v2136 = vsel %vm1928, %v1700, %v2135
    %v2137 = vsel %vm1930, %v1714, %v2136
    %v2138 = vsel %vm1932, %v1728, %v2137
    %v2139 = vsel %vm1934, %v1742, %v2138
    %v2140 = vsel %vm1942, %v1665, %v1651
    %v2141 = vsel %vm1924, %v1679, %v2140
    %v2142 = vsel %vm1926, %v1693, %v2141
    %v2143 = vsel %vm1928, %v1707, %v2142
    %v2144 = vsel %vm1930, %v1721, %v2143
    %v2145 = vsel %vm1932, %v1735, %v2144
    %v2146 = vsel %vm1934, %v1749, %v2145
    %v2147 = vsel %vm1942, %v1770, %v1756
    %v2148 = vsel %vm1924, %v1784, %v2147
    %v2149 = vsel %vm1926, %v1798, %v2148
    %v2150 = vsel %vm1928, %v1812, %v2149
    %v2151 = vsel %vm1930, %v1826, %v2150
    %v2152 = vsel %vm1932, %v1840, %v2151
    %v2153 = vsel %vm1934, %v1854, %v2152
    %v2154 = vsel %vm1942, %v1777, %v1763
    %v2155 = vsel %vm1924, %v1791, %v2154
    %v2156 = vsel %vm1926, %v1805, %v2155
    %v2157 = vsel %vm1928, %v1819, %v2156
    %v2158 = vsel %vm1930, %v1833, %v2157
    %v2159 = vsel %vm1932, %v1847, %v2158
    %v2160 = vsel %vm1934, %v1861, %v2159
    %2161 = vrot.lane.b32.xlu0 %v2111, 118
    %v2162 = vpop.permute.xlu0 %2161
    %2163 = vrot.lane.b32.xlu0 %v2118, 118
    %v2164 = vpop.permute.xlu0 %2163
    %2165 = vrot.lane.b32.xlu0 %v2125, 118
    %v2166 = vpop.permute.xlu0 %2165
    %2167 = vrot.lane.b32.xlu0 %v2132, 118
    %v2168 = vpop.permute.xlu0 %2167
    %2169 = vrot.lane.b32.xlu0 %v2139, 118
    %v2170 = vpop.permute.xlu0 %2169
    %2171 = vrot.lane.b32.xlu0 %v2146, 118
    %v2172 = vpop.permute.xlu0 %2171
    %2173 = vrot.lane.b32.xlu0 %v2153, 118
    %v2174 = vpop.permute.xlu0 %2173
    %2175 = vrot.lane.b32.xlu0 %v2160, 118
    %v2176 = vpop.permute.xlu0 %2175
    %vm2177 = vcmask 965632
    %v2178 = vsel %vm2177, %v2162, %v2164
    %v2179 = vsel %vm2177, %v2166, %v2168
    %v2180 = vsel %vm2177, %v2170, %v2172
    %v2181 = vsel %vm2177, %v2174, %v2176
    %2202 = vrot.lane.b32.xlu0 %v2097, 108
    %v2203 = vpop.permute.xlu0 %2202
    %2204 = vrot.lane.b32.xlu0 %v2098, 108
    %v2205 = vpop.permute.xlu0 %2204
    %2206 = vrot.lane.b32.xlu0 %v2099, 108
    %v2207 = vpop.permute.xlu0 %2206
    %2208 = vrot.lane.b32.xlu0 %v2100, 108
    %v2209 = vpop.permute.xlu0 %2208
    %2210 = vrot.lane.b32.xlu0 %v2101, 108
    %v2211 = vpop.permute.xlu0 %2210
    %2212 = vrot.lane.b32.xlu0 %v2102, 108
    %v2213 = vpop.permute.xlu0 %2212
    %2214 = vrot.lane.b32.xlu0 %v2103, 108
    %v2215 = vpop.permute.xlu0 %2214
    %2216 = vrot.lane.b32.xlu0 %v2104, 108
    %v2217 = vpop.permute.xlu0 %2216
    %vm2218 = vcmask 883712
    %v2219 = vsel %vm2218, %v2203, %v2205
    %v2220 = vsel %vm2218, %v2207, %v2209
    %v2221 = vsel %vm2218, %v2211, %v2213
    %v2222 = vsel %vm2218, %v2215, %v2217
    %v2235 = vsel %vm2177, %v2010, %v2162
    %v2236 = vsel %vm2177, %v2012, %v2166
    %v2237 = vsel %vm2177, %v2014, %v2170
    %v2238 = vsel %vm2177, %v2016, %v2174
    %v2239 = vsel %vm2218, %v2164, %v2203
    %v2240 = vsel %vm2218, %v2168, %v2207
    %v2241 = vsel %vm2218, %v2172, %v2211
    %v2242 = vsel %vm2218, %v2176, %v2215
    %v2243 = vpack.c.bf16 %v2011, %v2009
    %v2244 = vpack.c.bf16 %v2236, %v2235
    %v2245 = vpack.c.bf16 %v2179, %v2178
    %v2246 = vpack.c.bf16 %v2240, %v2239
    %v2247 = vpack.c.bf16 %v2220, %v2219
    %v2248 = vpack.c.bf16 %v2209, %v2205
    %v2249 = vpack.c.bf16 %v2015, %v2013
    %v2250 = vpack.c.bf16 %v2238, %v2237
    %v2251 = vpack.c.bf16 %v2181, %v2180
    %v2252 = vpack.c.bf16 %v2242, %v2241
    %v2253 = vpack.c.bf16 %v2222, %v2221
    %v2254 = vpack.c.bf16 %v2217, %v2213
    %v2255 = vld [vmem:[%s4] sm:$0xf]
    %v2256 = vld [vmem:[%s4 + $0x4] sm:$0xf]
    %v2257 = vld [vmem:[%s4 + $0x8] sm:$0xf]
    %v2258 = vld [vmem:[%s4 + $0xc] sm:$0xf]
    %v2259 = vld [vmem:[%s4 + $0x10] sm:$0xf]
    %v2260 = vld [vmem:[%s4 + $0x14] sm:$0xf]
    %v2261 = vld [vmem:[%s4 + $0x18] sm:$0xf]
    %v2262 = vld [vmem:[%s4 + $0x1c] sm:$0xf]
    %v2263 = vld [vmem:[%s4 + $0x20] sm:$0xf]
    %v2264 = vld [vmem:[%s4 + $0x24] sm:$0xf]
    %v2265 = vld [vmem:[%s4 + $0x28] sm:$0xf]
    %v2266 = vld [vmem:[%s4 + $0x2c] sm:$0xf]
    %v2267 = vld [vmem:[%s4 + $0x30] sm:$0xf]
    %v2268 = vld [vmem:[%s4 + $0x34] sm:$0xf]
    %v2269 = vld [vmem:[%s4 + $0x38] sm:$0xf]
    %v2270 = vld [vmem:[%s4 + $0x3c] sm:$0xf]
    %v2271 = vld [vmem:[%s4 + $0x40] sm:$0xf]
    %v2272 = vld [vmem:[%s4 + $0x44] sm:$0xf]
    %v2273 = vld [vmem:[%s4 + $0x48] sm:$0xf]
    %v2274 = vld [vmem:[%s4 + $0x4c] sm:$0xf]
    %v2275 = vld [vmem:[%s4 + $0x50] sm:$0xf]
    %v2276 = vld [vmem:[%s4 + $0x54] sm:$0xf]
    %v2277 = vld [vmem:[%s4 + $0x58] sm:$0xf]
    %v2278 = vld [vmem:[%s4 + $0x5c] sm:$0xf]
    %v2279 = vld [vmem:[%s4 + $0x60] sm:$0xf]
    %v2280 = vld [vmem:[%s4 + $0x64] sm:$0xf]
    %v2281 = vld [vmem:[%s4 + $0x68] sm:$0xf]
    %v2282 = vld [vmem:[%s4 + $0x6c] sm:$0xf]
    %v2283 = vld [vmem:[%s4 + $0x70] sm:$0xf]
    %v2284 = vld [vmem:[%s4 + $0x74] sm:$0xf]
    %v2285 = vld [vmem:[%s4 + $0x78] sm:$0xf]
    %v2286 = vld [vmem:[%s4 + $0x7c] sm:$0xf]
    %v2287 = vld [vmem:[%s4 + $0x80] sm:$0xf]
    %v2288 = vld [vmem:[%s4 + $0x84] sm:$0xf]
    %v2289 = vld [vmem:[%s4 + $0x88] sm:$0xf]
    %v2290 = vld [vmem:[%s4 + $0x8c] sm:$0xf]
    %v2291 = vld [vmem:[%s4 + $0x90] sm:$0xf]
    %v2292 = vld [vmem:[%s4 + $0x94] sm:$0xf]
    %v2293 = vld [vmem:[%s4 + $0x98] sm:$0xf]
    %v2294 = vld [vmem:[%s4 + $0x9c] sm:$0xf]
    %v2295 = vld [vmem:[%s4 + $0xa0] sm:$0xf]
    %v2296 = vld [vmem:[%s4 + $0xa4] sm:$0xf]
    %v2297 = vld [vmem:[%s4 + $0xa8] sm:$0xf]
    %v2298 = vld [vmem:[%s4 + $0xac] sm:$0xf]
    %v2299 = vld [vmem:[%s4 + $0xb0] sm:$0xf]
    %v2300 = vld [vmem:[%s4 + $0xb4] sm:$0xf]
    %v2301 = vld [vmem:[%s4 + $0xb8] sm:$0xf]
    %v2302 = vld [vmem:[%s4 + $0xbc] sm:$0xf]
    %v2303 = vld [vmem:[%s4 + $0xc0] sm:$0xf]
    %v2304 = vld [vmem:[%s4 + $0xc4] sm:$0xf]
    %v2305 = vld [vmem:[%s4 + $0xc8] sm:$0xf]
    %v2306 = vld [vmem:[%s4 + $0xcc] sm:$0xf]
    %v2307 = vld [vmem:[%s4 + $0xd0] sm:$0xf]
    %v2308 = vld [vmem:[%s4 + $0xd4] sm:$0xf]
    %v2309 = vld [vmem:[%s4 + $0xd8] sm:$0xf]
    %v2310 = vld [vmem:[%s4 + $0xdc] sm:$0xf]
    %v2311 = vld [vmem:[%s4 + $0xe0] sm:$0xf]
    %v2312 = vld [vmem:[%s4 + $0xe4] sm:$0xf]
    %v2313 = vld [vmem:[%s4 + $0xe8] sm:$0xf]
    %v2314 = vld [vmem:[%s4 + $0xec] sm:$0xf]
    %v2315 = vld [vmem:[%s4 + $0xf0] sm:$0xf]
    %v2316 = vld [vmem:[%s4 + $0xf4] sm:$0xf]
    %v2317 = vld [vmem:[%s4 + $0xf8] sm:$0xf]
    %v2318 = vld [vmem:[%s4 + $0xfc] sm:$0xf]
    %v2319 = vld [vmem:[%s4 + $0x100] sm:$0xf]
    %v2320 = vld [vmem:[%s4 + $0x104] sm:$0xf]
    %v2321 = vld [vmem:[%s4 + $0x108] sm:$0xf]
    %v2322 = vld [vmem:[%s4 + $0x10c] sm:$0xf]
    %v2323 = vld [vmem:[%s4 + $0x110] sm:$0xf]
    %v2324 = vld [vmem:[%s4 + $0x114] sm:$0xf]
    %v2325 = vld [vmem:[%s4 + $0x118] sm:$0xf]
    %v2326 = vld [vmem:[%s4 + $0x11c] sm:$0xf]
    %v2327 = vld [vmem:[%s4 + $0x120] sm:$0xf]
    %v2328 = vld [vmem:[%s4 + $0x124] sm:$0xf]
    %v2329 = vld [vmem:[%s4 + $0x128] sm:$0xf]
    %v2330 = vld [vmem:[%s4 + $0x12c] sm:$0xf]
    %v2331 = vld [vmem:[%s4 + $0x130] sm:$0xf]
    %v2332 = vld [vmem:[%s4 + $0x134] sm:$0xf]
    %v2333 = vld [vmem:[%s4 + $0x138] sm:$0xf]
    %v2334 = vld [vmem:[%s4 + $0x13c] sm:$0xf]
    %v2335 = vld [vmem:[%s4 + $0x140] sm:$0xf]
    %v2336 = vld [vmem:[%s4 + $0x144] sm:$0xf]
    %v2337 = vld [vmem:[%s4 + $0x148] sm:$0xf]
    %v2338 = vld [vmem:[%s4 + $0x14c] sm:$0xf]
    %v2339 = vld [vmem:[%s4 + $0x150] sm:$0xf]
    %v2340 = vld [vmem:[%s4 + $0x154] sm:$0xf]
    %v2341 = vld [vmem:[%s4 + $0x158] sm:$0xf]
    %v2342 = vld [vmem:[%s4 + $0x15c] sm:$0xf]
    %v2343 = vld [vmem:[%s4 + $0x160] sm:$0xf]
    %v2344 = vld [vmem:[%s4 + $0x164] sm:$0xf]
    %v2345 = vld [vmem:[%s4 + $0x168] sm:$0xf]
    %v2346 = vld [vmem:[%s4 + $0x16c] sm:$0xf]
    %v2347 = vld [vmem:[%s4 + $0x170] sm:$0x1]
    %v2441 = vunpack.c.l.b16 %v2255
    %v2442 = vunpack.c.l.b16 %v2256
    %v2443 = vunpack.c.l.b16 %v2257
    %v2444 = vunpack.c.l.b16 %v2258
    %v2445 = vunpack.c.l.b16 %v2259
    %v2446 = vunpack.c.l.b16 %v2260
    %v2447 = vunpack.c.l.b16 %v2261
    %v2448 = vunpack.c.l.b16 %v2262
    %v2449 = vunpack.c.l.b16 %v2263
    %v2450 = vunpack.c.l.b16 %v2264
    %v2451 = vunpack.c.l.b16 %v2265
    %v2452 = vunpack.c.l.b16 %v2266
    %v2453 = vunpack.c.l.b16 %v2267
    %v2454 = vunpack.c.l.b16 %v2268
    %v2455 = vunpack.c.l.b16 %v2269
    %v2456 = vunpack.c.l.b16 %v2270
    %v2457 = vunpack.c.l.b16 %v2271
    %v2458 = vunpack.c.l.b16 %v2272
    %v2459 = vunpack.c.l.b16 %v2273
    %v2460 = vunpack.c.l.b16 %v2274
    %v2461 = vunpack.c.l.b16 %v2275
    %v2462 = vunpack.c.l.b16 %v2276
    %v2463 = vunpack.c.l.b16 %v2277
    %v2464 = vunpack.c.l.b16 %v2278
    %v2465 = vunpack.c.l.b16 %v2279
    %v2466 = vunpack.c.l.b16 %v2280
    %v2467 = vunpack.c.l.b16 %v2281
    %v2468 = vunpack.c.l.b16 %v2282
    %v2469 = vunpack.c.l.b16 %v2283
    %v2470 = vunpack.c.l.b16 %v2284
    %v2471 = vunpack.c.l.b16 %v2285
    %v2472 = vunpack.c.l.b16 %v2286
    %v2473 = vunpack.c.l.b16 %v2287
    %v2474 = vunpack.c.l.b16 %v2288
    %v2475 = vunpack.c.l.b16 %v2289
    %v2476 = vunpack.c.l.b16 %v2290
    %v2477 = vunpack.c.l.b16 %v2291
    %v2478 = vunpack.c.l.b16 %v2292
    %v2479 = vunpack.c.l.b16 %v2293
    %v2480 = vunpack.c.l.b16 %v2294
    %v2481 = vunpack.c.l.b16 %v2295
    %v2482 = vunpack.c.l.b16 %v2296
    %v2483 = vunpack.c.l.b16 %v2297
    %v2484 = vunpack.c.l.b16 %v2298
    %v2485 = vunpack.c.l.b16 %v2299
    %v2486 = vunpack.c.l.b16 %v2300
    %v2487 = vunpack.c.l.b16 %v2301
    %v2488 = vunpack.c.l.b16 %v2302
    %v2489 = vunpack.c.l.b16 %v2303
    %v2490 = vunpack.c.l.b16 %v2304
    %v2491 = vunpack.c.l.b16 %v2305
    %v2492 = vunpack.c.l.b16 %v2306
    %v2493 = vunpack.c.l.b16 %v2307
    %v2494 = vunpack.c.l.b16 %v2308
    %v2495 = vunpack.c.l.b16 %v2309
    %v2496 = vunpack.c.l.b16 %v2310
    %v2497 = vunpack.c.l.b16 %v2311
    %v2498 = vunpack.c.l.b16 %v2312
    %v2499 = vunpack.c.l.b16 %v2313
    %v2500 = vunpack.c.l.b16 %v2314
    %v2501 = vunpack.c.l.b16 %v2315
    %v2502 = vunpack.c.l.b16 %v2316
    %v2503 = vunpack.c.l.b16 %v2317
    %v2504 = vunpack.c.l.b16 %v2318
    %v2505 = vunpack.c.l.b16 %v2319
    %v2506 = vunpack.c.l.b16 %v2320
    %v2507 = vunpack.c.l.b16 %v2321
    %v2508 = vunpack.c.l.b16 %v2322
    %v2509 = vunpack.c.l.b16 %v2323
    %v2510 = vunpack.c.l.b16 %v2324
    %v2511 = vunpack.c.l.b16 %v2325
    %v2512 = vunpack.c.l.b16 %v2326
    %v2513 = vunpack.c.l.b16 %v2327
    %v2514 = vunpack.c.l.b16 %v2328
    %v2515 = vunpack.c.l.b16 %v2329
    %v2516 = vunpack.c.l.b16 %v2330
    %v2517 = vunpack.c.l.b16 %v2331
    %v2518 = vunpack.c.l.b16 %v2332
    %v2519 = vunpack.c.l.b16 %v2333
    %v2520 = vunpack.c.l.b16 %v2334
    %v2521 = vunpack.c.l.b16 %v2335
    %v2522 = vunpack.c.l.b16 %v2336
    %v2523 = vunpack.c.l.b16 %v2337
    %v2524 = vunpack.c.l.b16 %v2338
    %v2525 = vunpack.c.l.b16 %v2339
    %v2526 = vunpack.c.l.b16 %v2340
    %v2527 = vunpack.c.l.b16 %v2341
    %v2528 = vunpack.c.l.b16 %v2342
    %v2529 = vunpack.c.l.b16 %v2343
    %v2530 = vunpack.c.l.b16 %v2344
    %v2531 = vunpack.c.l.b16 %v2345
    %v2532 = vunpack.c.l.b16 %v2346
    %v2533 = vunpack.c.l.b16 %v2347
    %v2534 = vpack.c.b16 %v2442, %v2441
    %v2535 = vpack.c.b16 %v2444, %v2443
    %v2536 = vpack.c.b16 %v2446, %v2445
    %v2537 = vpack.c.b16 %v2448, %v2447
    %v2538 = vpack.c.b16 %v2450, %v2449
    %v2539 = vpack.c.b16 %v2452, %v2451
    %v2540 = vpack.c.b16 %v2454, %v2453
    %v2541 = vpack.c.b16 %v2456, %v2455
    %v2542 = vpack.c.b16 %v2458, %v2457
    %v2543 = vpack.c.b16 %v2460, %v2459
    %v2544 = vpack.c.b16 %v2462, %v2461
    %v2545 = vpack.c.b16 %v2464, %v2463
    %v2546 = vpack.c.b16 %v2466, %v2465
    %v2547 = vpack.c.b16 %v2468, %v2467
    %v2548 = vpack.c.b16 %v2470, %v2469
    %v2549 = vpack.c.b16 %v2472, %v2471
    %v2550 = vpack.c.b16 %v2474, %v2473
    %v2551 = vpack.c.b16 %v2476, %v2475
    %v2552 = vpack.c.b16 %v2478, %v2477
    %v2553 = vpack.c.b16 %v2480, %v2479
    %v2554 = vpack.c.b16 %v2482, %v2481
    %v2555 = vpack.c.b16 %v2484, %v2483
    %v2556 = vpack.c.b16 %v2486, %v2485
    %v2557 = vpack.c.b16 %v2488, %v2487
    %v2558 = vpack.c.b16 %v2490, %v2489
    %v2559 = vpack.c.b16 %v2492, %v2491
    %v2560 = vpack.c.b16 %v2494, %v2493
    %v2561 = vpack.c.b16 %v2496, %v2495
    %v2562 = vpack.c.b16 %v2498, %v2497
    %v2563 = vpack.c.b16 %v2500, %v2499
    %v2564 = vpack.c.b16 %v2502, %v2501
    %v2565 = vpack.c.b16 %v2504, %v2503
    %v2566 = vpack.c.b16 %v2506, %v2505
    %v2567 = vpack.c.b16 %v2508, %v2507
    %v2568 = vpack.c.b16 %v2510, %v2509
    %v2569 = vpack.c.b16 %v2512, %v2511
    %v2570 = vpack.c.b16 %v2514, %v2513
    %v2571 = vpack.c.b16 %v2516, %v2515
    %v2572 = vpack.c.b16 %v2518, %v2517
    %v2573 = vpack.c.b16 %v2520, %v2519
    %v2574 = vpack.c.b16 %v2522, %v2521
    %v2575 = vpack.c.b16 %v2524, %v2523
    %v2576 = vpack.c.b16 %v2526, %v2525
    %v2577 = vpack.c.b16 %v2528, %v2527
    %v2578 = vpack.c.b16 %v2530, %v2529
    %v2579 = vpack.c.b16 %v2532, %v2531
    %v2580 = vpack.c.b16 %v2533, %v2533
    %vm2627 = vcmask 801792
    %v2629 = vsel %vm2627, %v2248, 0
    %v2632 = vsel %vm2627, %v2254, 0
    %v2635 = vsel %vm229, %v2580, 0
    %2637 = vmatprep.subr.bf16.mxu0 0
    %2638 = vmatpush1.bf16.msra.mxu0 %v2541
    %2639 = vmatprep.subr.bf16.mxu0 0
    %2640 = vmatpush1.bf16.msra.mxu0 %v2540
    %2641 = vmatprep.subr.bf16.mxu0 0
    %2642 = vmatpush1.bf16.msra.mxu0 %v2539
    %2643 = vmatprep.subr.bf16.mxu0 0
    %2644 = vmatpush1.bf16.msra.mxu0 %v2538
    %2645 = vmatprep.subr.bf16.mxu0 0
    %2646 = vmatpush1.bf16.msra.mxu0 %v2537
    %2647 = vmatprep.subr.bf16.mxu0 0
    %2648 = vmatpush1.bf16.msra.mxu0 %v2536
    %2649 = vmatprep.subr.bf16.mxu0 0
    %2650 = vmatpush1.bf16.msra.mxu0 %v2535
    %2651 = vmatprep.subr.bf16.mxu0 0
    %2652 = vmatpush1.bf16.msra.mxu0 %v2534
    %2653 = vmatprep.subr.bf16.mxu0 0
    %2654 = vmatpush2.bf16.msra.mxu0 %v2549
    %2655 = vmatprep.subr.bf16.mxu0 0
    %2656 = vmatpush2.bf16.msra.mxu0 %v2548
    %2657 = vmatprep.subr.bf16.mxu0 0
    %2658 = vmatpush2.bf16.msra.mxu0 %v2547
    %2659 = vmatprep.subr.bf16.mxu0 0
    %2660 = vmatpush2.bf16.msra.mxu0 %v2546
    %2661 = vmatprep.subr.bf16.mxu0 0
    %2662 = vmatpush2.bf16.msra.mxu0 %v2545
    %2663 = vmatprep.subr.bf16.mxu0 0
    %2664 = vmatpush2.bf16.msra.mxu0 %v2544
    %2665 = vmatprep.subr.bf16.mxu0 0
    %2666 = vmatpush2.bf16.msra.mxu0 %v2543
    %2667 = vmatprep.subr.bf16.mxu0 0
    %2668 = vmatpush2.bf16.msra.mxu0 %v2542
    %2669 = vmatprep.mubr.bf16.mxu0 %v2244
    %2670 = vmatmul.mubr.bf16.gmra.mxu0 %v2243
    %v2671 = vpop.f32.mrf.mxu0
    %v2672 = vadd.f32 0.0, %v2671
    %v2673 = vpop.f32.mrf.mxu0
    %v2674 = vpop.f32.mrf.mxu0
    %v2675 = vadd.f32 0.0, %v2674
    %v2676 = vpop.f32.mrf.mxu0
    %2677 = vmatprep.mubr.bf16.mxu0 %v2250
    %2678 = vmatmul.mubr.bf16.gmra.mxu0 %v2249
    %v2679 = vpop.f32.mrf.mxu0
    %v2680 = vadd.f32 0.0, %v2679
    %v2681 = vpop.f32.mrf.mxu0
    %v2682 = vpop.f32.mrf.mxu0
    %v2683 = vadd.f32 0.0, %v2682
    %v2684 = vpop.f32.mrf.mxu0
    %2685 = vdwg.mxu0
    %2686 = vmatprep.subr.bf16.mxu0 0
    %2687 = vmatpush1.bf16.msra.mxu0 %v2557
    %2688 = vmatprep.subr.bf16.mxu0 0
    %2689 = vmatpush1.bf16.msra.mxu0 %v2556
    %2690 = vmatprep.subr.bf16.mxu0 0
    %2691 = vmatpush1.bf16.msra.mxu0 %v2555
    %2692 = vmatprep.subr.bf16.mxu0 0
    %2693 = vmatpush1.bf16.msra.mxu0 %v2554
    %2694 = vmatprep.subr.bf16.mxu0 0
    %2695 = vmatpush1.bf16.msra.mxu0 %v2553
    %2696 = vmatprep.subr.bf16.mxu0 0
    %2697 = vmatpush1.bf16.msra.mxu0 %v2552
    %2698 = vmatprep.subr.bf16.mxu0 0
    %2699 = vmatpush1.bf16.msra.mxu0 %v2551
    %2700 = vmatprep.subr.bf16.mxu0 0
    %2701 = vmatpush1.bf16.msra.mxu0 %v2550
    %2702 = vmatprep.subr.bf16.mxu0 0
    %2703 = vmatpush2.bf16.msra.mxu0 %v2565
    %2704 = vmatprep.subr.bf16.mxu0 0
    %2705 = vmatpush2.bf16.msra.mxu0 %v2564
    %2706 = vmatprep.subr.bf16.mxu0 0
    %2707 = vmatpush2.bf16.msra.mxu0 %v2563
    %2708 = vmatprep.subr.bf16.mxu0 0
    %2709 = vmatpush2.bf16.msra.mxu0 %v2562
    %2710 = vmatprep.subr.bf16.mxu0 0
    %2711 = vmatpush2.bf16.msra.mxu0 %v2561
    %2712 = vmatprep.subr.bf16.mxu0 0
    %2713 = vmatpush2.bf16.msra.mxu0 %v2560
    %2714 = vmatprep.subr.bf16.mxu0 0
    %2715 = vmatpush2.bf16.msra.mxu0 %v2559
    %2716 = vmatprep.subr.bf16.mxu0 0
    %2717 = vmatpush2.bf16.msra.mxu0 %v2558
    %2718 = vmatprep.mubr.bf16.mxu0 %v2246
    %2719 = vmatmul.mubr.bf16.gmra.mxu0 %v2245
    %v2720 = vpop.f32.mrf.mxu0
    %v2721 = vadd.f32 %v2672, %v2720
    %v2722 = vpop.f32.mrf.mxu0
    %v2723 = vpop.f32.mrf.mxu0
    %v2724 = vadd.f32 %v2675, %v2723
    %v2725 = vpop.f32.mrf.mxu0
    %2726 = vmatprep.mubr.bf16.mxu0 %v2252
    %2727 = vmatmul.mubr.bf16.gmra.mxu0 %v2251
    %v2728 = vpop.f32.mrf.mxu0
    %v2729 = vadd.f32 %v2680, %v2728
    %v2730 = vpop.f32.mrf.mxu0
    %v2731 = vpop.f32.mrf.mxu0
    %v2732 = vadd.f32 %v2683, %v2731
    %v2733 = vpop.f32.mrf.mxu0
    %2734 = vdwg.mxu0
    %2735 = vmatprep.subr.bf16.mxu0 0
    %2736 = vmatpush1.bf16.msra.mxu0 %v2573
    %2737 = vmatprep.subr.bf16.mxu0 0
    %2738 = vmatpush1.bf16.msra.mxu0 %v2572
    %2739 = vmatprep.subr.bf16.mxu0 0
    %2740 = vmatpush1.bf16.msra.mxu0 %v2571
    %2741 = vmatprep.subr.bf16.mxu0 0
    %2742 = vmatpush1.bf16.msra.mxu0 %v2570
    %2743 = vmatprep.subr.bf16.mxu0 0
    %2744 = vmatpush1.bf16.msra.mxu0 %v2569
    %2745 = vmatprep.subr.bf16.mxu0 0
    %2746 = vmatpush1.bf16.msra.mxu0 %v2568
    %2747 = vmatprep.subr.bf16.mxu0 0
    %2748 = vmatpush1.bf16.msra.mxu0 %v2567
    %2749 = vmatprep.subr.bf16.mxu0 0
    %2750 = vmatpush1.bf16.msra.mxu0 %v2566
    %2751 = vmatprep.subr.bf16.mxu0 0
    %2752 = vmatpush2.bf16.msra.mxu0 0
    %2753 = vmatprep.subr.bf16.mxu0 0
    %2754 = vmatpush2.bf16.msra.mxu0 %v2635
    %2755 = vmatprep.subr.bf16.mxu0 0
    %2756 = vmatpush2.bf16.msra.mxu0 %v2579
    %2757 = vmatprep.subr.bf16.mxu0 0
    %2758 = vmatpush2.bf16.msra.mxu0 %v2578
    %2759 = vmatprep.subr.bf16.mxu0 0
    %2760 = vmatpush2.bf16.msra.mxu0 %v2577
    %2761 = vmatprep.subr.bf16.mxu0 0
    %2762 = vmatpush2.bf16.msra.mxu0 %v2576
    %2763 = vmatprep.subr.bf16.mxu0 0
    %2764 = vmatpush2.bf16.msra.mxu0 %v2575
    %2765 = vmatprep.subr.bf16.mxu0 0
    %2766 = vmatpush2.bf16.msra.mxu0 %v2574
    %2767 = vmatprep.mubr.bf16.mxu0 %v2629
    %2768 = vmatmul.mubr.bf16.gmra.mxu0 %v2247
    %v2769 = vpop.f32.mrf.mxu0
    %v2770 = vadd.f32 %v2721, %v2769
    %v2771 = vpop.f32.mrf.mxu0
    %v2772 = vpop.f32.mrf.mxu0
    %v2773 = vadd.f32 %v2724, %v2772
    %v2774 = vpop.f32.mrf.mxu0
    %2775 = vmatprep.mubr.bf16.mxu0 %v2632
    %2776 = vmatmul.mubr.bf16.gmra.mxu0 %v2253
    %v2777 = vpop.f32.mrf.mxu0
    %v2778 = vadd.f32 %v2729, %v2777
    %v2779 = vpop.f32.mrf.mxu0
    %v2780 = vpop.f32.mrf.mxu0
    %v2781 = vadd.f32 %v2732, %v2780
    %v2782 = vpop.f32.mrf.mxu0
    %2783 = vdwg.mxu0
    %v2784 = vld [vmem:[%s5] sm:$0x1]
    %v2786 = vlaneseq
    %v2787 = vshrl.u32 %v2786, 7
    %v2788 = vsub.s32 0, %v2787
    %v2789 = vrot.slane %v2784, %v2788
    %v2791 = vmul.f32 %v2770, %v2789
    %v2792 = vmul.f32 %v2773, %v2789
    %v2793 = vmul.f32 %v2778, %v2789
    %v2794 = vmul.f32 %v2781, %v2789
    %v2795 = vld [vmem:[%s6] sm:$0x1]
    %v2797 = vlaneseq
    %v2798 = vshrl.u32 %v2797, 7
    %v2799 = vsub.s32 0, %v2798
    %v2800 = vrot.slane %v2795, %v2799
    %v2802 = vadd.f32 %v2791, %v2800
    %v2803 = vadd.f32 %v2792, %v2800
    %v2804 = vadd.f32 %v2793, %v2800
    %v2805 = vadd.f32 %v2794, %v2800
    %v2806 = vmax.f32 %v2802, 0.0
    %v2807 = vmax.f32 %v2803, 0.0
    %v2808 = vmax.f32 %v2804, 0.0
    %v2809 = vmax.f32 %v2805, 0.0
    %v2814 = vcombine.high %v2806, %v2806
    %v2816 = vunpack.c.l.s4 1983009808
    %v2817 = vunpack.c.0.s8 %v2816
    %v2818 = vlaneseq
    %v2819 = vshrl.u32 %v2818, 7
    %v2820 = vsub.s32 %v2817, %v2819
    %v2821 = vrot.slane %v2806, %v2820
    %v2823 = vunpack.c.l.s4 1983009808
    %v2824 = vunpack.c.0.s8 %v2823
    %v2825 = vlaneseq
    %v2826 = vshrl.u32 %v2825, 7
    %v2827 = vsub.s32 %v2824, %v2826
    %v2828 = vrot.slane %v2814, %v2827
    %v2829 = vcombine.high %v2821, %v2821
    %v2830 = vcombine.high %v2828, %v2828
    %v2831 = vcombine.high %v2807, %v2807
    %v2833 = vunpack.c.l.s4 1983009808
    %v2834 = vunpack.c.0.s8 %v2833
    %v2835 = vlaneseq
    %v2836 = vshrl.u32 %v2835, 7
    %v2837 = vsub.s32 %v2834, %v2836
    %v2838 = vrot.slane %v2807, %v2837
    %v2840 = vunpack.c.l.s4 1983009808
    %v2841 = vunpack.c.0.s8 %v2840
    %v2842 = vlaneseq
    %v2843 = vshrl.u32 %v2842, 7
    %v2844 = vsub.s32 %v2841, %v2843
    %v2845 = vrot.slane %v2831, %v2844
    %v2846 = vcombine.high %v2838, %v2838
    %v2847 = vcombine.high %v2845, %v2845
    %v2848 = vcombine.high %v2808, %v2808
    %v2850 = vunpack.c.l.s4 1983009808
    %v2851 = vunpack.c.0.s8 %v2850
    %v2852 = vlaneseq
    %v2853 = vshrl.u32 %v2852, 7
    %v2854 = vsub.s32 %v2851, %v2853
    %v2855 = vrot.slane %v2808, %v2854
    %v2857 = vunpack.c.l.s4 1983009808
    %v2858 = vunpack.c.0.s8 %v2857
    %v2859 = vlaneseq
    %v2860 = vshrl.u32 %v2859, 7
    %v2861 = vsub.s32 %v2858, %v2860
    %v2862 = vrot.slane %v2848, %v2861
    %v2863 = vcombine.high %v2855, %v2855
    %v2864 = vcombine.high %v2862, %v2862
    %v2865 = vcombine.high %v2809, %v2809
    %v2867 = vunpack.c.l.s4 1983009808
    %v2868 = vunpack.c.0.s8 %v2867
    %v2869 = vlaneseq
    %v2870 = vshrl.u32 %v2869, 7
    %v2871 = vsub.s32 %v2868, %v2870
    %v2872 = vrot.slane %v2809, %v2871
    %v2874 = vunpack.c.l.s4 1983009808
    %v2875 = vunpack.c.0.s8 %v2874
    %v2876 = vlaneseq
    %v2877 = vshrl.u32 %v2876, 7
    %v2878 = vsub.s32 %v2875, %v2877
    %v2879 = vrot.slane %v2865, %v2878
    %v2880 = vcombine.high %v2872, %v2872
    %v2881 = vcombine.high %v2879, %v2879
    %vm2898 = vcmask 484352
    %v2899 = vsel %vm2898, %v2821, -inf
    %v2900 = vrot.slane %v2899, 4
    %v2901 = vmax.f32 %v2899, %v2900
    %v2902 = vrot.slane %v2901, 2
    %v2903 = vmax.f32 %v2901, %v2902
    %v2904 = vrot.slane %v2903, 1
    %v2905 = vmax.f32 %v2903, %v2904
    %v2906 = vsel %vm2898, %v2829, -inf
    %v2907 = vrot.slane %v2906, 4
    %v2908 = vmax.f32 %v2906, %v2907
    %v2909 = vrot.slane %v2908, 2
    %v2910 = vmax.f32 %v2908, %v2909
    %v2911 = vrot.slane %v2910, 1
    %v2912 = vmax.f32 %v2910, %v2911
    %v2913 = vsel %vm2898, %v2828, -inf
    %v2914 = vrot.slane %v2913, 4
    %v2915 = vmax.f32 %v2913, %v2914
    %v2916 = vrot.slane %v2915, 2
    %v2917 = vmax.f32 %v2915, %v2916
    %v2918 = vrot.slane %v2917, 1
    %v2919 = vmax.f32 %v2917, %v2918
    %v2920 = vsel %vm2898, %v2830, -inf
    %v2921 = vrot.slane %v2920, 4
    %v2922 = vmax.f32 %v2920, %v2921
    %v2923 = vrot.slane %v2922, 2
    %v2924 = vmax.f32 %v2922, %v2923
    %v2925 = vrot.slane %v2924, 1
    %v2926 = vmax.f32 %v2924, %v2925
    %v2927 = vsel %vm2898, %v2838, -inf
    %v2928 = vrot.slane %v2927, 4
    %v2929 = vmax.f32 %v2927, %v2928
    %v2930 = vrot.slane %v2929, 2
    %v2931 = vmax.f32 %v2929, %v2930
    %v2932 = vrot.slane %v2931, 1
    %v2933 = vmax.f32 %v2931, %v2932
    %v2934 = vsel %vm2898, %v2846, -inf
    %v2935 = vrot.slane %v2934, 4
    %v2936 = vmax.f32 %v2934, %v2935
    %v2937 = vrot.slane %v2936, 2
    %v2938 = vmax.f32 %v2936, %v2937
    %v2939 = vrot.slane %v2938, 1
    %v2940 = vmax.f32 %v2938, %v2939
    %v2941 = vsel %vm2898, %v2845, -inf
    %v2942 = vrot.slane %v2941, 4
    %v2943 = vmax.f32 %v2941, %v2942
    %v2944 = vrot.slane %v2943, 2
    %v2945 = vmax.f32 %v2943, %v2944
    %v2946 = vrot.slane %v2945, 1
    %v2947 = vmax.f32 %v2945, %v2946
    %v2948 = vsel %vm2898, %v2847, -inf
    %v2949 = vrot.slane %v2948, 4
    %v2950 = vmax.f32 %v2948, %v2949
    %v2951 = vrot.slane %v2950, 2
    %v2952 = vmax.f32 %v2950, %v2951
    %v2953 = vrot.slane %v2952, 1
    %v2954 = vmax.f32 %v2952, %v2953
    %v2955 = vsel %vm2898, %v2855, -inf
    %v2956 = vrot.slane %v2955, 4
    %v2957 = vmax.f32 %v2955, %v2956
    %v2958 = vrot.slane %v2957, 2
    %v2959 = vmax.f32 %v2957, %v2958
    %v2960 = vrot.slane %v2959, 1
    %v2961 = vmax.f32 %v2959, %v2960
    %v2962 = vsel %vm2898, %v2863, -inf
    %v2963 = vrot.slane %v2962, 4
    %v2964 = vmax.f32 %v2962, %v2963
    %v2965 = vrot.slane %v2964, 2
    %v2966 = vmax.f32 %v2964, %v2965
    %v2967 = vrot.slane %v2966, 1
    %v2968 = vmax.f32 %v2966, %v2967
    %v2969 = vsel %vm2898, %v2862, -inf
    %v2970 = vrot.slane %v2969, 4
    %v2971 = vmax.f32 %v2969, %v2970
    %v2972 = vrot.slane %v2971, 2
    %v2973 = vmax.f32 %v2971, %v2972
    %v2974 = vrot.slane %v2973, 1
    %v2975 = vmax.f32 %v2973, %v2974
    %v2976 = vsel %vm2898, %v2864, -inf
    %v2977 = vrot.slane %v2976, 4
    %v2978 = vmax.f32 %v2976, %v2977
    %v2979 = vrot.slane %v2978, 2
    %v2980 = vmax.f32 %v2978, %v2979
    %v2981 = vrot.slane %v2980, 1
    %v2982 = vmax.f32 %v2980, %v2981
    %v2983 = vsel %vm2898, %v2872, -inf
    %v2984 = vrot.slane %v2983, 4
    %v2985 = vmax.f32 %v2983, %v2984
    %v2986 = vrot.slane %v2985, 2
    %v2987 = vmax.f32 %v2985, %v2986
    %v2988 = vrot.slane %v2987, 1
    %v2989 = vmax.f32 %v2987, %v2988
    %v2990 = vsel %vm2898, %v2880, -inf
    %v2991 = vrot.slane %v2990, 4
    %v2992 = vmax.f32 %v2990, %v2991
    %v2993 = vrot.slane %v2992, 2
    %v2994 = vmax.f32 %v2992, %v2993
    %v2995 = vrot.slane %v2994, 1
    %v2996 = vmax.f32 %v2994, %v2995
    %v2997 = vsel %vm2898, %v2879, -inf
    %v2998 = vrot.slane %v2997, 4
    %v2999 = vmax.f32 %v2997, %v2998
    %v3000 = vrot.slane %v2999, 2
    %v3001 = vmax.f32 %v2999, %v3000
    %v3002 = vrot.slane %v3001, 1
    %v3003 = vmax.f32 %v3001, %v3002
    %v3004 = vsel %vm2898, %v2881, -inf
    %v3005 = vrot.slane %v3004, 4
    %v3006 = vmax.f32 %v3004, %v3005
    %v3007 = vrot.slane %v3006, 2
    %v3008 = vmax.f32 %v3006, %v3007
    %v3009 = vrot.slane %v3008, 1
    %v3010 = vmax.f32 %v3008, %v3009
    %v3025 = vsel %vm1926, %v2912, %v2905
    %v3026 = vsel %vm1928, %v2919, %v3025
    %v3027 = vsel %vm1930, %v2926, %v3026
    %v3028 = vsel %vm1932, %v2933, %v3027
    %v3029 = vsel %vm1934, %v2940, %v3028
    %v3030 = vsel %vm1942, %v2954, %v2947
    %v3031 = vsel %vm1924, %v2961, %v3030
    %v3032 = vsel %vm1926, %v2968, %v3031
    %v3033 = vsel %vm1928, %v2975, %v3032
    %v3034 = vsel %vm1930, %v2982, %v3033
    %v3035 = vsel %vm1932, %v2989, %v3034
    %v3036 = vsel %vm1934, %v2996, %v3035
    %v3039 = vsel %vm160, 0.0, %v3029
    %vm3040 = vcmp.lt.s32.totalorder %v185, 8
    %vm3041 = vmand %vm189, %vm3040
    %v3042 = vsel %vm3041, 1, 0
    %3043 = vset.pattern.permute.xlu0 0
    %3044 = vperm.xlu0 %3043, %v3042
    %v3045 = vpop.permute.xlu0 %3044
    %vm3046 = vcmp.eq.s32.totalorder %v3045, 1
    %v3047 = vsel %vm3046, %v3039, 0.0
    %v3048 = vsel %vm3046, %v3036, 0.0
    %v3050 = vsel %vm1924, %v2912, %v2905
    %v3051 = vsel %vm1926, %v2919, %v3050
    %v3052 = vsel %vm1928, %v2926, %v3051
    %v3053 = vsel %vm1930, %v2933, %v3052
    %v3054 = vsel %vm1932, %v2940, %v3053
    %v3055 = vsel %vm1934, %v2947, %v3054
    %v3056 = vsel %vm1942, %v2961, %v2954
    %v3057 = vsel %vm1924, %v2968, %v3056
    %v3058 = vsel %vm1926, %v2975, %v3057
    %v3059 = vsel %vm1928, %v2982, %v3058
    %v3060 = vsel %vm1930, %v2989, %v3059
    %v3061 = vsel %vm1932, %v2996, %v3060
    %v3062 = vsel %vm1934, %v3003, %v3061
    %v3065 = vsel %vm229, 0.0, %v3055
    %vm3066 = vcmp.lt.s32.totalorder %v254, 8
    %vm3067 = vmand %vm258, %vm3066
    %v3068 = vsel %vm3067, 1, 0
    %3069 = vset.pattern.permute.xlu0 0
    %3070 = vperm.xlu0 %3069, %v3068
    %v3071 = vpop.permute.xlu0 %3070
    %vm3072 = vcmp.eq.s32.totalorder %v3071, 1
    %v3073 = vsel %vm3072, %v3065, 0.0
    %v3074 = vsel %vm3072, %v3062, 0.0
    %v3076 = vsel %vm1942, %v2919, %v2912
    %v3077 = vsel %vm1924, %v2926, %v3076
    %v3078 = vsel %vm1926, %v2933, %v3077
    %v3079 = vsel %vm1928, %v2940, %v3078
    %v3080 = vsel %vm1930, %v2947, %v3079
    %v3081 = vsel %vm1932, %v2954, %v3080
    %v3082 = vsel %vm1934, %v2961, %v3081
    %v3083 = vsel %vm1942, %v2975, %v2968
    %v3084 = vsel %vm1924, %v2982, %v3083
    %v3085 = vsel %vm1926, %v2989, %v3084
    %v3086 = vsel %vm1928, %v2996, %v3085
    %v3087 = vsel %vm1930, %v3003, %v3086
    %v3088 = vsel %vm1932, %v3010, %v3087
    %v3091 = vsel %vm298, %v3088, 0.0
    %vm3092 = vcmp.lt.s32.totalorder %v323, 8
    %vm3093 = vmand %vm327, %vm3092
    %v3094 = vsel %vm3093, 1, 0
    %3095 = vset.pattern.permute.xlu0 0
    %3096 = vperm.xlu0 %3095, %v3094
    %v3097 = vpop.permute.xlu0 %3096
    %vm3098 = vcmp.eq.s32.totalorder %v3097, 1
    %v3099 = vsel %vm3098, %v3082, 0.0
    %v3100 = vsel %vm3098, %v3091, 0.0
    %v3101 = vsel %vm1942, %v2926, %v2919
    %v3102 = vsel %vm1924, %v2933, %v3101
    %v3103 = vsel %vm1926, %v2940, %v3102
    %v3104 = vsel %vm1928, %v2947, %v3103
    %v3105 = vsel %vm1930, %v2954, %v3104
    %v3106 = vsel %vm1932, %v2961, %v3105
    %v3107 = vsel %vm1934, %v2968, %v3106
    %v3108 = vsel %vm1942, %v2982, %v2975
    %v3109 = vsel %vm1924, %v2989, %v3108
    %v3110 = vsel %vm1926, %v2996, %v3109
    %v3111 = vsel %vm1928, %v3003, %v3110
    %v3112 = vsel %vm1930, %v3010, %v3111
    %v3115 = vsel %vm367, %v3112, 0.0
    %vm3116 = vcmp.lt.s32.totalorder %v392, 8
    %vm3117 = vmand %vm396, %vm3116
    %v3118 = vsel %vm3117, 1, 0
    %3119 = vset.pattern.permute.xlu0 0
    %3120 = vperm.xlu0 %3119, %v3118
    %v3121 = vpop.permute.xlu0 %3120
    %vm3122 = vcmp.eq.s32.totalorder %v3121, 1
    %v3123 = vsel %vm3122, %v3107, 0.0
    %v3124 = vsel %vm3122, %v3115, 0.0
    %3127 = vrot.lane.b32.xlu0 %v3073, 60
    %v3128 = vpop.permute.xlu0 %3127
    %3129 = vrot.lane.b32.xlu0 %v3074, 60
    %v3130 = vpop.permute.xlu0 %3129
    %v3133 = vsel %vm1942, %v2912, %v2905
    %v3134 = vsel %vm1924, %v2919, %v3133
    %v3135 = vsel %vm1926, %v2926, %v3134
    %v3136 = vsel %vm1928, %v2933, %v3135
    %v3137 = vsel %vm1930, %v2940, %v3136
    %v3138 = vsel %vm1932, %v2947, %v3137
    %v3139 = vsel %vm1934, %v2954, %v3138
    %v3140 = vsel %vm1942, %v2968, %v2961
    %v3141 = vsel %vm1924, %v2975, %v3140
    %v3142 = vsel %vm1926, %v2982, %v3141
    %v3143 = vsel %vm1928, %v2989, %v3142
    %v3144 = vsel %vm1930, %v2996, %v3143
    %v3145 = vsel %vm1932, %v3003, %v3144
    %v3146 = vsel %vm1934, %v3010, %v3145
    %3147 = vrot.lane.b32.xlu0 %v3139, 120
    %v3148 = vpop.permute.xlu0 %3147
    %3149 = vrot.lane.b32.xlu0 %v3146, 120
    %v3150 = vpop.permute.xlu0 %3149
    %3155 = vrot.lane.b32.xlu0 %v3099, 52
    %v3156 = vpop.permute.xlu0 %3155
    %3157 = vrot.lane.b32.xlu0 %v3100, 52
    %v3158 = vpop.permute.xlu0 %3157
    %3163 = vrot.lane.b32.xlu0 %v3123, 112
    %v3164 = vpop.permute.xlu0 %3163
    %3165 = vrot.lane.b32.xlu0 %v3124, 112
    %v3166 = vpop.permute.xlu0 %3165
    %vm3169 = vcmask 490496
    %v3170 = vsel %vm3169, %v3047, %v3128
    %v3171 = vsel %vm3169, %v3048, %v3130
    %vm3172 = vcmask 982016
    %v3173 = vsel %vm3172, %v3170, %v3148
    %v3174 = vsel %vm3172, %v3171, %v3150
    %vm3175 = vcmask 424960
    %v3176 = vsel %vm3175, %v3148, %v3156
    %v3177 = vsel %vm3175, %v3150, %v3158
    %vm3178 = vcmask 916480
    %v3179 = vsel %vm3178, %v3176, %v3164
    %v3180 = vsel %vm3178, %v3177, %v3166
    %v3181 = vpack.c.bf16 %v3174, %v3173
    %v3182 = vpack.c.bf16 %v3180, %v3179
    %v3183 = vpack.c.bf16 %v3166, %v3164
    %v3184 = vld [vmem:[%s7] sm:$0xf]
    %v3185 = vld [vmem:[%s7 + $0x4] sm:$0xf]
    %v3186 = vld [vmem:[%s7 + $0x8] sm:$0xf]
    %v3187 = vld [vmem:[%s7 + $0xc] sm:$0xf]
    %v3188 = vld [vmem:[%s7 + $0x10] sm:$0xf]
    %v3189 = vld [vmem:[%s7 + $0x14] sm:$0xf]
    %v3190 = vld [vmem:[%s7 + $0x18] sm:$0xf]
    %v3191 = vld [vmem:[%s7 + $0x1c] sm:$0xf]
    %v3192 = vld [vmem:[%s7 + $0x20] sm:$0xf]
    %v3193 = vld [vmem:[%s7 + $0x24] sm:$0xf]
    %v3194 = vld [vmem:[%s7 + $0x28] sm:$0xf]
    %v3195 = vld [vmem:[%s7 + $0x2c] sm:$0xf]
    %v3196 = vld [vmem:[%s7 + $0x30] sm:$0xf]
    %v3197 = vld [vmem:[%s7 + $0x34] sm:$0xf]
    %v3198 = vld [vmem:[%s7 + $0x38] sm:$0xf]
    %v3199 = vld [vmem:[%s7 + $0x3c] sm:$0xf]
    %v3200 = vld [vmem:[%s7 + $0x40] sm:$0xf]
    %v3201 = vld [vmem:[%s7 + $0x44] sm:$0xf]
    %v3202 = vld [vmem:[%s7 + $0x48] sm:$0xf]
    %v3203 = vld [vmem:[%s7 + $0x4c] sm:$0xf]
    %v3204 = vld [vmem:[%s7 + $0x50] sm:$0xf]
    %v3205 = vld [vmem:[%s7 + $0x54] sm:$0xf]
    %v3206 = vld [vmem:[%s7 + $0x58] sm:$0xf]
    %v3207 = vld [vmem:[%s7 + $0x5c] sm:$0xf]
    %v3208 = vld [vmem:[%s7 + $0x60] sm:$0xf]
    %v3209 = vld [vmem:[%s7 + $0x64] sm:$0xf]
    %v3210 = vld [vmem:[%s7 + $0x68] sm:$0xf]
    %v3211 = vld [vmem:[%s7 + $0x6c] sm:$0xf]
    %v3212 = vld [vmem:[%s7 + $0x70] sm:$0xf]
    %v3213 = vld [vmem:[%s7 + $0x74] sm:$0xf]
    %v3214 = vld [vmem:[%s7 + $0x78] sm:$0xf]
    %v3215 = vld [vmem:[%s7 + $0x7c] sm:$0xf]
    %v3216 = vld [vmem:[%s7 + $0x80] sm:$0xf]
    %v3217 = vld [vmem:[%s7 + $0x84] sm:$0xf]
    %v3218 = vld [vmem:[%s7 + $0x88] sm:$0xf]
    %v3219 = vld [vmem:[%s7 + $0x8c] sm:$0xf]
    %v3220 = vld [vmem:[%s7 + $0x90] sm:$0xf]
    %v3221 = vld [vmem:[%s7 + $0x94] sm:$0x3]
    %v3260 = vunpack.c.l.b16 %v3184
    %v3261 = vunpack.c.l.b16 %v3185
    %v3262 = vunpack.c.l.b16 %v3186
    %v3263 = vunpack.c.l.b16 %v3187
    %v3264 = vunpack.c.l.b16 %v3188
    %v3265 = vunpack.c.l.b16 %v3189
    %v3266 = vunpack.c.l.b16 %v3190
    %v3267 = vunpack.c.l.b16 %v3191
    %v3268 = vunpack.c.l.b16 %v3192
    %v3269 = vunpack.c.l.b16 %v3193
    %v3270 = vunpack.c.l.b16 %v3194
    %v3271 = vunpack.c.l.b16 %v3195
    %v3272 = vunpack.c.l.b16 %v3196
    %v3273 = vunpack.c.l.b16 %v3197
    %v3274 = vunpack.c.l.b16 %v3198
    %v3275 = vunpack.c.l.b16 %v3199
    %v3276 = vunpack.c.l.b16 %v3200
    %v3277 = vunpack.c.l.b16 %v3201
    %v3278 = vunpack.c.l.b16 %v3202
    %v3279 = vunpack.c.l.b16 %v3203
    %v3280 = vunpack.c.l.b16 %v3204
    %v3281 = vunpack.c.l.b16 %v3205
    %v3282 = vunpack.c.l.b16 %v3206
    %v3283 = vunpack.c.l.b16 %v3207
    %v3284 = vunpack.c.l.b16 %v3208
    %v3285 = vunpack.c.l.b16 %v3209
    %v3286 = vunpack.c.l.b16 %v3210
    %v3287 = vunpack.c.l.b16 %v3211
    %v3288 = vunpack.c.l.b16 %v3212
    %v3289 = vunpack.c.l.b16 %v3213
    %v3290 = vunpack.c.l.b16 %v3214
    %v3291 = vunpack.c.l.b16 %v3215
    %v3292 = vunpack.c.l.b16 %v3216
    %v3293 = vunpack.c.l.b16 %v3217
    %v3294 = vunpack.c.l.b16 %v3218
    %v3295 = vunpack.c.l.b16 %v3219
    %v3296 = vunpack.c.l.b16 %v3220
    %v3297 = vunpack.c.l.b16 %v3221
    %v3298 = vpack.c.b16 %v3261, %v3260
    %v3299 = vpack.c.b16 %v3263, %v3262
    %v3300 = vpack.c.b16 %v3265, %v3264
    %v3301 = vpack.c.b16 %v3267, %v3266
    %v3302 = vpack.c.b16 %v3269, %v3268
    %v3303 = vpack.c.b16 %v3271, %v3270
    %v3304 = vpack.c.b16 %v3273, %v3272
    %v3305 = vpack.c.b16 %v3275, %v3274
    %v3306 = vpack.c.b16 %v3277, %v3276
    %v3307 = vpack.c.b16 %v3279, %v3278
    %v3308 = vpack.c.b16 %v3281, %v3280
    %v3309 = vpack.c.b16 %v3283, %v3282
    %v3310 = vpack.c.b16 %v3285, %v3284
    %v3311 = vpack.c.b16 %v3287, %v3286
    %v3312 = vpack.c.b16 %v3289, %v3288
    %v3313 = vpack.c.b16 %v3291, %v3290
    %v3314 = vpack.c.b16 %v3293, %v3292
    %v3315 = vpack.c.b16 %v3295, %v3294
    %v3316 = vpack.c.b16 %v3297, %v3296
    %vm3335 = vcmask 359424
    %v3337 = vsel %vm3335, %v3183, 0
    %v3340 = vsel %vm367, %v3316, 0
    %3342 = vmatprep.subr.bf16.mxu0 0
    %3343 = vmatpush1.bf16.msra.mxu0 %v3305
    %3344 = vmatprep.subr.bf16.mxu0 0
    %3345 = vmatpush1.bf16.msra.mxu0 %v3304
    %3346 = vmatprep.subr.bf16.mxu0 0
    %3347 = vmatpush1.bf16.msra.mxu0 %v3303
    %3348 = vmatprep.subr.bf16.mxu0 0
    %3349 = vmatpush1.bf16.msra.mxu0 %v3302
    %3350 = vmatprep.subr.bf16.mxu0 0
    %3351 = vmatpush1.bf16.msra.mxu0 %v3301
    %3352 = vmatprep.subr.bf16.mxu0 0
    %3353 = vmatpush1.bf16.msra.mxu0 %v3300
    %3354 = vmatprep.subr.bf16.mxu0 0
    %3355 = vmatpush1.bf16.msra.mxu0 %v3299
    %3356 = vmatprep.subr.bf16.mxu0 0
    %3357 = vmatpush1.bf16.msra.mxu0 %v3298
    %3358 = vmatprep.subr.bf16.mxu0 0
    %3359 = vmatpush2.bf16.msra.mxu0 %v3313
    %3360 = vmatprep.subr.bf16.mxu0 0
    %3361 = vmatpush2.bf16.msra.mxu0 %v3312
    %3362 = vmatprep.subr.bf16.mxu0 0
    %3363 = vmatpush2.bf16.msra.mxu0 %v3311
    %3364 = vmatprep.subr.bf16.mxu0 0
    %3365 = vmatpush2.bf16.msra.mxu0 %v3310
    %3366 = vmatprep.subr.bf16.mxu0 0
    %3367 = vmatpush2.bf16.msra.mxu0 %v3309
    %3368 = vmatprep.subr.bf16.mxu0 0
    %3369 = vmatpush2.bf16.msra.mxu0 %v3308
    %3370 = vmatprep.subr.bf16.mxu0 0
    %3371 = vmatpush2.bf16.msra.mxu0 %v3307
    %3372 = vmatprep.subr.bf16.mxu0 0
    %3373 = vmatpush2.bf16.msra.mxu0 %v3306
    %3374 = vmatprep.mubr.bf16.mxu0 %v3182
    %3375 = vmatmul.mubr.bf16.gmra.mxu0 %v3181
    %v3376 = vpop.f32.mrf.mxu0
    %v3377 = vadd.f32 0.0, %v3376
    %v3378 = vpop.f32.mrf.mxu0
    %v3379 = vpop.f32.mrf.mxu0
    %v3380 = vadd.f32 0.0, %v3379
    %v3381 = vpop.f32.mrf.mxu0
    %3382 = vdwg.mxu0
    %3383 = vmatprep.subr.bf16.mxu0 0
    %3384 = vmatpush1.bf16.msra.mxu0 0
    %3385 = vmatprep.subr.bf16.mxu0 0
    %3386 = vmatpush1.bf16.msra.mxu0 0
    %3387 = vmatprep.subr.bf16.mxu0 0
    %3388 = vmatpush1.bf16.msra.mxu0 0
    %3389 = vmatprep.subr.bf16.mxu0 0
    %3390 = vmatpush1.bf16.msra.mxu0 0
    %3391 = vmatprep.subr.bf16.mxu0 0
    %3392 = vmatpush1.bf16.msra.mxu0 0
    %3393 = vmatprep.subr.bf16.mxu0 0
    %3394 = vmatpush1.bf16.msra.mxu0 %v3340
    %3395 = vmatprep.subr.bf16.mxu0 0
    %3396 = vmatpush1.bf16.msra.mxu0 %v3315
    %3397 = vmatprep.subr.bf16.mxu0 0
    %3398 = vmatpush1.bf16.msra.mxu0 %v3314
    %3399 = vmatprep.subr.bf16.mxu0 0
    %3400 = vmatpush2.bf16.msra.mxu0 0
    %3401 = vmatprep.subr.bf16.mxu0 0
    %3402 = vmatpush2.bf16.msra.mxu0 0
    %3403 = vmatprep.subr.bf16.mxu0 0
    %3404 = vmatpush2.bf16.msra.mxu0 0
    %3405 = vmatprep.subr.bf16.mxu0 0
    %3406 = vmatpush2.bf16.msra.mxu0 0
    %3407 = vmatprep.subr.bf16.mxu0 0
    %3408 = vmatpush2.bf16.msra.mxu0 0
    %3409 = vmatprep.subr.bf16.mxu0 0
    %3410 = vmatpush2.bf16.msra.mxu0 0
    %3411 = vmatprep.subr.bf16.mxu0 0
    %3412 = vmatpush2.bf16.msra.mxu0 0
    %3413 = vmatprep.subr.bf16.mxu0 0
    %3414 = vmatpush2.bf16.msra.mxu0 0
    %3415 = vmatprep.mubr.bf16.mxu0 0
    %3416 = vmatmul.mubr.bf16.gmra.mxu0 %v3337
    %v3417 = vpop.f32.mrf.mxu0
    %v3418 = vadd.f32 %v3377, %v3417
    %v3419 = vpop.f32.mrf.mxu0
    %v3420 = vpop.f32.mrf.mxu0
    %v3421 = vadd.f32 %v3380, %v3420
    %v3422 = vpop.f32.mrf.mxu0
    %3423 = vdwg.mxu0
    %v3424 = vld [vmem:[%s8] sm:$0x1]
    %v3426 = vlaneseq
    %v3427 = vshrl.u32 %v3426, 7
    %v3428 = vsub.s32 0, %v3427
    %v3429 = vrot.slane %v3424, %v3428
    %v3431 = vmul.f32 %v3418, %v3429
    %v3432 = vmul.f32 %v3421, %v3429
    %v3433 = vld [vmem:[%s9] sm:$0x1]
    %v3435 = vlaneseq
    %v3436 = vshrl.u32 %v3435, 7
    %v3437 = vsub.s32 0, %v3436
    %v3438 = vrot.slane %v3433, %v3437
    %v3440 = vadd.f32 %v3431, %v3438
    %v3441 = vadd.f32 %v3432, %v3438
    %v3442 = vmax.f32 %v3440, 0.0
    %v3443 = vmax.f32 %v3441, 0.0
    %v3446 = vcombine.high %v3442, %v3442
    %v3448 = vunpack.c.l.s4 1983009808
    %v3449 = vunpack.c.0.s8 %v3448
    %v3450 = vlaneseq
    %v3451 = vshrl.u32 %v3450, 7
    %v3452 = vsub.s32 %v3449, %v3451
    %v3453 = vrot.slane %v3442, %v3452
    %v3455 = vunpack.c.l.s4 1983009808
    %v3456 = vunpack.c.0.s8 %v3455
    %v3457 = vlaneseq
    %v3458 = vshrl.u32 %v3457, 7
    %v3459 = vsub.s32 %v3456, %v3458
    %v3460 = vrot.slane %v3446, %v3459
    %v3461 = vcombine.high %v3453, %v3453
    %v3462 = vcombine.high %v3460, %v3460
    %v3463 = vcombine.high %v3443, %v3443
    %v3465 = vunpack.c.l.s4 1983009808
    %v3466 = vunpack.c.0.s8 %v3465
    %v3467 = vlaneseq
    %v3468 = vshrl.u32 %v3467, 7
    %v3469 = vsub.s32 %v3466, %v3468
    %v3470 = vrot.slane %v3443, %v3469
    %v3472 = vunpack.c.l.s4 1983009808
    %v3473 = vunpack.c.0.s8 %v3472
    %v3474 = vlaneseq
    %v3475 = vshrl.u32 %v3474, 7
    %v3476 = vsub.s32 %v3473, %v3475
    %v3477 = vrot.slane %v3463, %v3476
    %v3478 = vcombine.high %v3470, %v3470
    %v3479 = vcombine.high %v3477, %v3477
    %v3488 = vsel %vm2898, %v3453, -inf
    %v3489 = vrot.slane %v3488, 4
    %v3490 = vmax.f32 %v3488, %v3489
    %v3491 = vrot.slane %v3490, 2
    %v3492 = vmax.f32 %v3490, %v3491
    %v3493 = vrot.slane %v3492, 1
    %v3494 = vmax.f32 %v3492, %v3493
    %v3495 = vsel %vm2898, %v3461, -inf
    %v3496 = vrot.slane %v3495, 4
    %v3497 = vmax.f32 %v3495, %v3496
    %v3498 = vrot.slane %v3497, 2
    %v3499 = vmax.f32 %v3497, %v3498
    %v3500 = vrot.slane %v3499, 1
    %v3501 = vmax.f32 %v3499, %v3500
    %v3502 = vsel %vm2898, %v3460, -inf
    %v3503 = vrot.slane %v3502, 4
    %v3504 = vmax.f32 %v3502, %v3503
    %v3505 = vrot.slane %v3504, 2
    %v3506 = vmax.f32 %v3504, %v3505
    %v3507 = vrot.slane %v3506, 1
    %v3508 = vmax.f32 %v3506, %v3507
    %v3509 = vsel %vm2898, %v3462, -inf
    %v3510 = vrot.slane %v3509, 4
    %v3511 = vmax.f32 %v3509, %v3510
    %v3512 = vrot.slane %v3511, 2
    %v3513 = vmax.f32 %v3511, %v3512
    %v3514 = vrot.slane %v3513, 1
    %v3515 = vmax.f32 %v3513, %v3514
    %v3516 = vsel %vm2898, %v3470, -inf
    %v3517 = vrot.slane %v3516, 4
    %v3518 = vmax.f32 %v3516, %v3517
    %v3519 = vrot.slane %v3518, 2
    %v3520 = vmax.f32 %v3518, %v3519
    %v3521 = vrot.slane %v3520, 1
    %v3522 = vmax.f32 %v3520, %v3521
    %v3523 = vsel %vm2898, %v3478, -inf
    %v3524 = vrot.slane %v3523, 4
    %v3525 = vmax.f32 %v3523, %v3524
    %v3526 = vrot.slane %v3525, 2
    %v3527 = vmax.f32 %v3525, %v3526
    %v3528 = vrot.slane %v3527, 1
    %v3529 = vmax.f32 %v3527, %v3528
    %v3530 = vsel %vm2898, %v3477, -inf
    %v3531 = vrot.slane %v3530, 4
    %v3532 = vmax.f32 %v3530, %v3531
    %v3533 = vrot.slane %v3532, 2
    %v3534 = vmax.f32 %v3532, %v3533
    %v3535 = vrot.slane %v3534, 1
    %v3536 = vmax.f32 %v3534, %v3535
    %v3537 = vsel %vm2898, %v3479, -inf
    %v3538 = vrot.slane %v3537, 4
    %v3539 = vmax.f32 %v3537, %v3538
    %v3540 = vrot.slane %v3539, 2
    %v3541 = vmax.f32 %v3539, %v3540
    %v3542 = vrot.slane %v3541, 1
    %v3543 = vmax.f32 %v3541, %v3542
    %v3544 = vrot.slane %v79, 4
    %vm3545 = vcmask 1043456
    %v3546 = vsel %vm3545, %v79, %v3544
    %v3554 = vsel %vm1924, %v3501, %v3494
    %v3555 = vsel %vm1926, %v3508, %v3554
    %v3556 = vsel %vm1928, %v3515, %v3555
    %v3557 = vsel %vm1930, %v3522, %v3556
    %v3558 = vsel %vm1932, %v3529, %v3557
    %v3559 = vsel %vm1934, %v3536, %v3558
    %v3561 = vsel %vm229, 0.0, %v3559
    %v3562 = vadd.s32 %v3546, 4294967295
    %vm3563 = vcmp.ge.s32.totalorder %v3562, 0
    %vm3564 = vcmp.lt.s32.totalorder %v3562, 4
    %vm3565 = vmand %vm3563, %vm3564
    %v3566 = vsel %vm3565, 1, 0
    %3567 = vset.pattern.permute.xlu0 0
    %3568 = vperm.xlu0 %3567, %v3566
    %v3569 = vpop.permute.xlu0 %3568
    %vm3570 = vcmp.eq.s32.totalorder %v3569, 1
    %v3571 = vsel %vm3570, %v3561, 0.0
    %v3573 = vsel %vm1942, %v3508, %v3501
    %v3574 = vsel %vm1924, %v3515, %v3573
    %v3575 = vsel %vm1926, %v3522, %v3574
    %v3576 = vsel %vm1928, %v3529, %v3575
    %v3577 = vsel %vm1930, %v3536, %v3576
    %v3578 = vsel %vm1932, %v3543, %v3577
    %v3580 = vsel %vm298, %v3578, 0.0
    %v3581 = vadd.s32 %v3546, 1
    %vm3582 = vcmp.ge.s32.totalorder %v3581, 0
    %vm3583 = vcmp.lt.s32.totalorder %v3581, 4
    %vm3584 = vmand %vm3582, %vm3583
    %v3585 = vsel %vm3584, 1, 0
    %3586 = vset.pattern.permute.xlu0 0
    %3587 = vperm.xlu0 %3586, %v3585
    %v3588 = vpop.permute.xlu0 %3587
    %vm3589 = vcmp.eq.s32.totalorder %v3588, 1
    %v3590 = vsel %vm3589, %v3580, 0.0
    %v3591 = vsel %vm1942, %v3501, %v3494
    %v3592 = vsel %vm1924, %v3508, %v3591
    %v3593 = vsel %vm1926, %v3515, %v3592
    %v3594 = vsel %vm1928, %v3522, %v3593
    %v3595 = vsel %vm1930, %v3529, %v3594
    %v3596 = vsel %vm1932, %v3536, %v3595
    %v3597 = vsel %vm1934, %v3543, %v3596
    %3598 = vrot.lane.b32.xlu0 %v3597, 60
    %v3599 = vpop.permute.xlu0 %3598
    %3602 = vrot.lane.b32.xlu0 %v3590, 120
    %v3603 = vpop.permute.xlu0 %3602
    %v3605 = vsel %vm3169, %v3571, %v3599
    %v3606 = vsel %vm3172, %v3605, %v3603
    %v3607 = vpack.c.bf16 %v3606, %v3606
    %v3608 = vpack.c.bf16 %v3603, %v3603
    %v3609 = vld [vmem:[%s10] sm:$0xf]
    %v3610 = vld [vmem:[%s10 + $0x4] sm:$0xf]
    %v3611 = vld [vmem:[%s10 + $0x8] sm:$0xf]
    %v3612 = vld [vmem:[%s10 + $0xc] sm:$0xf]
    %v3613 = vld [vmem:[%s10 + $0x10] sm:$0xf]
    %v3614 = vld [vmem:[%s10 + $0x14] sm:$0xf]
    %v3615 = vld [vmem:[%s10 + $0x18] sm:$0xf]
    %v3616 = vld [vmem:[%s10 + $0x1c] sm:$0xf]
    %v3617 = vld [vmem:[%s10 + $0x20] sm:$0xf]
    %v3618 = vld [vmem:[%s10 + $0x24] sm:$0xf]
    %v3619 = vld [vmem:[%s10 + $0x28] sm:$0xf]
    %v3620 = vld [vmem:[%s10 + $0x2c] sm:$0xf]
    %v3621 = vld [vmem:[%s10 + $0x30] sm:$0xf]
    %v3622 = vld [vmem:[%s10 + $0x34] sm:$0xf]
    %v3623 = vld [vmem:[%s10 + $0x38] sm:$0xf]
    %v3624 = vld [vmem:[%s10 + $0x3c] sm:$0xf]
    %v3625 = vld [vmem:[%s10 + $0x40] sm:$0xf]
    %v3626 = vld [vmem:[%s10 + $0x44] sm:$0xf]
    %v3627 = vld [vmem:[%s10 + $0x48] sm:$0xf]
    %v3628 = vld [vmem:[%s10 + $0x4c] sm:$0xf]
    %v3629 = vld [vmem:[%s10 + $0x50] sm:$0xf]
    %v3630 = vld [vmem:[%s10 + $0x54] sm:$0xf]
    %v3631 = vld [vmem:[%s10 + $0x58] sm:$0x3]
    %v3655 = vunpack.c.l.b16 %v3609
    %v3656 = vunpack.c.l.b16 %v3610
    %v3657 = vunpack.c.l.b16 %v3611
    %v3658 = vunpack.c.l.b16 %v3612
    %v3659 = vunpack.c.l.b16 %v3613
    %v3660 = vunpack.c.l.b16 %v3614
    %v3661 = vunpack.c.l.b16 %v3615
    %v3662 = vunpack.c.l.b16 %v3616
    %v3663 = vunpack.c.l.b16 %v3617
    %v3664 = vunpack.c.l.b16 %v3618
    %v3665 = vunpack.c.l.b16 %v3619
    %v3666 = vunpack.c.l.b16 %v3620
    %v3667 = vunpack.c.l.b16 %v3621
    %v3668 = vunpack.c.l.b16 %v3622
    %v3669 = vunpack.c.l.b16 %v3623
    %v3670 = vunpack.c.l.b16 %v3624
    %v3671 = vunpack.c.l.b16 %v3625
    %v3672 = vunpack.c.l.b16 %v3626
    %v3673 = vunpack.c.l.b16 %v3627
    %v3674 = vunpack.c.l.b16 %v3628
    %v3675 = vunpack.c.l.b16 %v3629
    %v3676 = vunpack.c.l.b16 %v3630
    %v3677 = vunpack.c.l.b16 %v3631
    %v3678 = vpack.c.b16 %v3656, %v3655
    %v3679 = vpack.c.b16 %v3658, %v3657
    %v3680 = vpack.c.b16 %v3660, %v3659
    %v3681 = vpack.c.b16 %v3662, %v3661
    %v3682 = vpack.c.b16 %v3664, %v3663
    %v3683 = vpack.c.b16 %v3666, %v3665
    %v3684 = vpack.c.b16 %v3668, %v3667
    %v3685 = vpack.c.b16 %v3670, %v3669
    %v3686 = vpack.c.b16 %v3672, %v3671
    %v3687 = vpack.c.b16 %v3674, %v3673
    %v3688 = vpack.c.b16 %v3676, %v3675
    %v3689 = vpack.c.b16 %v3677, %v3677
    %v3702 = vsel %vm3175, %v3608, 0
    %v3705 = vsel %vm160, %v3689, 0
    %3707 = vmatprep.subr.bf16.mxu0 0
    %3708 = vmatpush1.bf16.msra.mxu0 %v3685
    %3709 = vmatprep.subr.bf16.mxu0 0
    %3710 = vmatpush1.bf16.msra.mxu0 %v3684
    %3711 = vmatprep.subr.bf16.mxu0 0
    %3712 = vmatpush1.bf16.msra.mxu0 %v3683
    %3713 = vmatprep.subr.bf16.mxu0 0
    %3714 = vmatpush1.bf16.msra.mxu0 %v3682
    %3715 = vmatprep.subr.bf16.mxu0 0
    %3716 = vmatpush1.bf16.msra.mxu0 %v3681
    %3717 = vmatprep.subr.bf16.mxu0 0
    %3718 = vmatpush1.bf16.msra.mxu0 %v3680
    %3719 = vmatprep.subr.bf16.mxu0 0
    %3720 = vmatpush1.bf16.msra.mxu0 %v3679
    %3721 = vmatprep.subr.bf16.mxu0 0
    %3722 = vmatpush1.bf16.msra.mxu0 %v3678
    %3723 = vmatprep.subr.bf16.mxu0 0
    %3724 = vmatpush2.bf16.msra.mxu0 0
    %3725 = vmatprep.subr.bf16.mxu0 0
    %3726 = vmatpush2.bf16.msra.mxu0 0
    %3727 = vmatprep.subr.bf16.mxu0 0
    %3728 = vmatpush2.bf16.msra.mxu0 0
    %3729 = vmatprep.subr.bf16.mxu0 0
    %3730 = vmatpush2.bf16.msra.mxu0 0
    %3731 = vmatprep.subr.bf16.mxu0 0
    %3732 = vmatpush2.bf16.msra.mxu0 %v3705
    %3733 = vmatprep.subr.bf16.mxu0 0
    %3734 = vmatpush2.bf16.msra.mxu0 %v3688
    %3735 = vmatprep.subr.bf16.mxu0 0
    %3736 = vmatpush2.bf16.msra.mxu0 %v3687
    %3737 = vmatprep.subr.bf16.mxu0 0
    %3738 = vmatpush2.bf16.msra.mxu0 %v3686
    %3739 = vmatprep.mubr.bf16.mxu0 %v3702
    %3740 = vmatmul.mubr.bf16.gmra.mxu0 %v3607
    %v3741 = vpop.f32.mrf.mxu0
    %v3742 = vadd.f32 0.0, %v3741
    %v3743 = vpop.f32.mrf.mxu0
    %v3744 = vpop.f32.mrf.mxu0
    %v3745 = vpop.f32.mrf.mxu0
    %3746 = vdwg.mxu0
    %v3747 = vld [vmem:[%s11] sm:$0x1]
    %v3749 = vlaneseq
    %v3750 = vshrl.u32 %v3749, 7
    %v3751 = vsub.s32 0, %v3750
    %v3752 = vrot.slane %v3747, %v3751
    %v3754 = vmul.f32 %v3742, %v3752
    %v3755 = vld [vmem:[%s12] sm:$0x1]
    %v3757 = vlaneseq
    %v3758 = vshrl.u32 %v3757, 7
    %v3759 = vsub.s32 0, %v3758
    %v3760 = vrot.slane %v3755, %v3759
    %v3762 = vadd.f32 %v3754, %v3760
    %v3763 = vmax.f32 %v3762, 0.0
    %v3765 = vcombine.high %v3763, %v3763
    %v3767 = vunpack.c.l.s4 1983009808
    %v3768 = vunpack.c.0.s8 %v3767
    %v3769 = vlaneseq
    %v3770 = vshrl.u32 %v3769, 7
    %v3771 = vsub.s32 %v3768, %v3770
    %v3772 = vrot.slane %v3763, %v3771
    %v3774 = vunpack.c.l.s4 1983009808
    %v3775 = vunpack.c.0.s8 %v3774
    %v3776 = vlaneseq
    %v3777 = vshrl.u32 %v3776, 7
    %v3778 = vsub.s32 %v3775, %v3777
    %v3779 = vrot.slane %v3765, %v3778
    %v3780 = vcombine.high %v3772, %v3772
    %v3781 = vcombine.high %v3779, %v3779
    %vm3786 = vcmask 975872
    %v3787 = vsel %vm3786, %v3772, -inf
    %v3788 = vrot.slane %v3787, 4
    %v3789 = vmax.f32 %v3787, %v3788
    %v3790 = vrot.slane %v3789, 2
    %v3791 = vmax.f32 %v3789, %v3790
    %v3792 = vrot.slane %v3791, 1
    %v3793 = vmax.f32 %v3791, %v3792
    %v3794 = vsel %vm3786, %v3780, -inf
    %v3795 = vrot.slane %v3794, 4
    %v3796 = vmax.f32 %v3794, %v3795
    %v3797 = vrot.slane %v3796, 2
    %v3798 = vmax.f32 %v3796, %v3797
    %v3799 = vrot.slane %v3798, 1
    %v3800 = vmax.f32 %v3798, %v3799
    %v3801 = vsel %vm3786, %v3779, -inf
    %v3802 = vrot.slane %v3801, 4
    %v3803 = vmax.f32 %v3801, %v3802
    %v3804 = vrot.slane %v3803, 2
    %v3805 = vmax.f32 %v3803, %v3804
    %v3806 = vrot.slane %v3805, 1
    %v3807 = vmax.f32 %v3805, %v3806
    %v3808 = vsel %vm3786, %v3781, -inf
    %v3809 = vrot.slane %v3808, 4
    %v3810 = vmax.f32 %v3808, %v3809
    %v3811 = vrot.slane %v3810, 2
    %v3812 = vmax.f32 %v3810, %v3811
    %v3813 = vrot.slane %v3812, 1
    %v3814 = vmax.f32 %v3812, %v3813
    %3816 = vrot.lane.b32.xlu0 %v3800, 120
    %v3817 = vpop.permute.xlu0 %3816
    %v3819 = vsel %vm3172, %v3793, %v3817
    %3821 = vrot.lane.b32.xlu0 %v3814, 120
    %v3822 = vpop.permute.xlu0 %3821
    %v3824 = vsel %vm3172, %v3807, %v3822
    %v3826 = vrot.slane %v3824, 7
    %v3827 = vrot.slane %v3822, 7
    %v3830 = vsel %vm229, %v3819, %v3826
    %v3831 = vsel %vm229, %v3817, %v3827
    %v3832 = vpack.c.bf16 %v3830, %v3830
    %v3833 = vpack.c.bf16 %v3831, %v3831
    %v3834 = vld [vmem:[%s13] sm:$0xff]
    %v3835 = vld [vmem:[%s13 + $0x8] sm:$0xff]
    %v3836 = vld [vmem:[%s13 + $0x10] sm:$0xff]
    %v3837 = vld [vmem:[%s13 + $0x18] sm:$0xff]
    %v3838 = vld [vmem:[%s13 + $0x20] sm:$0xff]
    %v3839 = vld [vmem:[%s13 + $0x28] sm:$0xff]
    %v3840 = vld [vmem:[%s13 + $0x30] sm:$0xff]
    %v3841 = vld [vmem:[%s13 + $0x38] sm:$0xff]
    %v3842 = vld [vmem:[%s13 + $0x40] sm:$0xff]
    %v3843 = vld [vmem:[%s13 + $0x48] sm:$0xff]
    %v3844 = vld [vmem:[%s13 + $0x50] sm:$0xff]
    %v3845 = vld [vmem:[%s13 + $0x58] sm:$0xff]
    %v3846 = vld [vmem:[%s13 + $0x60] sm:$0xff]
    %v3847 = vld [vmem:[%s13 + $0x68] sm:$0xff]
    %v3848 = vld [vmem:[%s13 + $0x70] sm:$0xff]
    %v3849 = vld [vmem:[%s13 + $0x78] sm:$0xff]
    %v3850 = vld [vmem:[%s13 + $0x80] sm:$0xff]
    %v3851 = vld [vmem:[%s13 + $0x88] sm:$0xff]
    %v3852 = vld [vmem:[%s13 + $0x90] sm:$0xff]
    %v3853 = vld [vmem:[%s13 + $0x98] sm:$0xff]
    %v3854 = vld [vmem:[%s13 + $0xa0] sm:$0xff]
    %v3855 = vld [vmem:[%s13 + $0xa8] sm:$0xff]
    %v3856 = vld [vmem:[%s13 + $0xb0] sm:$0xff]
    %v3857 = vld [vmem:[%s13 + $0xb8] sm:$0xff]
    %v3858 = vld [vmem:[%s13 + $0xc0] sm:$0xff]
    %v3859 = vld [vmem:[%s13 + $0xc8] sm:$0xff]
    %v3860 = vld [vmem:[%s13 + $0xd0] sm:$0xff]
    %v3861 = vld [vmem:[%s13 + $0xd8] sm:$0xff]
    %v3862 = vld [vmem:[%s13 + $0xe0] sm:$0xff]
    %v3863 = vld [vmem:[%s13 + $0xe8] sm:$0xff]
    %v3894 = vunpack.c.l.b16 %v3834
    %v3895 = vunpack.c.h.b16 %v3834
    %v3896 = vunpack.c.l.b16 %v3835
    %v3897 = vunpack.c.h.b16 %v3835
    %v3898 = vunpack.c.l.b16 %v3836
    %v3899 = vunpack.c.h.b16 %v3836
    %v3900 = vunpack.c.l.b16 %v3837
    %v3901 = vunpack.c.h.b16 %v3837
    %v3902 = vunpack.c.l.b16 %v3838
    %v3903 = vunpack.c.h.b16 %v3838
    %v3904 = vunpack.c.l.b16 %v3839
    %v3905 = vunpack.c.h.b16 %v3839
    %v3906 = vunpack.c.l.b16 %v3840
    %v3907 = vunpack.c.h.b16 %v3840
    %v3908 = vunpack.c.l.b16 %v3841
    %v3909 = vunpack.c.h.b16 %v3841
    %v3910 = vunpack.c.l.b16 %v3842
    %v3911 = vunpack.c.h.b16 %v3842
    %v3912 = vunpack.c.l.b16 %v3843
    %v3913 = vunpack.c.h.b16 %v3843
    %v3914 = vunpack.c.l.b16 %v3844
    %v3915 = vunpack.c.h.b16 %v3844
    %v3916 = vunpack.c.l.b16 %v3845
    %v3917 = vunpack.c.h.b16 %v3845
    %v3918 = vunpack.c.l.b16 %v3846
    %v3919 = vunpack.c.h.b16 %v3846
    %v3920 = vunpack.c.l.b16 %v3847
    %v3921 = vunpack.c.h.b16 %v3847
    %v3922 = vunpack.c.l.b16 %v3848
    %v3923 = vunpack.c.h.b16 %v3848
    %v3924 = vunpack.c.l.b16 %v3849
    %v3925 = vunpack.c.h.b16 %v3849
    %v3926 = vunpack.c.l.b16 %v3850
    %v3927 = vunpack.c.h.b16 %v3850
    %v3928 = vunpack.c.l.b16 %v3851
    %v3929 = vunpack.c.h.b16 %v3851
    %v3930 = vunpack.c.l.b16 %v3852
    %v3931 = vunpack.c.h.b16 %v3852
    %v3932 = vunpack.c.l.b16 %v3853
    %v3933 = vunpack.c.h.b16 %v3853
    %v3934 = vunpack.c.l.b16 %v3854
    %v3935 = vunpack.c.h.b16 %v3854
    %v3936 = vunpack.c.l.b16 %v3855
    %v3937 = vunpack.c.h.b16 %v3855
    %v3938 = vunpack.c.l.b16 %v3856
    %v3939 = vunpack.c.h.b16 %v3856
    %v3940 = vunpack.c.l.b16 %v3857
    %v3941 = vunpack.c.h.b16 %v3857
    %v3942 = vunpack.c.l.b16 %v3858
    %v3943 = vunpack.c.h.b16 %v3858
    %v3944 = vunpack.c.l.b16 %v3859
    %v3945 = vunpack.c.h.b16 %v3859
    %v3946 = vunpack.c.l.b16 %v3860
    %v3947 = vunpack.c.h.b16 %v3860
    %v3948 = vunpack.c.l.b16 %v3861
    %v3949 = vunpack.c.h.b16 %v3861
    %v3950 = vunpack.c.l.b16 %v3862
    %v3951 = vunpack.c.h.b16 %v3862
    %v3952 = vunpack.c.l.b16 %v3863
    %v3953 = vunpack.c.h.b16 %v3863
    %v3954 = vpack.c.b16 %v3896, %v3894
    %v3955 = vpack.c.b16 %v3897, %v3895
    %v3956 = vpack.c.b16 %v3900, %v3898
    %v3957 = vpack.c.b16 %v3901, %v3899
    %v3958 = vpack.c.b16 %v3904, %v3902
    %v3959 = vpack.c.b16 %v3905, %v3903
    %v3960 = vpack.c.b16 %v3908, %v3906
    %v3961 = vpack.c.b16 %v3909, %v3907
    %v3962 = vpack.c.b16 %v3912, %v3910
    %v3963 = vpack.c.b16 %v3913, %v3911
    %v3964 = vpack.c.b16 %v3916, %v3914
    %v3965 = vpack.c.b16 %v3917, %v3915
    %v3966 = vpack.c.b16 %v3920, %v3918
    %v3967 = vpack.c.b16 %v3921, %v3919
    %v3968 = vpack.c.b16 %v3924, %v3922
    %v3969 = vpack.c.b16 %v3925, %v3923
    %v3970 = vpack.c.b16 %v3928, %v3926
    %v3971 = vpack.c.b16 %v3929, %v3927
    %v3972 = vpack.c.b16 %v3932, %v3930
    %v3973 = vpack.c.b16 %v3933, %v3931
    %v3974 = vpack.c.b16 %v3936, %v3934
    %v3975 = vpack.c.b16 %v3937, %v3935
    %v3976 = vpack.c.b16 %v3940, %v3938
    %v3977 = vpack.c.b16 %v3941, %v3939
    %v3978 = vpack.c.b16 %v3944, %v3942
    %v3979 = vpack.c.b16 %v3945, %v3943
    %v3980 = vpack.c.b16 %v3948, %v3946
    %v3981 = vpack.c.b16 %v3949, %v3947
    %v3982 = vpack.c.b16 %v3952, %v3950
    %v3983 = vpack.c.b16 %v3953, %v3951
    %v4015 = vsel %vm3178, %v3833, 0
    %4017 = vmatprep.subr.bf16.mxu0 %v3969
    %4018 = vmatpush1.bf16.msra.mxu0 %v3968
    %4019 = vmatprep.subr.bf16.mxu0 %v3967
    %4020 = vmatpush1.bf16.msra.mxu0 %v3966
    %4021 = vmatprep.subr.bf16.mxu0 %v3965
    %4022 = vmatpush1.bf16.msra.mxu0 %v3964
    %4023 = vmatprep.subr.bf16.mxu0 %v3963
    %4024 = vmatpush1.bf16.msra.mxu0 %v3962
    %4025 = vmatprep.subr.bf16.mxu0 %v3961
    %4026 = vmatpush1.bf16.msra.mxu0 %v3960
    %4027 = vmatprep.subr.bf16.mxu0 %v3959
    %4028 = vmatpush1.bf16.msra.mxu0 %v3958
    %4029 = vmatprep.subr.bf16.mxu0 %v3957
    %4030 = vmatpush1.bf16.msra.mxu0 %v3956
    %4031 = vmatprep.subr.bf16.mxu0 %v3955
    %4032 = vmatpush1.bf16.msra.mxu0 %v3954
    %4033 = vmatprep.subr.bf16.mxu0 0
    %4034 = vmatpush2.bf16.msra.mxu0 0
    %4035 = vmatprep.subr.bf16.mxu0 %v3983
    %4036 = vmatpush2.bf16.msra.mxu0 %v3982
    %4037 = vmatprep.subr.bf16.mxu0 %v3981
    %4038 = vmatpush2.bf16.msra.mxu0 %v3980
    %4039 = vmatprep.subr.bf16.mxu0 %v3979
    %4040 = vmatpush2.bf16.msra.mxu0 %v3978
    %4041 = vmatprep.subr.bf16.mxu0 %v3977
    %4042 = vmatpush2.bf16.msra.mxu0 %v3976
    %4043 = vmatprep.subr.bf16.mxu0 %v3975
    %4044 = vmatpush2.bf16.msra.mxu0 %v3974
    %4045 = vmatprep.subr.bf16.mxu0 %v3973
    %4046 = vmatpush2.bf16.msra.mxu0 %v3972
    %4047 = vmatprep.subr.bf16.mxu0 %v3971
    %4048 = vmatpush2.bf16.msra.mxu0 %v3970
    %4049 = vmatprep.mubr.bf16.mxu0 %v4015
    %4050 = vmatmul.mubr.bf16.gmra.mxu0 %v3832
    %v4051 = vpop.f32.mrf.mxu0
    %v4052 = vadd.f32 0.0, %v4051
    %v4053 = vpop.f32.mrf.mxu0
    %v4054 = vadd.f32 0.0, %v4053
    %v4055 = vpop.f32.mrf.mxu0
    %v4056 = vpop.f32.mrf.mxu0
    %4057 = vdwg.mxu0
    %v4058 = vld [vmem:[%s14] sm:$0x3]
    %v4060 = vlaneseq
    %v4061 = vshrl.u32 %v4060, 7
    %v4062 = vsub.s32 0, %v4061
    %v4063 = vrot.slane %v4058, %v4062
    %v4064 = vlaneseq
    %v4065 = vshrl.u32 %v4064, 7
    %v4066 = vsub.s32 1, %v4065
    %v4067 = vrot.slane %v4058, %v4066
    %v4070 = vmul.f32 %v4052, %v4063
    %v4071 = vmul.f32 %v4054, %v4067
    %v4072 = vld [vmem:[%s15] sm:$0x3]
    %v4074 = vlaneseq
    %v4075 = vshrl.u32 %v4074, 7
    %v4076 = vsub.s32 0, %v4075
    %v4077 = vrot.slane %v4072, %v4076
    %v4078 = vlaneseq
    %v4079 = vshrl.u32 %v4078, 7
    %v4080 = vsub.s32 1, %v4079
    %v4081 = vrot.slane %v4072, %v4080
    %v4084 = vadd.f32 %v4070, %v4077
    %v4085 = vadd.f32 %v4071, %v4081
    %v4086 = vmax.f32 %v4084, 0.0
    %v4087 = vmax.f32 %v4085, 0.0
    %v4088 = vpack.c.bf16 %v4086, %v4086
    %v4089 = vpack.c.bf16 %v4087, %v4087
    %v4090 = vld [vmem:[%s16] sm:$0xff]
    %v4091 = vld [vmem:[%s16 + $0x8] sm:$0xff]
    %v4092 = vld [vmem:[%s16 + $0x10] sm:$0xff]
    %v4093 = vld [vmem:[%s16 + $0x18] sm:$0xff]
    %v4094 = vld [vmem:[%s16 + $0x20] sm:$0xff]
    %v4095 = vld [vmem:[%s16 + $0x28] sm:$0xff]
    %v4096 = vld [vmem:[%s16 + $0x30] sm:$0xff]
    %v4097 = vld [vmem:[%s16 + $0x38] sm:$0xff]
    %v4098 = vld [vmem:[%s16 + $0x40] sm:$0xff]
    %v4099 = vld [vmem:[%s16 + $0x48] sm:$0xff]
    %v4100 = vld [vmem:[%s16 + $0x50] sm:$0xff]
    %v4101 = vld [vmem:[%s16 + $0x58] sm:$0xff]
    %v4102 = vld [vmem:[%s16 + $0x60] sm:$0xff]
    %v4103 = vld [vmem:[%s16 + $0x68] sm:$0xff]
    %v4104 = vld [vmem:[%s16 + $0x70] sm:$0xff]
    %v4105 = vld [vmem:[%s16 + $0x78] sm:$0xff]
    %v4106 = vld [vmem:[%s16 + $0x80] sm:$0xff]
    %v4107 = vld [vmem:[%s16 + $0x88] sm:$0xff]
    %v4108 = vld [vmem:[%s16 + $0x90] sm:$0xff]
    %v4109 = vld [vmem:[%s16 + $0x98] sm:$0xff]
    %v4110 = vld [vmem:[%s16 + $0xa0] sm:$0xff]
    %v4111 = vld [vmem:[%s16 + $0xa8] sm:$0xff]
    %v4112 = vld [vmem:[%s16 + $0xb0] sm:$0xff]
    %v4113 = vld [vmem:[%s16 + $0xb8] sm:$0xff]
    %v4114 = vld [vmem:[%s16 + $0xc0] sm:$0xff]
    %v4115 = vld [vmem:[%s16 + $0xc8] sm:$0xff]
    %v4116 = vld [vmem:[%s16 + $0xd0] sm:$0xff]
    %v4117 = vld [vmem:[%s16 + $0xd8] sm:$0xff]
    %v4118 = vld [vmem:[%s16 + $0xe0] sm:$0xff]
    %v4119 = vld [vmem:[%s16 + $0xe8] sm:$0xff]
    %v4120 = vld [vmem:[%s16 + $0xf0] sm:$0xff]
    %v4121 = vld [vmem:[%s16 + $0xf8] sm:$0xff]
    %v4154 = vunpack.c.l.b16 %v4090
    %v4155 = vunpack.c.h.b16 %v4090
    %v4156 = vunpack.c.l.b16 %v4091
    %v4157 = vunpack.c.h.b16 %v4091
    %v4158 = vunpack.c.l.b16 %v4092
    %v4159 = vunpack.c.h.b16 %v4092
    %v4160 = vunpack.c.l.b16 %v4093
    %v4161 = vunpack.c.h.b16 %v4093
    %v4162 = vunpack.c.l.b16 %v4094
    %v4163 = vunpack.c.h.b16 %v4094
    %v4164 = vunpack.c.l.b16 %v4095
    %v4165 = vunpack.c.h.b16 %v4095
    %v4166 = vunpack.c.l.b16 %v4096
    %v4167 = vunpack.c.h.b16 %v4096
    %v4168 = vunpack.c.l.b16 %v4097
    %v4169 = vunpack.c.h.b16 %v4097
    %v4170 = vunpack.c.l.b16 %v4098
    %v4171 = vunpack.c.h.b16 %v4098
    %v4172 = vunpack.c.l.b16 %v4099
    %v4173 = vunpack.c.h.b16 %v4099
    %v4174 = vunpack.c.l.b16 %v4100
    %v4175 = vunpack.c.h.b16 %v4100
    %v4176 = vunpack.c.l.b16 %v4101
    %v4177 = vunpack.c.h.b16 %v4101
    %v4178 = vunpack.c.l.b16 %v4102
    %v4179 = vunpack.c.h.b16 %v4102
    %v4180 = vunpack.c.l.b16 %v4103
    %v4181 = vunpack.c.h.b16 %v4103
    %v4182 = vunpack.c.l.b16 %v4104
    %v4183 = vunpack.c.h.b16 %v4104
    %v4184 = vunpack.c.l.b16 %v4105
    %v4185 = vunpack.c.h.b16 %v4105
    %v4186 = vunpack.c.l.b16 %v4106
    %v4187 = vunpack.c.h.b16 %v4106
    %v4188 = vunpack.c.l.b16 %v4107
    %v4189 = vunpack.c.h.b16 %v4107
    %v4190 = vunpack.c.l.b16 %v4108
    %v4191 = vunpack.c.h.b16 %v4108
    %v4192 = vunpack.c.l.b16 %v4109
    %v4193 = vunpack.c.h.b16 %v4109
    %v4194 = vunpack.c.l.b16 %v4110
    %v4195 = vunpack.c.h.b16 %v4110
    %v4196 = vunpack.c.l.b16 %v4111
    %v4197 = vunpack.c.h.b16 %v4111
    %v4198 = vunpack.c.l.b16 %v4112
    %v4199 = vunpack.c.h.b16 %v4112
    %v4200 = vunpack.c.l.b16 %v4113
    %v4201 = vunpack.c.h.b16 %v4113
    %v4202 = vunpack.c.l.b16 %v4114
    %v4203 = vunpack.c.h.b16 %v4114
    %v4204 = vunpack.c.l.b16 %v4115
    %v4205 = vunpack.c.h.b16 %v4115
    %v4206 = vunpack.c.l.b16 %v4116
    %v4207 = vunpack.c.h.b16 %v4116
    %v4208 = vunpack.c.l.b16 %v4117
    %v4209 = vunpack.c.h.b16 %v4117
    %v4210 = vunpack.c.l.b16 %v4118
    %v4211 = vunpack.c.h.b16 %v4118
    %v4212 = vunpack.c.l.b16 %v4119
    %v4213 = vunpack.c.h.b16 %v4119
    %v4214 = vunpack.c.l.b16 %v4120
    %v4215 = vunpack.c.h.b16 %v4120
    %v4216 = vunpack.c.l.b16 %v4121
    %v4217 = vunpack.c.h.b16 %v4121
    %v4218 = vpack.c.b16 %v4156, %v4154
    %v4219 = vpack.c.b16 %v4157, %v4155
    %v4220 = vpack.c.b16 %v4160, %v4158
    %v4221 = vpack.c.b16 %v4161, %v4159
    %v4222 = vpack.c.b16 %v4164, %v4162
    %v4223 = vpack.c.b16 %v4165, %v4163
    %v4224 = vpack.c.b16 %v4168, %v4166
    %v4225 = vpack.c.b16 %v4169, %v4167
    %v4226 = vpack.c.b16 %v4172, %v4170
    %v4227 = vpack.c.b16 %v4173, %v4171
    %v4228 = vpack.c.b16 %v4176, %v4174
    %v4229 = vpack.c.b16 %v4177, %v4175
    %v4230 = vpack.c.b16 %v4180, %v4178
    %v4231 = vpack.c.b16 %v4181, %v4179
    %v4232 = vpack.c.b16 %v4184, %v4182
    %v4233 = vpack.c.b16 %v4185, %v4183
    %v4234 = vpack.c.b16 %v4188, %v4186
    %v4235 = vpack.c.b16 %v4189, %v4187
    %v4236 = vpack.c.b16 %v4192, %v4190
    %v4237 = vpack.c.b16 %v4193, %v4191
    %v4238 = vpack.c.b16 %v4196, %v4194
    %v4239 = vpack.c.b16 %v4197, %v4195
    %v4240 = vpack.c.b16 %v4200, %v4198
    %v4241 = vpack.c.b16 %v4201, %v4199
    %v4242 = vpack.c.b16 %v4204, %v4202
    %v4243 = vpack.c.b16 %v4205, %v4203
    %v4244 = vpack.c.b16 %v4208, %v4206
    %v4245 = vpack.c.b16 %v4209, %v4207
    %v4246 = vpack.c.b16 %v4212, %v4210
    %v4247 = vpack.c.b16 %v4213, %v4211
    %v4248 = vpack.c.b16 %v4216, %v4214
    %v4249 = vpack.c.b16 %v4217, %v4215
    %4282 = vmatprep.subr.bf16.mxu0 %v4233
    %4283 = vmatpush1.bf16.msra.mxu0 %v4232
    %4284 = vmatprep.subr.bf16.mxu0 %v4231
    %4285 = vmatpush1.bf16.msra.mxu0 %v4230
    %4286 = vmatprep.subr.bf16.mxu0 %v4229
    %4287 = vmatpush1.bf16.msra.mxu0 %v4228
    %4288 = vmatprep.subr.bf16.mxu0 %v4227
    %4289 = vmatpush1.bf16.msra.mxu0 %v4226
    %4290 = vmatprep.subr.bf16.mxu0 %v4225
    %4291 = vmatpush1.bf16.msra.mxu0 %v4224
    %4292 = vmatprep.subr.bf16.mxu0 %v4223
    %4293 = vmatpush1.bf16.msra.mxu0 %v4222
    %4294 = vmatprep.subr.bf16.mxu0 %v4221
    %4295 = vmatpush1.bf16.msra.mxu0 %v4220
    %4296 = vmatprep.subr.bf16.mxu0 %v4219
    %4297 = vmatpush1.bf16.msra.mxu0 %v4218
    %4298 = vmatprep.subr.bf16.mxu0 %v4249
    %4299 = vmatpush2.bf16.msra.mxu0 %v4248
    %4300 = vmatprep.subr.bf16.mxu0 %v4247
    %4301 = vmatpush2.bf16.msra.mxu0 %v4246
    %4302 = vmatprep.subr.bf16.mxu0 %v4245
    %4303 = vmatpush2.bf16.msra.mxu0 %v4244
    %4304 = vmatprep.subr.bf16.mxu0 %v4243
    %4305 = vmatpush2.bf16.msra.mxu0 %v4242
    %4306 = vmatprep.subr.bf16.mxu0 %v4241
    %4307 = vmatpush2.bf16.msra.mxu0 %v4240
    %4308 = vmatprep.subr.bf16.mxu0 %v4239
    %4309 = vmatpush2.bf16.msra.mxu0 %v4238
    %4310 = vmatprep.subr.bf16.mxu0 %v4237
    %4311 = vmatpush2.bf16.msra.mxu0 %v4236
    %4312 = vmatprep.subr.bf16.mxu0 %v4235
    %4313 = vmatpush2.bf16.msra.mxu0 %v4234
    %4314 = vmatprep.mubr.bf16.mxu0 %v4089
    %4315 = vmatmul.mubr.bf16.gmra.mxu0 %v4088
    %v4316 = vpop.f32.mrf.mxu0
    %v4317 = vadd.f32 0.0, %v4316
    %v4318 = vpop.f32.mrf.mxu0
    %v4319 = vadd.f32 0.0, %v4318
    %v4320 = vpop.f32.mrf.mxu0
    %v4321 = vpop.f32.mrf.mxu0
    %4322 = vdwg.mxu0
    %v4323 = vld [vmem:[%s17] sm:$0x3]
    %v4325 = vlaneseq
    %v4326 = vshrl.u32 %v4325, 7
    %v4327 = vsub.s32 0, %v4326
    %v4328 = vrot.slane %v4323, %v4327
    %v4329 = vlaneseq
    %v4330 = vshrl.u32 %v4329, 7
    %v4331 = vsub.s32 1, %v4330
    %v4332 = vrot.slane %v4323, %v4331
    %v4335 = vmul.f32 %v4317, %v4328
    %v4336 = vmul.f32 %v4319, %v4332
    %v4337 = vld [vmem:[%s18] sm:$0x3]
    %v4339 = vlaneseq
    %v4340 = vshrl.u32 %v4339, 7
    %v4341 = vsub.s32 0, %v4340
    %v4342 = vrot.slane %v4337, %v4341
    %v4343 = vlaneseq
    %v4344 = vshrl.u32 %v4343, 7
    %v4345 = vsub.s32 1, %v4344
    %v4346 = vrot.slane %v4337, %v4345
    %v4349 = vadd.f32 %v4335, %v4342
    %v4350 = vadd.f32 %v4336, %v4346
    %v4351 = vmax.f32 %v4349, 0.0
    %v4352 = vmax.f32 %v4350, 0.0
    %v4353 = vpack.c.bf16 %v4351, %v4351
    %v4354 = vpack.c.bf16 %v4352, %v4352
    %v4355 = vld [vmem:[%s19] sm:$0xf]
    %v4356 = vld [vmem:[%s19 + $0x4] sm:$0xf]
    %v4357 = vld [vmem:[%s19 + $0x8] sm:$0xf]
    %v4358 = vld [vmem:[%s19 + $0xc] sm:$0xf]
    %v4359 = vld [vmem:[%s19 + $0x10] sm:$0xf]
    %v4360 = vld [vmem:[%s19 + $0x14] sm:$0xf]
    %v4361 = vld [vmem:[%s19 + $0x18] sm:$0xf]
    %v4362 = vld [vmem:[%s19 + $0x1c] sm:$0xf]
    %v4363 = vld [vmem:[%s19 + $0x20] sm:$0xf]
    %v4364 = vld [vmem:[%s19 + $0x24] sm:$0xf]
    %v4365 = vld [vmem:[%s19 + $0x28] sm:$0xf]
    %v4366 = vld [vmem:[%s19 + $0x2c] sm:$0xf]
    %v4367 = vld [vmem:[%s19 + $0x30] sm:$0xf]
    %v4368 = vld [vmem:[%s19 + $0x34] sm:$0xf]
    %v4369 = vld [vmem:[%s19 + $0x38] sm:$0xf]
    %v4370 = vld [vmem:[%s19 + $0x3c] sm:$0xf]
    %v4371 = vld [vmem:[%s19 + $0x40] sm:$0xf]
    %v4372 = vld [vmem:[%s19 + $0x44] sm:$0xf]
    %v4373 = vld [vmem:[%s19 + $0x48] sm:$0xf]
    %v4374 = vld [vmem:[%s19 + $0x4c] sm:$0xf]
    %v4375 = vld [vmem:[%s19 + $0x50] sm:$0xf]
    %v4376 = vld [vmem:[%s19 + $0x54] sm:$0xf]
    %v4377 = vld [vmem:[%s19 + $0x58] sm:$0xf]
    %v4378 = vld [vmem:[%s19 + $0x5c] sm:$0xf]
    %v4379 = vld [vmem:[%s19 + $0x60] sm:$0xf]
    %v4380 = vld [vmem:[%s19 + $0x64] sm:$0xf]
    %v4381 = vld [vmem:[%s19 + $0x68] sm:$0xf]
    %v4382 = vld [vmem:[%s19 + $0x6c] sm:$0xf]
    %v4383 = vld [vmem:[%s19 + $0x70] sm:$0xf]
    %v4384 = vld [vmem:[%s19 + $0x74] sm:$0xf]
    %v4385 = vld [vmem:[%s19 + $0x78] sm:$0xf]
    %v4386 = vld [vmem:[%s19 + $0x7c] sm:$0xf]
    %v4387 = vld [vmem:[%s20] sm:$0x1]
    %v4389 = vlaneseq
    %v4390 = vshrl.u32 %v4389, 7
    %v4391 = vsub.s32 0, %v4390
    %v4392 = vrot.slane %v4387, %v4391
    %v4426 = vunpack.c.l.b16 %v4355
    %v4427 = vunpack.c.l.b16 %v4356
    %v4428 = vunpack.c.l.b16 %v4357
    %v4429 = vunpack.c.l.b16 %v4358
    %v4430 = vunpack.c.l.b16 %v4359
    %v4431 = vunpack.c.l.b16 %v4360
    %v4432 = vunpack.c.l.b16 %v4361
    %v4433 = vunpack.c.l.b16 %v4362
    %v4434 = vunpack.c.l.b16 %v4363
    %v4435 = vunpack.c.l.b16 %v4364
    %v4436 = vunpack.c.l.b16 %v4365
    %v4437 = vunpack.c.l.b16 %v4366
    %v4438 = vunpack.c.l.b16 %v4367
    %v4439 = vunpack.c.l.b16 %v4368
    %v4440 = vunpack.c.l.b16 %v4369
    %v4441 = vunpack.c.l.b16 %v4370
    %v4442 = vunpack.c.l.b16 %v4371
    %v4443 = vunpack.c.l.b16 %v4372
    %v4444 = vunpack.c.l.b16 %v4373
    %v4445 = vunpack.c.l.b16 %v4374
    %v4446 = vunpack.c.l.b16 %v4375
    %v4447 = vunpack.c.l.b16 %v4376
    %v4448 = vunpack.c.l.b16 %v4377
    %v4449 = vunpack.c.l.b16 %v4378
    %v4450 = vunpack.c.l.b16 %v4379
    %v4451 = vunpack.c.l.b16 %v4380
    %v4452 = vunpack.c.l.b16 %v4381
    %v4453 = vunpack.c.l.b16 %v4382
    %v4454 = vunpack.c.l.b16 %v4383
    %v4455 = vunpack.c.l.b16 %v4384
    %v4456 = vunpack.c.l.b16 %v4385
    %v4457 = vunpack.c.l.b16 %v4386
    %v4458 = vpack.c.b16 %v4427, %v4426
    %v4459 = vpack.c.b16 %v4429, %v4428
    %v4460 = vpack.c.b16 %v4431, %v4430
    %v4461 = vpack.c.b16 %v4433, %v4432
    %v4462 = vpack.c.b16 %v4435, %v4434
    %v4463 = vpack.c.b16 %v4437, %v4436
    %v4464 = vpack.c.b16 %v4439, %v4438
    %v4465 = vpack.c.b16 %v4441, %v4440
    %v4466 = vpack.c.b16 %v4443, %v4442
    %v4467 = vpack.c.b16 %v4445, %v4444
    %v4468 = vpack.c.b16 %v4447, %v4446
    %v4469 = vpack.c.b16 %v4449, %v4448
    %v4470 = vpack.c.b16 %v4451, %v4450
    %v4471 = vpack.c.b16 %v4453, %v4452
    %v4472 = vpack.c.b16 %v4455, %v4454
    %v4473 = vpack.c.b16 %v4457, %v4456
    %4490 = vmatprep.subr.bf16.mxu0 0
    %4491 = vmatpush1.bf16.msra.mxu0 %v4465
    %4492 = vmatprep.subr.bf16.mxu0 0
    %4493 = vmatpush1.bf16.msra.mxu0 %v4464
    %4494 = vmatprep.subr.bf16.mxu0 0
    %4495 = vmatpush1.bf16.msra.mxu0 %v4463
    %4496 = vmatprep.subr.bf16.mxu0 0
    %4497 = vmatpush1.bf16.msra.mxu0 %v4462
    %4498 = vmatprep.subr.bf16.mxu0 0
    %4499 = vmatpush1.bf16.msra.mxu0 %v4461
    %4500 = vmatprep.subr.bf16.mxu0 0
    %4501 = vmatpush1.bf16.msra.mxu0 %v4460
    %4502 = vmatprep.subr.bf16.mxu0 0
    %4503 = vmatpush1.bf16.msra.mxu0 %v4459
    %4504 = vmatprep.subr.bf16.mxu0 0
    %4505 = vmatpush1.bf16.msra.mxu0 %v4458
    %4506 = vmatprep.subr.bf16.mxu0 0
    %4507 = vmatpush2.bf16.msra.mxu0 %v4473
    %4508 = vmatprep.subr.bf16.mxu0 0
    %4509 = vmatpush2.bf16.msra.mxu0 %v4472
    %4510 = vmatprep.subr.bf16.mxu0 0
    %4511 = vmatpush2.bf16.msra.mxu0 %v4471
    %4512 = vmatprep.subr.bf16.mxu0 0
    %4513 = vmatpush2.bf16.msra.mxu0 %v4470
    %4514 = vmatprep.subr.bf16.mxu0 0
    %4515 = vmatpush2.bf16.msra.mxu0 %v4469
    %4516 = vmatprep.subr.bf16.mxu0 0
    %4517 = vmatpush2.bf16.msra.mxu0 %v4468
    %4518 = vmatprep.subr.bf16.mxu0 0
    %4519 = vmatpush2.bf16.msra.mxu0 %v4467
    %4520 = vmatprep.subr.bf16.mxu0 0
    %4521 = vmatpush2.bf16.msra.mxu0 %v4466
    %4522 = vmatprep.mubr.bf16.mxu0 %v4354
    %4523 = vmatmul.mubr.bf16.gmra.mxu0 %v4353
    %v4524 = vpop.f32.mrf.mxu0
    %v4525 = vadd.f32 %v4392, %v4524
    %v4526 = vpop.f32.mrf.mxu0
    %v4527 = vpop.f32.mrf.mxu0
    %v4528 = vpop.f32.mrf.mxu0
    %4529 = vdwg.mxu0
    %vm4530 = vcmask 9216
    %4531 = vst.msk [vmem:[#allocation2] sm:$0x3] %vm4530, %v4525
    // Predicated region
    $region86: #{tpu_custom_call.1} parent=1 // pred_check
      _
    $region87: #{tpu_custom_call.1} parent=1 // pred_check_branch
      %4533 = sbr.rel (0) target = $region89
    $region88: #{tpu_custom_call.1} parent=1 // pred_region
      %s4535 = ssub.s32 32, 32
      %4536 = vsyncadd [#allocation3], %s4535
      %s4538 = sshll.u32 [#allocation2], 4
      %s4539 = int_to_ptr.vmem [resolvable:$true] %s4538
      %4541 = dma.vmem_to_hbm [thread:$0]  %s4539, 32, %s21, [#allocation3]
    $region89: #{tpu_custom_call.1} parent=1 // pred_fallthru
      _
    // Predicated region
    $region90: #{tpu_custom_call.1} parent=1 // pred_check
      _
    $region91: #{tpu_custom_call.1} parent=1 // pred_check_branch
      %4543 = sbr.rel (0) target = $region93
    $region92: #{tpu_custom_call.1} parent=1 // pred_region
      %4544 = dma.done [#allocation3], 32
    $region93: #{tpu_custom_call.1} parent=1 // pred_fallthru
      _
    %4545 = vsyncpa [#allocation3], 1

</llo_original>
